<compile_context>
chip_gen: v6e
topology: v6e:2x2x1
jax: 0.10.0
libtpu: 0.0.40
codegen_flags: <defaults>
</compile_context>

<pallas_src>
import functools
import math

import jax
import jax.numpy as jnp
from jax.experimental import pallas as pl
from jax.experimental.pallas import tpu as pltpu

_EPS = 1e-5
_SEG_PAD = 128  # pad the per-segment stats axis to a full 128-lane width


def _withbias_layernorm_kernel(x_ref, w_ref, b_ref, seg_ref, segt_ref, o_ref,
                               *, inv_c):
    """Normalize each C-wide channel segment of a lane-packed (tile_r, L) block.

    x_ref   : (tile_r, L)   L = G*C lanes, G original rows packed per super row
    w_ref   : (1, L)        weight, tiled G times
    b_ref   : (1, L)        bias, tiled G times
    seg_ref : (L, 128)      one-hot segment matrix  S[l, g] = (l // C == g)
    segt_ref: (128, L)      its transpose (rows g >= G are all zero)
    """
    hp = jax.lax.Precision.HIGHEST  # keep full f32 accuracy through the MXU

    x = x_ref[...].astype(jnp.float32)
    seg = seg_ref[...]
    segt = segt_ref[...]

    # Fused single sweep over x: per-segment sum and sum of squares.
    s1 = jnp.dot(x, seg, preferred_element_type=jnp.float32, precision=hp)
    s2 = jnp.dot(x * x, seg, preferred_element_type=jnp.float32, precision=hp)

    mu = s1 * inv_c
    # torch.var(unbiased=False): population variance; clamp tiny negatives.
    var = jnp.maximum(s2 * inv_c - mu * mu, 0.0)
    inv = jax.lax.rsqrt(var + _EPS)

    # Broadcast per-segment scale / shift back onto the lane layout.
    # Padded columns (g >= G) hold garbage but segt's rows there are all zero.
    scale = jnp.dot(inv, segt, preferred_element_type=jnp.float32, precision=hp)
    shift = jnp.dot(-mu * inv, segt, preferred_element_type=jnp.float32,
                    precision=hp)

    w = w_ref[...].astype(jnp.float32)
    b = b_ref[...].astype(jnp.float32)
    y = (x * scale + shift) * w + b
    o_ref[...] = y.astype(o_ref.dtype)


def withbias_layernorm(x, weight, bias, *, target_block_bytes=2 * 1024 * 1024):
    """LayerNorm over the last axis of x (PyTorch WithBias_LayerNorm semantics).

    x: (..., C); weight, bias: (C,).  Returns same shape/dtype as x.
    """
    orig_shape = x.shape
    C = orig_shape[-1]
    M = x.size // C
    x2d = x.reshape(M, C)
    itemsize = x.dtype.itemsize

    # Lane packing factor: G rows per super row so blocks are lane-dense.
    G = math.lcm(C, 128) // C
    if G * C > 4096:          # pathological C: fall back to unpacked layout
        G = 1
    L = G * C

    # Row-tile sizing: ~target_block_bytes per block, multiple of the sublane
    # packing (8 f32 / 16 bf16 / 32 int8), never larger than the (padded) data.
    row_align = max(8, 32 // itemsize)
    n_super = pl.cdiv(M, G)
    tile_r = max(row_align,
                 (target_block_bytes // (L * itemsize)) // row_align * row_align)
    tile_r = min(tile_r, (n_super + row_align - 1) // row_align * row_align)
    n_super_pad = (n_super + tile_r - 1) // tile_r * tile_r
    m_pad = n_super_pad * G

    if m_pad != M:
        # Padding rows are zeros -> finite results (== bias), sliced off below.
        x2d = jnp.pad(x2d, ((0, m_pad - M), (0, 0)))
    x_packed = x2d.reshape(n_super_pad, L)          # free, contiguous reshape

    w_packed = jnp.tile(weight.reshape(1, C), (1, G))
    b_packed = jnp.tile(bias.reshape(1, C), (1, G))

    # Constant 0/1 segment matrix (and transpose), padded to 128 columns so all
    # in-kernel matmuls have MXU-friendly 128-aligned shapes.
    lane_seg = jnp.arange(L, dtype=jnp.int32) // C
    seg = (lane_seg[:, None] == jnp.arange(_SEG_PAD, dtype=jnp.int32)[None, :]
           ).astype(jnp.float32)                    # (L, 128)
    segt = seg.T                                    # (128, L)

    kernel = functools.partial(_withbias_layernorm_kernel, inv_c=1.0 / C)

    out_packed = pl.pallas_call(
        kernel,
        out_shape=jax.ShapeDtypeStruct((n_super_pad, L), x.dtype),
        grid_spec=pltpu.PrefetchScalarGridSpec(
            num_scalar_prefetch=0,
            grid=(n_super_pad // tile_r,),
            in_specs=[
                pl.BlockSpec((tile_r, L), lambda i: (i, 0)),
                pl.BlockSpec((1, L), lambda i: (0, 0)),
                pl.BlockSpec((1, L), lambda i: (0, 0)),
                pl.BlockSpec((L, _SEG_PAD), lambda i: (0, 0)),
                pl.BlockSpec((_SEG_PAD, L), lambda i: (0, 0)),
            ],
            out_specs=pl.BlockSpec((tile_r, L), lambda i: (i, 0)),
        ),
        compiler_params=pltpu.CompilerParams(
            dimension_semantics=("parallel",),   # rows shard across v7x's 2 TCs
            vmem_limit_bytes=32 * 1024 * 1024,
        ),
    )(x_packed, w_packed, b_packed, seg, segt)

    out2d = out_packed.reshape(m_pad, C)
    if m_pad != M:
        out2d = out2d[:M]
    return out2d.reshape(orig_shape)


def _reference(x, weight, bias):
    x32 = x.astype(jnp.float32)
    mu = jnp.mean(x32, axis=-1, keepdims=True)
    var = jnp.mean((x32 - mu) ** 2, axis=-1, keepdims=True)
    y = (x32 - mu) / jnp.sqrt(var + _EPS) * weight + bias
    return y.astype(x.dtype)


if __name__ == "__main__":
    key = jax.random.PRNGKey(0)
    kx, kw, kb, kx2, kw2, kb2 = jax.random.split(key, 6)

    # Shapes consistent with the transformer block: (B, H*W, C) tokens.
    B, N, C = 2, 64, 32
    x = jax.random.normal(kx, (B, N, C), dtype=jnp.float32)
    weight = 1.0 + 0.1 * jax.random.normal(kw, (C,), dtype=jnp.float32)
    bias = 0.1 * jax.random.normal(kb, (C,), dtype=jnp.float32)

    out = jax.block_until_ready(withbias_layernorm(x, weight, bias))
    ref = _reference(x, weight, bias)
    assert out.shape == x.shape and out.dtype == x.dtype
    assert jnp.allclose(out, ref, atol=2e-5, rtol=2e-5), (
        f"mismatch vs reference: max_err={jnp.max(jnp.abs(out - ref))}")

    # Odd shape: M not a multiple of the packing/tile size, C not dividing 128.
    B2, N2, C2 = 2, 13, 48
    x2 = jax.random.normal(kx2, (B2, N2, C2), dtype=jnp.float32)
    w2 = 1.0 + 0.1 * jax.random.normal(kw2, (C2,), dtype=jnp.float32)
    b2 = 0.1 * jax.random.normal(kb2, (C2,), dtype=jnp.float32)
    out2 = jax.block_until_ready(withbias_layernorm(x2, w2, b2))
    ref2 = _reference(x2, w2, b2)
    assert jnp.allclose(out2, ref2, atol=2e-5, rtol=2e-5), (
        f"mismatch vs reference (odd shape): max_err={jnp.max(jnp.abs(out2 - ref2))}")

    print("KERNEL_OK")
</pallas_src>

<mosaic_0001>
module attributes {stable_mosaic.version = 11 : i64} {
  func.func @_withbias_layernorm_kernel(%arg0: i32, %arg1: memref<32x128xf32, #tpu.memory_space<vmem>>, %arg2: memref<1x128xf32, #tpu.memory_space<vmem>>, %arg3: memref<1x128xf32, #tpu.memory_space<vmem>>, %arg4: memref<128x128xf32, #tpu.memory_space<vmem>>, %arg5: memref<128x128xf32, #tpu.memory_space<vmem>>, %arg6: memref<32x128xf32, #tpu.memory_space<vmem>>) attributes {dimension_semantics = [#tpu.dimension_semantics<parallel>], iteration_bounds = array<i64: 1>, scalar_prefetch = 0 : i64, scratch_operands = 0 : i64, tpu.core_type = #tpu.core_type<tc>, window_params = [{transform_indices = @transform_0, window_bounds = array<i64: 32, 128>}, {pipeline_mode = #tpu.pipeline_mode<synchronous>, transform_indices = @transform_1, window_bounds = array<i64: 1, 128>}, {pipeline_mode = #tpu.pipeline_mode<synchronous>, transform_indices = @transform_2, window_bounds = array<i64: 1, 128>}, {pipeline_mode = #tpu.pipeline_mode<synchronous>, transform_indices = @transform_3, window_bounds = array<i64: 128, 128>}, {pipeline_mode = #tpu.pipeline_mode<synchronous>, transform_indices = @transform_4, window_bounds = array<i64: 128, 128>}, {transform_indices = @transform_5, window_bounds = array<i64: 32, 128>}]} {
    %c0 = arith.constant 0 : index
    %c0_0 = arith.constant 0 : index
    %0 = vector.load %arg1[%c0, %c0_0] : memref<32x128xf32, #tpu.memory_space<vmem>>, vector<32x128xf32>
    %c0_1 = arith.constant 0 : index
    %c0_2 = arith.constant 0 : index
    %1 = vector.load %arg4[%c0_1, %c0_2] : memref<128x128xf32, #tpu.memory_space<vmem>>, vector<128x128xf32>
    %c0_3 = arith.constant 0 : index
    %c0_4 = arith.constant 0 : index
    %2 = vector.load %arg5[%c0_3, %c0_4] : memref<128x128xf32, #tpu.memory_space<vmem>>, vector<128x128xf32>
    %cst = arith.constant dense<0.000000e+00> : vector<32x128xf32>
    %3 = tpu.matmul %0, %1, %cst {dimension_numbers = #tpu.dot_dimension_numbers<[1], [0], [0], [1], [0, 0, 1, 1], [], []>, precision = #tpu.contract_precision<fp32>} : vector<32x128xf32>, vector<128x128xf32>, vector<32x128xf32> -> vector<32x128xf32>
    %4 = arith.mulf %0, %0 : vector<32x128xf32>
    %cst_5 = arith.constant dense<0.000000e+00> : vector<32x128xf32>
    %5 = tpu.matmul %4, %1, %cst_5 {dimension_numbers = #tpu.dot_dimension_numbers<[1], [0], [0], [1], [0, 0, 1, 1], [], []>, precision = #tpu.contract_precision<fp32>} : vector<32x128xf32>, vector<128x128xf32>, vector<32x128xf32> -> vector<32x128xf32>
    %cst_6 = arith.constant 3.125000e-02 : f32
    %6 = vector.broadcast %cst_6 : f32 to vector<32x128xf32>
    %7 = arith.mulf %3, %6 : vector<32x128xf32>
    %cst_7 = arith.constant 3.125000e-02 : f32
    %8 = vector.broadcast %cst_7 : f32 to vector<32x128xf32>
    %9 = arith.mulf %5, %8 : vector<32x128xf32>
    %10 = arith.mulf %7, %7 : vector<32x128xf32>
    %11 = arith.subf %9, %10 : vector<32x128xf32>
    %cst_8 = arith.constant 0.000000e+00 : f32
    %12 = vector.broadcast %cst_8 : f32 to vector<32x128xf32>
    %13 = arith.maximumf %11, %12 : vector<32x128xf32>
    %cst_9 = arith.constant 9.99999974E-6 : f32
    %14 = vector.broadcast %cst_9 : f32 to vector<32x128xf32>
    %15 = arith.addf %13, %14 : vector<32x128xf32>
    %16 = math.rsqrt %15 : vector<32x128xf32>
    %cst_10 = arith.constant dense<0.000000e+00> : vector<32x128xf32>
    %17 = tpu.matmul %16, %2, %cst_10 {dimension_numbers = #tpu.dot_dimension_numbers<[1], [0], [0], [1], [0, 0, 1, 1], [], []>, precision = #tpu.contract_precision<fp32>} : vector<32x128xf32>, vector<128x128xf32>, vector<32x128xf32> -> vector<32x128xf32>
    %cst_11 = arith.constant 0.000000e+00 : f32
    %18 = vector.broadcast %cst_11 : f32 to vector<32x128xf32>
    %19 = arith.subf %18, %7 : vector<32x128xf32>
    %20 = arith.mulf %19, %16 : vector<32x128xf32>
    %cst_12 = arith.constant dense<0.000000e+00> : vector<32x128xf32>
    %21 = tpu.matmul %20, %2, %cst_12 {dimension_numbers = #tpu.dot_dimension_numbers<[1], [0], [0], [1], [0, 0, 1, 1], [], []>, precision = #tpu.contract_precision<fp32>} : vector<32x128xf32>, vector<128x128xf32>, vector<32x128xf32> -> vector<32x128xf32>
    %c0_13 = arith.constant 0 : index
    %c0_14 = arith.constant 0 : index
    %22 = vector.load %arg2[%c0_13, %c0_14] : memref<1x128xf32, #tpu.memory_space<vmem>>, vector<1x128xf32>
    %c0_15 = arith.constant 0 : index
    %c0_16 = arith.constant 0 : index
    %23 = vector.load %arg3[%c0_15, %c0_16] : memref<1x128xf32, #tpu.memory_space<vmem>>, vector<1x128xf32>
    %24 = arith.mulf %0, %17 : vector<32x128xf32>
    %25 = arith.addf %24, %21 : vector<32x128xf32>
    %26 = vector.broadcast %22 : vector<1x128xf32> to vector<32x128xf32>
    %27 = arith.mulf %25, %26 : vector<32x128xf32>
    %28 = vector.broadcast %23 : vector<1x128xf32> to vector<32x128xf32>
    %29 = arith.addf %27, %28 : vector<32x128xf32>
    %c0_17 = arith.constant 0 : index
    %c0_18 = arith.constant 0 : index
    %30 = vector.load %arg6[%c0_17, %c0_18] : memref<32x128xf32, #tpu.memory_space<vmem>>, vector<32x128xf32>
    tpu.vector_store %arg6[%c0_17, %c0_18], %29 {strides = array<i32>} : memref<32x128xf32, #tpu.memory_space<vmem>>, vector<32x128xf32>,
    return
  }
  func.func @transform_0(%arg0: i32) -> (i32, i32) {
    %c0_i32 = arith.constant 0 : i32
    %c0_i32_0 = arith.constant 0 : i32
    return %arg0, %c0_i32 : i32, i32
  }
  func.func @transform_1(%arg0: i32) -> (i32, i32) {
    %c0_i32 = arith.constant 0 : i32
    %c0_i32_0 = arith.constant 0 : i32
    %c0_i32_1 = arith.constant 0 : i32
    return %c0_i32, %c0_i32_0 : i32, i32
  }
  func.func @transform_2(%arg0: i32) -> (i32, i32) {
    %c0_i32 = arith.constant 0 : i32
    %c0_i32_0 = arith.constant 0 : i32
    %c0_i32_1 = arith.constant 0 : i32
    return %c0_i32, %c0_i32_0 : i32, i32
  }
  func.func @transform_3(%arg0: i32) -> (i32, i32) {
    %c0_i32 = arith.constant 0 : i32
    %c0_i32_0 = arith.constant 0 : i32
    %c0_i32_1 = arith.constant 0 : i32
    return %c0_i32, %c0_i32_0 : i32, i32
  }
  func.func @transform_4(%arg0: i32) -> (i32, i32) {
    %c0_i32 = arith.constant 0 : i32
    %c0_i32_0 = arith.constant 0 : i32
    %c0_i32_1 = arith.constant 0 : i32
    return %c0_i32, %c0_i32_0 : i32, i32
  }
  func.func @transform_5(%arg0: i32) -> (i32, i32) {
    %c0_i32 = arith.constant 0 : i32
    %c0_i32_0 = arith.constant 0 : i32
    return %arg0, %c0_i32 : i32, i32
  }
}

</mosaic_0001>

<llo_original>
// kernel: tpu_custom_call.1
$region0: #{tpu_custom_call.1}
  #allocation0 [shape = 'u32[]', space=smem, size = 0x4, offset = 0x4, fixed_abs, tag = 'smem constant byte address 0x4 - core index']
  #allocation1 [shape = 'u32[144,128]{1,0:T(1,128)}', space=vmem, size = 0x12000, scoped, tag = 'internal scratch']
  %s0 = inlined_call_operand.hbm [shape: f32[32,128], index: 0, kind: input, shape index: {}]
  %s1 = inlined_call_operand.vmem [shape: f32[1,128], index: 1, kind: input, shape index: {}]
  %s2 = inlined_call_operand.vmem [shape: f32[1,128], index: 2, kind: input, shape index: {}]
  %s3 = inlined_call_operand.hbm [shape: f32[128,128], index: 3, kind: input, shape index: {}]
  %s4 = inlined_call_operand.hbm [shape: f32[128,128], index: 4, kind: input, shape index: {}]
  %s5 = inlined_call_operand.hbm [shape: f32[32,128], index: 5, kind: output, shape index: {}]
  %s6 = sld [smem:[#allocation0]]
  $region42: #{tpu_custom_call.1} parent=0
    _
  %s8 = ssub.s32 1, %s6
  %s9 = scalar_select 0, %s8, %s6
  $region1: #{tpu_custom_call.1} parent=0
    #allocation2 [shape = 'u8[16384]{0}', space=vmem, size = 0x4000, scoped, tag = 'input window, operand 0, single buffered']
    #allocation3 [shape = 's32[1]{0}', space=sflag, size = 0x4, scoped, tag = 'scoped memory for tpu_custom_call.1']
    #allocation4 [shape = 's32[1]{0}', space=sflag, size = 0x4, scoped, tag = 'scoped memory for tpu_custom_call.1']
    #allocation5 [shape = 'u8[65536]{0}', space=vmem, size = 0x10000, scoped, tag = 'input window, operand 3, single buffered']
    #allocation6 [shape = 's32[1]{0}', space=sflag, size = 0x4, scoped, tag = 'scoped memory for tpu_custom_call.1']
    #allocation7 [shape = 'u8[65536]{0}', space=vmem, size = 0x10000, scoped, tag = 'input window, operand 4, single buffered']
    #allocation8 [shape = 'u8[16384]{0}', space=vmem, size = 0x4000, scoped, tag = 'output window, operand 0, single buffered']
    %10 = vsyncpa [#allocation3], 0
    %11 = vsyncpa [#allocation6], 0
    %12 = vsyncpa [#allocation4], 0
    // Predicated region
    $region2: #{tpu_custom_call.1} parent=1 // pred_check
      _
    $region3: #{tpu_custom_call.1} parent=1 // pred_check_branch
      %14 = sbr.rel (0) target = $region5
    $region4: #{tpu_custom_call.1} parent=1 // pred_region
      %s16 = ssub.s32 512, 512
      %17 = vsyncadd [#allocation3], %s16
      %s18 = sshll.u32 [#allocation2], 4
      %s19 = int_to_ptr.vmem [resolvable:$true] %s18
      %24 = dma.hbm_to_vmem [thread:$0]  %s0, 512, %s19, [#allocation3], 128, 128, 8
    $region5: #{tpu_custom_call.1} parent=1 // pred_fallthru
      _
    // Predicated region
    $region6: #{tpu_custom_call.1} parent=1 // pred_check
      _
    $region7: #{tpu_custom_call.1} parent=1 // pred_check_branch
      %26 = sbr.rel (0) target = $region9
    $region8: #{tpu_custom_call.1} parent=1 // pred_region
      _
    $region9: #{tpu_custom_call.1} parent=1 // pred_fallthru
      _
    // Predicated region
    $region10: #{tpu_custom_call.1} parent=1 // pred_check
      _
    $region11: #{tpu_custom_call.1} parent=1 // pred_check_branch
      %28 = sbr.rel (0) target = $region13
    $region12: #{tpu_custom_call.1} parent=1 // pred_region
      _
    $region13: #{tpu_custom_call.1} parent=1 // pred_fallthru
      _
    // Predicated region
    $region14: #{tpu_custom_call.1} parent=1 // pred_check
      _
    $region15: #{tpu_custom_call.1} parent=1 // pred_check_branch
      %30 = sbr.rel (0) target = $region17
    $region16: #{tpu_custom_call.1} parent=1 // pred_region
      %s32 = ssub.s32 2048, 2048
      %33 = vsyncadd [#allocation6], %s32
      %s34 = sshll.u32 [#allocation5], 4
      %s35 = int_to_ptr.vmem [resolvable:$true] %s34
      %40 = dma.hbm_to_vmem [thread:$0]  %s3, 2048, %s35, [#allocation6], 128, 128, 8
    $region17: #{tpu_custom_call.1} parent=1 // pred_fallthru
      _
    // Predicated region
    $region18: #{tpu_custom_call.1} parent=1 // pred_check
      _
    $region19: #{tpu_custom_call.1} parent=1 // pred_check_branch
      %42 = sbr.rel (0) target = $region21
    $region20: #{tpu_custom_call.1} parent=1 // pred_region
      %s44 = ssub.s32 2048, 2048
      %45 = vsyncadd [#allocation6], %s44
      %s46 = sshll.u32 [#allocation7], 4
      %s47 = int_to_ptr.vmem [resolvable:$true] %s46
      %52 = dma.hbm_to_vmem [thread:$0]  %s4, 2048, %s47, [#allocation6], 128, 128, 8
    $region21: #{tpu_custom_call.1} parent=1 // pred_fallthru
      _
    // Predicated region
    $region22: #{tpu_custom_call.1} parent=1 // pred_check
      _
    $region23: #{tpu_custom_call.1} parent=1 // pred_check_branch
      %54 = sbr.rel (0) target = $region25
    $region24: #{tpu_custom_call.1} parent=1 // pred_region
      %55 = dma.done [#allocation3], 512
    $region25: #{tpu_custom_call.1} parent=1 // pred_fallthru
      _
    // Predicated region
    $region26: #{tpu_custom_call.1} parent=1 // pred_check
      _
    $region27: #{tpu_custom_call.1} parent=1 // pred_check_branch
      %57 = sbr.rel (0) target = $region29
    $region28: #{tpu_custom_call.1} parent=1 // pred_region
      %58 = dma.done [#allocation6], 2048
    $region29: #{tpu_custom_call.1} parent=1 // pred_fallthru
      _
    // Predicated region
    $region30: #{tpu_custom_call.1} parent=1 // pred_check
      _
    $region31: #{tpu_custom_call.1} parent=1 // pred_check_branch
      %60 = sbr.rel (0) target = $region33
    $region32: #{tpu_custom_call.1} parent=1 // pred_region
      %61 = dma.done [#allocation6], 2048
    $region33: #{tpu_custom_call.1} parent=1 // pred_fallthru
      _
    %v62 = vld [vmem:[#allocation2] sm:$0xff]
    %v63 = vld [vmem:[#allocation2 + $0x8] sm:$0xff]
    %v64 = vld [vmem:[#allocation2 + $0x10] sm:$0xff]
    %v65 = vld [vmem:[#allocation2 + $0x18] sm:$0xff]
    %v66 = vld [vmem:[#allocation5] sm:$0xff]
    %v67 = vld [vmem:[#allocation5 + $0x8] sm:$0xff]
    %v68 = vld [vmem:[#allocation5 + $0x10] sm:$0xff]
    %v69 = vld [vmem:[#allocation5 + $0x18] sm:$0xff]
    %v70 = vld [vmem:[#allocation5 + $0x20] sm:$0xff]
    %v71 = vld [vmem:[#allocation5 + $0x28] sm:$0xff]
    %v72 = vld [vmem:[#allocation5 + $0x30] sm:$0xff]
    %v73 = vld [vmem:[#allocation5 + $0x38] sm:$0xff]
    %v74 = vld [vmem:[#allocation5 + $0x40] sm:$0xff]
    %v75 = vld [vmem:[#allocation5 + $0x48] sm:$0xff]
    %v76 = vld [vmem:[#allocation5 + $0x50] sm:$0xff]
    %v77 = vld [vmem:[#allocation5 + $0x58] sm:$0xff]
    %v78 = vld [vmem:[#allocation5 + $0x60] sm:$0xff]
    %v79 = vld [vmem:[#allocation5 + $0x68] sm:$0xff]
    %v80 = vld [vmem:[#allocation5 + $0x70] sm:$0xff]
    %v81 = vld [vmem:[#allocation5 + $0x78] sm:$0xff]
    %v82 = vld [vmem:[#allocation7] sm:$0xff]
    %v83 = vld [vmem:[#allocation7 + $0x8] sm:$0xff]
    %v84 = vld [vmem:[#allocation7 + $0x10] sm:$0xff]
    %v85 = vld [vmem:[#allocation7 + $0x18] sm:$0xff]
    %v86 = vld [vmem:[#allocation7 + $0x20] sm:$0xff]
    %v87 = vld [vmem:[#allocation7 + $0x28] sm:$0xff]
    %v88 = vld [vmem:[#allocation7 + $0x30] sm:$0xff]
    %v89 = vld [vmem:[#allocation7 + $0x38] sm:$0xff]
    %v90 = vld [vmem:[#allocation7 + $0x40] sm:$0xff]
    %v91 = vld [vmem:[#allocation7 + $0x48] sm:$0xff]
    %v92 = vld [vmem:[#allocation7 + $0x50] sm:$0xff]
    %v93 = vld [vmem:[#allocation7 + $0x58] sm:$0xff]
    %v94 = vld [vmem:[#allocation7 + $0x60] sm:$0xff]
    %v95 = vld [vmem:[#allocation7 + $0x68] sm:$0xff]
    %v96 = vld [vmem:[#allocation7 + $0x70] sm:$0xff]
    %v97 = vld [vmem:[#allocation7 + $0x78] sm:$0xff]
    %98 = vmatprep.subr.mxu0 0.0
    %v99 = vand.u32 %v81, 4294901760
    %100 = vmatpush1.msra.mxu0 %v99
    %101 = vmatprep.subr.mxu0 0.0
    %v102 = vand.u32 %v80, 4294901760
    %103 = vmatpush1.msra.mxu0 %v102
    %104 = vmatprep.subr.mxu0 0.0
    %v105 = vand.u32 %v79, 4294901760
    %106 = vmatpush1.msra.mxu0 %v105
    %107 = vmatprep.subr.mxu0 0.0
    %v108 = vand.u32 %v78, 4294901760
    %109 = vmatpush1.msra.mxu0 %v108
    %110 = vmatprep.subr.mxu0 0.0
    %v111 = vand.u32 %v77, 4294901760
    %112 = vmatpush1.msra.mxu0 %v111
    %113 = vmatprep.subr.mxu0 0.0
    %v114 = vand.u32 %v76, 4294901760
    %115 = vmatpush1.msra.mxu0 %v114
    %116 = vmatprep.subr.mxu0 0.0
    %v117 = vand.u32 %v75, 4294901760
    %118 = vmatpush1.msra.mxu0 %v117
    %119 = vmatprep.subr.mxu0 0.0
    %v120 = vand.u32 %v74, 4294901760
    %121 = vmatpush1.msra.mxu0 %v120
    %122 = vmatprep.subr.mxu0 0.0
    %v123 = vand.u32 %v73, 4294901760
    %124 = vmatpush1.msra.mxu0 %v123
    %125 = vmatprep.subr.mxu0 0.0
    %v126 = vand.u32 %v72, 4294901760
    %127 = vmatpush1.msra.mxu0 %v126
    %128 = vmatprep.subr.mxu0 0.0
    %v129 = vand.u32 %v71, 4294901760
    %130 = vmatpush1.msra.mxu0 %v129
    %131 = vmatprep.subr.mxu0 0.0
    %v132 = vand.u32 %v70, 4294901760
    %133 = vmatpush1.msra.mxu0 %v132
    %134 = vmatprep.subr.mxu0 0.0
    %v135 = vand.u32 %v69, 4294901760
    %136 = vmatpush1.msra.mxu0 %v135
    %137 = vmatprep.subr.mxu0 0.0
    %v138 = vand.u32 %v68, 4294901760
    %139 = vmatpush1.msra.mxu0 %v138
    %140 = vmatprep.subr.mxu0 0.0
    %v141 = vand.u32 %v67, 4294901760
    %142 = vmatpush1.msra.mxu0 %v141
    %143 = vmatprep.subr.mxu0 0.0
    %v144 = vand.u32 %v66, 4294901760
    %145 = vmatpush1.msra.mxu0 %v144
    %146 = vmatprep.subr.mxu0 0.0
    %147 = vmatpush2.msra.mxu0 0.0
    %148 = vmatprep.subr.mxu0 0.0
    %149 = vmatpush2.msra.mxu0 0.0
    %150 = vmatprep.subr.mxu0 0.0
    %151 = vmatpush2.msra.mxu0 0.0
    %152 = vmatprep.subr.mxu0 0.0
    %153 = vmatpush2.msra.mxu0 0.0
    %154 = vmatprep.subr.mxu0 0.0
    %155 = vmatpush2.msra.mxu0 0.0
    %156 = vmatprep.subr.mxu0 0.0
    %157 = vmatpush2.msra.mxu0 0.0
    %158 = vmatprep.subr.mxu0 0.0
    %159 = vmatpush2.msra.mxu0 0.0
    %160 = vmatprep.subr.mxu0 0.0
    %161 = vmatpush2.msra.mxu0 0.0
    %162 = vmatprep.subr.mxu0 0.0
    %163 = vmatpush2.msra.mxu0 0.0
    %164 = vmatprep.subr.mxu0 0.0
    %165 = vmatpush2.msra.mxu0 0.0
    %166 = vmatprep.subr.mxu0 0.0
    %167 = vmatpush2.msra.mxu0 0.0
    %168 = vmatprep.subr.mxu0 0.0
    %169 = vmatpush2.msra.mxu0 0.0
    %170 = vmatprep.subr.mxu0 0.0
    %171 = vmatpush2.msra.mxu0 0.0
    %172 = vmatprep.subr.mxu0 0.0
    %173 = vmatpush2.msra.mxu0 0.0
    %174 = vmatprep.subr.mxu0 0.0
    %175 = vmatpush2.msra.mxu0 0.0
    %176 = vmatprep.subr.mxu0 0.0
    %177 = vmatpush2.msra.mxu0 0.0
    %178 = vmatprep.mubr.f32.mxu0 0.0
    %v179 = vand.u32 %v62, 4294901760
    %v180 = vsub.f32 %v62, %v179
    %v181 = vand.u32 %v180, 4294901760
    %v182 = vsub.f32 %v180, %v181
    %v183 = vand.u32 %v182, 4294901760
    %184 = vmatmul.mubr.f32.gmra.mxu0 %v183
    %v185 = vpop.f32.mrf.mxu0
    %v186 = vadd.f32 0.0, %v185
    %v187 = vpop.f32.mrf.mxu0
    %188 = vmatprep.mubr.f32.mxu0 0.0
    %v189 = vand.u32 %v63, 4294901760
    %v190 = vsub.f32 %v63, %v189
    %v191 = vand.u32 %v190, 4294901760
    %v192 = vsub.f32 %v190, %v191
    %v193 = vand.u32 %v192, 4294901760
    %194 = vmatmul.mubr.f32.gmra.mxu0 %v193
    %v195 = vpop.f32.mrf.mxu0
    %v196 = vadd.f32 0.0, %v195
    %v197 = vpop.f32.mrf.mxu0
    %198 = vmatprep.mubr.f32.mxu0 0.0
    %v199 = vand.u32 %v64, 4294901760
    %v200 = vsub.f32 %v64, %v199
    %v201 = vand.u32 %v200, 4294901760
    %v202 = vsub.f32 %v200, %v201
    %v203 = vand.u32 %v202, 4294901760
    %204 = vmatmul.mubr.f32.gmra.mxu0 %v203
    %v205 = vpop.f32.mrf.mxu0
    %v206 = vadd.f32 0.0, %v205
    %v207 = vpop.f32.mrf.mxu0
    %208 = vmatprep.mubr.f32.mxu0 0.0
    %v209 = vand.u32 %v65, 4294901760
    %v210 = vsub.f32 %v65, %v209
    %v211 = vand.u32 %v210, 4294901760
    %v212 = vsub.f32 %v210, %v211
    %v213 = vand.u32 %v212, 4294901760
    %214 = vmatmul.mubr.f32.gmra.mxu0 %v213
    %v215 = vpop.f32.mrf.mxu0
    %v216 = vadd.f32 0.0, %v215
    %v217 = vpop.f32.mrf.mxu0
    %218 = vdwg.mxu0
    %219 = vmatprep.subr.mxu0 0.0
    %v220 = vand.u32 %v81, 4294901760
    %v221 = vsub.f32 %v81, %v220
    %v222 = vand.u32 %v221, 4294901760
    %v223 = vsub.f32 %v221, %v222
    %v224 = vand.u32 %v223, 4294901760
    %225 = vmatpush1.msra.mxu0 %v224
    %226 = vmatprep.subr.mxu0 0.0
    %v227 = vand.u32 %v80, 4294901760
    %v228 = vsub.f32 %v80, %v227
    %v229 = vand.u32 %v228, 4294901760
    %v230 = vsub.f32 %v228, %v229
    %v231 = vand.u32 %v230, 4294901760
    %232 = vmatpush1.msra.mxu0 %v231
    %233 = vmatprep.subr.mxu0 0.0
    %v234 = vand.u32 %v79, 4294901760
    %v235 = vsub.f32 %v79, %v234
    %v236 = vand.u32 %v235, 4294901760
    %v237 = vsub.f32 %v235, %v236
    %v238 = vand.u32 %v237, 4294901760
    %239 = vmatpush1.msra.mxu0 %v238
    %240 = vmatprep.subr.mxu0 0.0
    %v241 = vand.u32 %v78, 4294901760
    %v242 = vsub.f32 %v78, %v241
    %v243 = vand.u32 %v242, 4294901760
    %v244 = vsub.f32 %v242, %v243
    %v245 = vand.u32 %v244, 4294901760
    %246 = vmatpush1.msra.mxu0 %v245
    %247 = vmatprep.subr.mxu0 0.0
    %v248 = vand.u32 %v77, 4294901760
    %v249 = vsub.f32 %v77, %v248
    %v250 = vand.u32 %v249, 4294901760
    %v251 = vsub.f32 %v249, %v250
    %v252 = vand.u32 %v251, 4294901760
    %253 = vmatpush1.msra.mxu0 %v252
    %254 = vmatprep.subr.mxu0 0.0
    %v255 = vand.u32 %v76, 4294901760
    %v256 = vsub.f32 %v76, %v255
    %v257 = vand.u32 %v256, 4294901760
    %v258 = vsub.f32 %v256, %v257
    %v259 = vand.u32 %v258, 4294901760
    %260 = vmatpush1.msra.mxu0 %v259
    %261 = vmatprep.subr.mxu0 0.0
    %v262 = vand.u32 %v75, 4294901760
    %v263 = vsub.f32 %v75, %v262
    %v264 = vand.u32 %v263, 4294901760
    %v265 = vsub.f32 %v263, %v264
    %v266 = vand.u32 %v265, 4294901760
    %267 = vmatpush1.msra.mxu0 %v266
    %268 = vmatprep.subr.mxu0 0.0
    %v269 = vand.u32 %v74, 4294901760
    %v270 = vsub.f32 %v74, %v269
    %v271 = vand.u32 %v270, 4294901760
    %v272 = vsub.f32 %v270, %v271
    %v273 = vand.u32 %v272, 4294901760
    %274 = vmatpush1.msra.mxu0 %v273
    %275 = vmatprep.subr.mxu0 0.0
    %v276 = vand.u32 %v73, 4294901760
    %v277 = vsub.f32 %v73, %v276
    %v278 = vand.u32 %v277, 4294901760
    %v279 = vsub.f32 %v277, %v278
    %v280 = vand.u32 %v279, 4294901760
    %281 = vmatpush1.msra.mxu0 %v280
    %282 = vmatprep.subr.mxu0 0.0
    %v283 = vand.u32 %v72, 4294901760
    %v284 = vsub.f32 %v72, %v283
    %v285 = vand.u32 %v284, 4294901760
    %v286 = vsub.f32 %v284, %v285
    %v287 = vand.u32 %v286, 4294901760
    %288 = vmatpush1.msra.mxu0 %v287
    %289 = vmatprep.subr.mxu0 0.0
    %v290 = vand.u32 %v71, 4294901760
    %v291 = vsub.f32 %v71, %v290
    %v292 = vand.u32 %v291, 4294901760
    %v293 = vsub.f32 %v291, %v292
    %v294 = vand.u32 %v293, 4294901760
    %295 = vmatpush1.msra.mxu0 %v294
    %296 = vmatprep.subr.mxu0 0.0
    %v297 = vand.u32 %v70, 4294901760
    %v298 = vsub.f32 %v70, %v297
    %v299 = vand.u32 %v298, 4294901760
    %v300 = vsub.f32 %v298, %v299
    %v301 = vand.u32 %v300, 4294901760
    %302 = vmatpush1.msra.mxu0 %v301
    %303 = vmatprep.subr.mxu0 0.0
    %v304 = vand.u32 %v69, 4294901760
    %v305 = vsub.f32 %v69, %v304
    %v306 = vand.u32 %v305, 4294901760
    %v307 = vsub.f32 %v305, %v306
    %v308 = vand.u32 %v307, 4294901760
    %309 = vmatpush1.msra.mxu0 %v308
    %310 = vmatprep.subr.mxu0 0.0
    %v311 = vand.u32 %v68, 4294901760
    %v312 = vsub.f32 %v68, %v311
    %v313 = vand.u32 %v312, 4294901760
    %v314 = vsub.f32 %v312, %v313
    %v315 = vand.u32 %v314, 4294901760
    %316 = vmatpush1.msra.mxu0 %v315
    %317 = vmatprep.subr.mxu0 0.0
    %v318 = vand.u32 %v67, 4294901760
    %v319 = vsub.f32 %v67, %v318
    %v320 = vand.u32 %v319, 4294901760
    %v321 = vsub.f32 %v319, %v320
    %v322 = vand.u32 %v321, 4294901760
    %323 = vmatpush1.msra.mxu0 %v322
    %324 = vmatprep.subr.mxu0 0.0
    %v325 = vand.u32 %v66, 4294901760
    %v326 = vsub.f32 %v66, %v325
    %v327 = vand.u32 %v326, 4294901760
    %v328 = vsub.f32 %v326, %v327
    %v329 = vand.u32 %v328, 4294901760
    %330 = vmatpush1.msra.mxu0 %v329
    %331 = vmatprep.subr.mxu0 0.0
    %332 = vmatpush2.msra.mxu0 0.0
    %333 = vmatprep.subr.mxu0 0.0
    %334 = vmatpush2.msra.mxu0 0.0
    %335 = vmatprep.subr.mxu0 0.0
    %336 = vmatpush2.msra.mxu0 0.0
    %337 = vmatprep.subr.mxu0 0.0
    %338 = vmatpush2.msra.mxu0 0.0
    %339 = vmatprep.subr.mxu0 0.0
    %340 = vmatpush2.msra.mxu0 0.0
    %341 = vmatprep.subr.mxu0 0.0
    %342 = vmatpush2.msra.mxu0 0.0
    %343 = vmatprep.subr.mxu0 0.0
    %344 = vmatpush2.msra.mxu0 0.0
    %345 = vmatprep.subr.mxu0 0.0
    %346 = vmatpush2.msra.mxu0 0.0
    %347 = vmatprep.subr.mxu0 0.0
    %348 = vmatpush2.msra.mxu0 0.0
    %349 = vmatprep.subr.mxu0 0.0
    %350 = vmatpush2.msra.mxu0 0.0
    %351 = vmatprep.subr.mxu0 0.0
    %352 = vmatpush2.msra.mxu0 0.0
    %353 = vmatprep.subr.mxu0 0.0
    %354 = vmatpush2.msra.mxu0 0.0
    %355 = vmatprep.subr.mxu0 0.0
    %356 = vmatpush2.msra.mxu0 0.0
    %357 = vmatprep.subr.mxu0 0.0
    %358 = vmatpush2.msra.mxu0 0.0
    %359 = vmatprep.subr.mxu0 0.0
    %360 = vmatpush2.msra.mxu0 0.0
    %361 = vmatprep.subr.mxu0 0.0
    %362 = vmatpush2.msra.mxu0 0.0
    %363 = vmatprep.mubr.f32.mxu0 0.0
    %v364 = vand.u32 %v62, 4294901760
    %365 = vmatmul.mubr.f32.gmra.mxu0 %v364
    %v366 = vpop.f32.mrf.mxu0
    %v367 = vadd.f32 %v186, %v366
    %v368 = vpop.f32.mrf.mxu0
    %369 = vmatprep.mubr.f32.mxu0 0.0
    %v370 = vand.u32 %v63, 4294901760
    %371 = vmatmul.mubr.f32.gmra.mxu0 %v370
    %v372 = vpop.f32.mrf.mxu0
    %v373 = vadd.f32 %v196, %v372
    %v374 = vpop.f32.mrf.mxu0
    %375 = vmatprep.mubr.f32.mxu0 0.0
    %v376 = vand.u32 %v64, 4294901760
    %377 = vmatmul.mubr.f32.gmra.mxu0 %v376
    %v378 = vpop.f32.mrf.mxu0
    %v379 = vadd.f32 %v206, %v378
    %v380 = vpop.f32.mrf.mxu0
    %381 = vmatprep.mubr.f32.mxu0 0.0
    %v382 = vand.u32 %v65, 4294901760
    %383 = vmatmul.mubr.f32.gmra.mxu0 %v382
    %v384 = vpop.f32.mrf.mxu0
    %v385 = vadd.f32 %v216, %v384
    %v386 = vpop.f32.mrf.mxu0
    %387 = vdwg.mxu0
    %388 = vmatprep.subr.mxu0 0.0
    %v389 = vand.u32 %v81, 4294901760
    %v390 = vsub.f32 %v81, %v389
    %391 = vmatpush1.msra.mxu0 %v390
    %392 = vmatprep.subr.mxu0 0.0
    %v393 = vand.u32 %v80, 4294901760
    %v394 = vsub.f32 %v80, %v393
    %395 = vmatpush1.msra.mxu0 %v394
    %396 = vmatprep.subr.mxu0 0.0
    %v397 = vand.u32 %v79, 4294901760
    %v398 = vsub.f32 %v79, %v397
    %399 = vmatpush1.msra.mxu0 %v398
    %400 = vmatprep.subr.mxu0 0.0
    %v401 = vand.u32 %v78, 4294901760
    %v402 = vsub.f32 %v78, %v401
    %403 = vmatpush1.msra.mxu0 %v402
    %404 = vmatprep.subr.mxu0 0.0
    %v405 = vand.u32 %v77, 4294901760
    %v406 = vsub.f32 %v77, %v405
    %407 = vmatpush1.msra.mxu0 %v406
    %408 = vmatprep.subr.mxu0 0.0
    %v409 = vand.u32 %v76, 4294901760
    %v410 = vsub.f32 %v76, %v409
    %411 = vmatpush1.msra.mxu0 %v410
    %412 = vmatprep.subr.mxu0 0.0
    %v413 = vand.u32 %v75, 4294901760
    %v414 = vsub.f32 %v75, %v413
    %415 = vmatpush1.msra.mxu0 %v414
    %416 = vmatprep.subr.mxu0 0.0
    %v417 = vand.u32 %v74, 4294901760
    %v418 = vsub.f32 %v74, %v417
    %419 = vmatpush1.msra.mxu0 %v418
    %420 = vmatprep.subr.mxu0 0.0
    %v421 = vand.u32 %v73, 4294901760
    %v422 = vsub.f32 %v73, %v421
    %423 = vmatpush1.msra.mxu0 %v422
    %424 = vmatprep.subr.mxu0 0.0
    %v425 = vand.u32 %v72, 4294901760
    %v426 = vsub.f32 %v72, %v425
    %427 = vmatpush1.msra.mxu0 %v426
    %428 = vmatprep.subr.mxu0 0.0
    %v429 = vand.u32 %v71, 4294901760
    %v430 = vsub.f32 %v71, %v429
    %431 = vmatpush1.msra.mxu0 %v430
    %432 = vmatprep.subr.mxu0 0.0
    %v433 = vand.u32 %v70, 4294901760
    %v434 = vsub.f32 %v70, %v433
    %435 = vmatpush1.msra.mxu0 %v434
    %436 = vmatprep.subr.mxu0 0.0
    %v437 = vand.u32 %v69, 4294901760
    %v438 = vsub.f32 %v69, %v437
    %439 = vmatpush1.msra.mxu0 %v438
    %440 = vmatprep.subr.mxu0 0.0
    %v441 = vand.u32 %v68, 4294901760
    %v442 = vsub.f32 %v68, %v441
    %443 = vmatpush1.msra.mxu0 %v442
    %444 = vmatprep.subr.mxu0 0.0
    %v445 = vand.u32 %v67, 4294901760
    %v446 = vsub.f32 %v67, %v445
    %447 = vmatpush1.msra.mxu0 %v446
    %448 = vmatprep.subr.mxu0 0.0
    %v449 = vand.u32 %v66, 4294901760
    %v450 = vsub.f32 %v66, %v449
    %451 = vmatpush1.msra.mxu0 %v450
    %452 = vmatprep.subr.mxu0 0.0
    %453 = vmatpush2.msra.mxu0 0.0
    %454 = vmatprep.subr.mxu0 0.0
    %455 = vmatpush2.msra.mxu0 0.0
    %456 = vmatprep.subr.mxu0 0.0
    %457 = vmatpush2.msra.mxu0 0.0
    %458 = vmatprep.subr.mxu0 0.0
    %459 = vmatpush2.msra.mxu0 0.0
    %460 = vmatprep.subr.mxu0 0.0
    %461 = vmatpush2.msra.mxu0 0.0
    %462 = vmatprep.subr.mxu0 0.0
    %463 = vmatpush2.msra.mxu0 0.0
    %464 = vmatprep.subr.mxu0 0.0
    %465 = vmatpush2.msra.mxu0 0.0
    %466 = vmatprep.subr.mxu0 0.0
    %467 = vmatpush2.msra.mxu0 0.0
    %468 = vmatprep.subr.mxu0 0.0
    %469 = vmatpush2.msra.mxu0 0.0
    %470 = vmatprep.subr.mxu0 0.0
    %471 = vmatpush2.msra.mxu0 0.0
    %472 = vmatprep.subr.mxu0 0.0
    %473 = vmatpush2.msra.mxu0 0.0
    %474 = vmatprep.subr.mxu0 0.0
    %475 = vmatpush2.msra.mxu0 0.0
    %476 = vmatprep.subr.mxu0 0.0
    %477 = vmatpush2.msra.mxu0 0.0
    %478 = vmatprep.subr.mxu0 0.0
    %479 = vmatpush2.msra.mxu0 0.0
    %480 = vmatprep.subr.mxu0 0.0
    %481 = vmatpush2.msra.mxu0 0.0
    %482 = vmatprep.subr.mxu0 0.0
    %483 = vmatpush2.msra.mxu0 0.0
    %484 = vmatprep.mubr.f32.mxu0 0.0
    %v485 = vand.u32 %v62, 4294901760
    %v486 = vsub.f32 %v62, %v485
    %487 = vmatmul.mubr.f32.gmra.mxu0 %v486
    %v488 = vpop.f32.mrf.mxu0
    %v489 = vadd.f32 %v367, %v488
    %v490 = vpop.f32.mrf.mxu0
    %491 = vmatprep.mubr.f32.mxu0 0.0
    %v492 = vand.u32 %v63, 4294901760
    %v493 = vsub.f32 %v63, %v492
    %494 = vmatmul.mubr.f32.gmra.mxu0 %v493
    %v495 = vpop.f32.mrf.mxu0
    %v496 = vadd.f32 %v373, %v495
    %v497 = vpop.f32.mrf.mxu0
    %498 = vmatprep.mubr.f32.mxu0 0.0
    %v499 = vand.u32 %v64, 4294901760
    %v500 = vsub.f32 %v64, %v499
    %501 = vmatmul.mubr.f32.gmra.mxu0 %v500
    %v502 = vpop.f32.mrf.mxu0
    %v503 = vadd.f32 %v379, %v502
    %v504 = vpop.f32.mrf.mxu0
    %505 = vmatprep.mubr.f32.mxu0 0.0
    %v506 = vand.u32 %v65, 4294901760
    %v507 = vsub.f32 %v65, %v506
    %508 = vmatmul.mubr.f32.gmra.mxu0 %v507
    %v509 = vpop.f32.mrf.mxu0
    %v510 = vadd.f32 %v385, %v509
    %v511 = vpop.f32.mrf.mxu0
    %512 = vdwg.mxu0
    %513 = vmatprep.subr.mxu0 0.0
    %v514 = vand.u32 %v81, 4294901760
    %515 = vmatpush1.msra.mxu0 %v514
    %516 = vmatprep.subr.mxu0 0.0
    %v517 = vand.u32 %v80, 4294901760
    %518 = vmatpush1.msra.mxu0 %v517
    %519 = vmatprep.subr.mxu0 0.0
    %v520 = vand.u32 %v79, 4294901760
    %521 = vmatpush1.msra.mxu0 %v520
    %522 = vmatprep.subr.mxu0 0.0
    %v523 = vand.u32 %v78, 4294901760
    %524 = vmatpush1.msra.mxu0 %v523
    %525 = vmatprep.subr.mxu0 0.0
    %v526 = vand.u32 %v77, 4294901760
    %527 = vmatpush1.msra.mxu0 %v526
    %528 = vmatprep.subr.mxu0 0.0
    %v529 = vand.u32 %v76, 4294901760
    %530 = vmatpush1.msra.mxu0 %v529
    %531 = vmatprep.subr.mxu0 0.0
    %v532 = vand.u32 %v75, 4294901760
    %533 = vmatpush1.msra.mxu0 %v532
    %534 = vmatprep.subr.mxu0 0.0
    %v535 = vand.u32 %v74, 4294901760
    %536 = vmatpush1.msra.mxu0 %v535
    %537 = vmatprep.subr.mxu0 0.0
    %v538 = vand.u32 %v73, 4294901760
    %539 = vmatpush1.msra.mxu0 %v538
    %540 = vmatprep.subr.mxu0 0.0
    %v541 = vand.u32 %v72, 4294901760
    %542 = vmatpush1.msra.mxu0 %v541
    %543 = vmatprep.subr.mxu0 0.0
    %v544 = vand.u32 %v71, 4294901760
    %545 = vmatpush1.msra.mxu0 %v544
    %546 = vmatprep.subr.mxu0 0.0
    %v547 = vand.u32 %v70, 4294901760
    %548 = vmatpush1.msra.mxu0 %v547
    %549 = vmatprep.subr.mxu0 0.0
    %v550 = vand.u32 %v69, 4294901760
    %551 = vmatpush1.msra.mxu0 %v550
    %552 = vmatprep.subr.mxu0 0.0
    %v553 = vand.u32 %v68, 4294901760
    %554 = vmatpush1.msra.mxu0 %v553
    %555 = vmatprep.subr.mxu0 0.0
    %v556 = vand.u32 %v67, 4294901760
    %557 = vmatpush1.msra.mxu0 %v556
    %558 = vmatprep.subr.mxu0 0.0
    %v559 = vand.u32 %v66, 4294901760
    %560 = vmatpush1.msra.mxu0 %v559
    %561 = vmatprep.subr.mxu0 0.0
    %562 = vmatpush2.msra.mxu0 0.0
    %563 = vmatprep.subr.mxu0 0.0
    %564 = vmatpush2.msra.mxu0 0.0
    %565 = vmatprep.subr.mxu0 0.0
    %566 = vmatpush2.msra.mxu0 0.0
    %567 = vmatprep.subr.mxu0 0.0
    %568 = vmatpush2.msra.mxu0 0.0
    %569 = vmatprep.subr.mxu0 0.0
    %570 = vmatpush2.msra.mxu0 0.0
    %571 = vmatprep.subr.mxu0 0.0
    %572 = vmatpush2.msra.mxu0 0.0
    %573 = vmatprep.subr.mxu0 0.0
    %574 = vmatpush2.msra.mxu0 0.0
    %575 = vmatprep.subr.mxu0 0.0
    %576 = vmatpush2.msra.mxu0 0.0
    %577 = vmatprep.subr.mxu0 0.0
    %578 = vmatpush2.msra.mxu0 0.0
    %579 = vmatprep.subr.mxu0 0.0
    %580 = vmatpush2.msra.mxu0 0.0
    %581 = vmatprep.subr.mxu0 0.0
    %582 = vmatpush2.msra.mxu0 0.0
    %583 = vmatprep.subr.mxu0 0.0
    %584 = vmatpush2.msra.mxu0 0.0
    %585 = vmatprep.subr.mxu0 0.0
    %586 = vmatpush2.msra.mxu0 0.0
    %587 = vmatprep.subr.mxu0 0.0
    %588 = vmatpush2.msra.mxu0 0.0
    %589 = vmatprep.subr.mxu0 0.0
    %590 = vmatpush2.msra.mxu0 0.0
    %591 = vmatprep.subr.mxu0 0.0
    %592 = vmatpush2.msra.mxu0 0.0
    %593 = vmatprep.mubr.f32.mxu0 0.0
    %v594 = vand.u32 %v62, 4294901760
    %v595 = vsub.f32 %v62, %v594
    %v596 = vand.u32 %v595, 4294901760
    %597 = vmatmul.mubr.f32.gmra.mxu0 %v596
    %v598 = vpop.f32.mrf.mxu0
    %v599 = vadd.f32 %v489, %v598
    %v600 = vpop.f32.mrf.mxu0
    %601 = vmatprep.mubr.f32.mxu0 0.0
    %v602 = vand.u32 %v63, 4294901760
    %v603 = vsub.f32 %v63, %v602
    %v604 = vand.u32 %v603, 4294901760
    %605 = vmatmul.mubr.f32.gmra.mxu0 %v604
    %v606 = vpop.f32.mrf.mxu0
    %v607 = vadd.f32 %v496, %v606
    %v608 = vpop.f32.mrf.mxu0
    %609 = vmatprep.mubr.f32.mxu0 0.0
    %v610 = vand.u32 %v64, 4294901760
    %v611 = vsub.f32 %v64, %v610
    %v612 = vand.u32 %v611, 4294901760
    %613 = vmatmul.mubr.f32.gmra.mxu0 %v612
    %v614 = vpop.f32.mrf.mxu0
    %v615 = vadd.f32 %v503, %v614
    %v616 = vpop.f32.mrf.mxu0
    %617 = vmatprep.mubr.f32.mxu0 0.0
    %v618 = vand.u32 %v65, 4294901760
    %v619 = vsub.f32 %v65, %v618
    %v620 = vand.u32 %v619, 4294901760
    %621 = vmatmul.mubr.f32.gmra.mxu0 %v620
    %v622 = vpop.f32.mrf.mxu0
    %v623 = vadd.f32 %v510, %v622
    %v624 = vpop.f32.mrf.mxu0
    %625 = vdwg.mxu0
    %626 = vmatprep.subr.mxu0 0.0
    %v627 = vand.u32 %v81, 4294901760
    %v628 = vsub.f32 %v81, %v627
    %v629 = vand.u32 %v628, 4294901760
    %630 = vmatpush1.msra.mxu0 %v629
    %631 = vmatprep.subr.mxu0 0.0
    %v632 = vand.u32 %v80, 4294901760
    %v633 = vsub.f32 %v80, %v632
    %v634 = vand.u32 %v633, 4294901760
    %635 = vmatpush1.msra.mxu0 %v634
    %636 = vmatprep.subr.mxu0 0.0
    %v637 = vand.u32 %v79, 4294901760
    %v638 = vsub.f32 %v79, %v637
    %v639 = vand.u32 %v638, 4294901760
    %640 = vmatpush1.msra.mxu0 %v639
    %641 = vmatprep.subr.mxu0 0.0
    %v642 = vand.u32 %v78, 4294901760
    %v643 = vsub.f32 %v78, %v642
    %v644 = vand.u32 %v643, 4294901760
    %645 = vmatpush1.msra.mxu0 %v644
    %646 = vmatprep.subr.mxu0 0.0
    %v647 = vand.u32 %v77, 4294901760
    %v648 = vsub.f32 %v77, %v647
    %v649 = vand.u32 %v648, 4294901760
    %650 = vmatpush1.msra.mxu0 %v649
    %651 = vmatprep.subr.mxu0 0.0
    %v652 = vand.u32 %v76, 4294901760
    %v653 = vsub.f32 %v76, %v652
    %v654 = vand.u32 %v653, 4294901760
    %655 = vmatpush1.msra.mxu0 %v654
    %656 = vmatprep.subr.mxu0 0.0
    %v657 = vand.u32 %v75, 4294901760
    %v658 = vsub.f32 %v75, %v657
    %v659 = vand.u32 %v658, 4294901760
    %660 = vmatpush1.msra.mxu0 %v659
    %661 = vmatprep.subr.mxu0 0.0
    %v662 = vand.u32 %v74, 4294901760
    %v663 = vsub.f32 %v74, %v662
    %v664 = vand.u32 %v663, 4294901760
    %665 = vmatpush1.msra.mxu0 %v664
    %666 = vmatprep.subr.mxu0 0.0
    %v667 = vand.u32 %v73, 4294901760
    %v668 = vsub.f32 %v73, %v667
    %v669 = vand.u32 %v668, 4294901760
    %670 = vmatpush1.msra.mxu0 %v669
    %671 = vmatprep.subr.mxu0 0.0
    %v672 = vand.u32 %v72, 4294901760
    %v673 = vsub.f32 %v72, %v672
    %v674 = vand.u32 %v673, 4294901760
    %675 = vmatpush1.msra.mxu0 %v674
    %676 = vmatprep.subr.mxu0 0.0
    %v677 = vand.u32 %v71, 4294901760
    %v678 = vsub.f32 %v71, %v677
    %v679 = vand.u32 %v678, 4294901760
    %680 = vmatpush1.msra.mxu0 %v679
    %681 = vmatprep.subr.mxu0 0.0
    %v682 = vand.u32 %v70, 4294901760
    %v683 = vsub.f32 %v70, %v682
    %v684 = vand.u32 %v683, 4294901760
    %685 = vmatpush1.msra.mxu0 %v684
    %686 = vmatprep.subr.mxu0 0.0
    %v687 = vand.u32 %v69, 4294901760
    %v688 = vsub.f32 %v69, %v687
    %v689 = vand.u32 %v688, 4294901760
    %690 = vmatpush1.msra.mxu0 %v689
    %691 = vmatprep.subr.mxu0 0.0
    %v692 = vand.u32 %v68, 4294901760
    %v693 = vsub.f32 %v68, %v692
    %v694 = vand.u32 %v693, 4294901760
    %695 = vmatpush1.msra.mxu0 %v694
    %696 = vmatprep.subr.mxu0 0.0
    %v697 = vand.u32 %v67, 4294901760
    %v698 = vsub.f32 %v67, %v697
    %v699 = vand.u32 %v698, 4294901760
    %700 = vmatpush1.msra.mxu0 %v699
    %701 = vmatprep.subr.mxu0 0.0
    %v702 = vand.u32 %v66, 4294901760
    %v703 = vsub.f32 %v66, %v702
    %v704 = vand.u32 %v703, 4294901760
    %705 = vmatpush1.msra.mxu0 %v704
    %706 = vmatprep.subr.mxu0 0.0
    %707 = vmatpush2.msra.mxu0 0.0
    %708 = vmatprep.subr.mxu0 0.0
    %709 = vmatpush2.msra.mxu0 0.0
    %710 = vmatprep.subr.mxu0 0.0
    %711 = vmatpush2.msra.mxu0 0.0
    %712 = vmatprep.subr.mxu0 0.0
    %713 = vmatpush2.msra.mxu0 0.0
    %714 = vmatprep.subr.mxu0 0.0
    %715 = vmatpush2.msra.mxu0 0.0
    %716 = vmatprep.subr.mxu0 0.0
    %717 = vmatpush2.msra.mxu0 0.0
    %718 = vmatprep.subr.mxu0 0.0
    %719 = vmatpush2.msra.mxu0 0.0
    %720 = vmatprep.subr.mxu0 0.0
    %721 = vmatpush2.msra.mxu0 0.0
    %722 = vmatprep.subr.mxu0 0.0
    %723 = vmatpush2.msra.mxu0 0.0
    %724 = vmatprep.subr.mxu0 0.0
    %725 = vmatpush2.msra.mxu0 0.0
    %726 = vmatprep.subr.mxu0 0.0
    %727 = vmatpush2.msra.mxu0 0.0
    %728 = vmatprep.subr.mxu0 0.0
    %729 = vmatpush2.msra.mxu0 0.0
    %730 = vmatprep.subr.mxu0 0.0
    %731 = vmatpush2.msra.mxu0 0.0
    %732 = vmatprep.subr.mxu0 0.0
    %733 = vmatpush2.msra.mxu0 0.0
    %734 = vmatprep.subr.mxu0 0.0
    %735 = vmatpush2.msra.mxu0 0.0
    %736 = vmatprep.subr.mxu0 0.0
    %737 = vmatpush2.msra.mxu0 0.0
    %738 = vmatprep.mubr.f32.mxu0 0.0
    %v739 = vand.u32 %v62, 4294901760
    %740 = vmatmul.mubr.f32.gmra.mxu0 %v739
    %v741 = vpop.f32.mrf.mxu0
    %v742 = vadd.f32 %v599, %v741
    %v743 = vpop.f32.mrf.mxu0
    %744 = vmatprep.mubr.f32.mxu0 0.0
    %v745 = vand.u32 %v63, 4294901760
    %746 = vmatmul.mubr.f32.gmra.mxu0 %v745
    %v747 = vpop.f32.mrf.mxu0
    %v748 = vadd.f32 %v607, %v747
    %v749 = vpop.f32.mrf.mxu0
    %750 = vmatprep.mubr.f32.mxu0 0.0
    %v751 = vand.u32 %v64, 4294901760
    %752 = vmatmul.mubr.f32.gmra.mxu0 %v751
    %v753 = vpop.f32.mrf.mxu0
    %v754 = vadd.f32 %v615, %v753
    %v755 = vpop.f32.mrf.mxu0
    %756 = vmatprep.mubr.f32.mxu0 0.0
    %v757 = vand.u32 %v65, 4294901760
    %758 = vmatmul.mubr.f32.gmra.mxu0 %v757
    %v759 = vpop.f32.mrf.mxu0
    %v760 = vadd.f32 %v623, %v759
    %v761 = vpop.f32.mrf.mxu0
    %762 = vdwg.mxu0
    %763 = vmatprep.subr.mxu0 0.0
    %v764 = vand.u32 %v81, 4294901760
    %765 = vmatpush1.msra.mxu0 %v764
    %766 = vmatprep.subr.mxu0 0.0
    %v767 = vand.u32 %v80, 4294901760
    %768 = vmatpush1.msra.mxu0 %v767
    %769 = vmatprep.subr.mxu0 0.0
    %v770 = vand.u32 %v79, 4294901760
    %771 = vmatpush1.msra.mxu0 %v770
    %772 = vmatprep.subr.mxu0 0.0
    %v773 = vand.u32 %v78, 4294901760
    %774 = vmatpush1.msra.mxu0 %v773
    %775 = vmatprep.subr.mxu0 0.0
    %v776 = vand.u32 %v77, 4294901760
    %777 = vmatpush1.msra.mxu0 %v776
    %778 = vmatprep.subr.mxu0 0.0
    %v779 = vand.u32 %v76, 4294901760
    %780 = vmatpush1.msra.mxu0 %v779
    %781 = vmatprep.subr.mxu0 0.0
    %v782 = vand.u32 %v75, 4294901760
    %783 = vmatpush1.msra.mxu0 %v782
    %784 = vmatprep.subr.mxu0 0.0
    %v785 = vand.u32 %v74, 4294901760
    %786 = vmatpush1.msra.mxu0 %v785
    %787 = vmatprep.subr.mxu0 0.0
    %v788 = vand.u32 %v73, 4294901760
    %789 = vmatpush1.msra.mxu0 %v788
    %790 = vmatprep.subr.mxu0 0.0
    %v791 = vand.u32 %v72, 4294901760
    %792 = vmatpush1.msra.mxu0 %v791
    %793 = vmatprep.subr.mxu0 0.0
    %v794 = vand.u32 %v71, 4294901760
    %795 = vmatpush1.msra.mxu0 %v794
    %796 = vmatprep.subr.mxu0 0.0
    %v797 = vand.u32 %v70, 4294901760
    %798 = vmatpush1.msra.mxu0 %v797
    %799 = vmatprep.subr.mxu0 0.0
    %v800 = vand.u32 %v69, 4294901760
    %801 = vmatpush1.msra.mxu0 %v800
    %802 = vmatprep.subr.mxu0 0.0
    %v803 = vand.u32 %v68, 4294901760
    %804 = vmatpush1.msra.mxu0 %v803
    %805 = vmatprep.subr.mxu0 0.0
    %v806 = vand.u32 %v67, 4294901760
    %807 = vmatpush1.msra.mxu0 %v806
    %808 = vmatprep.subr.mxu0 0.0
    %v809 = vand.u32 %v66, 4294901760
    %810 = vmatpush1.msra.mxu0 %v809
    %811 = vmatprep.subr.mxu0 0.0
    %812 = vmatpush2.msra.mxu0 0.0
    %813 = vmatprep.subr.mxu0 0.0
    %814 = vmatpush2.msra.mxu0 0.0
    %815 = vmatprep.subr.mxu0 0.0
    %816 = vmatpush2.msra.mxu0 0.0
    %817 = vmatprep.subr.mxu0 0.0
    %818 = vmatpush2.msra.mxu0 0.0
    %819 = vmatprep.subr.mxu0 0.0
    %820 = vmatpush2.msra.mxu0 0.0
    %821 = vmatprep.subr.mxu0 0.0
    %822 = vmatpush2.msra.mxu0 0.0
    %823 = vmatprep.subr.mxu0 0.0
    %824 = vmatpush2.msra.mxu0 0.0
    %825 = vmatprep.subr.mxu0 0.0
    %826 = vmatpush2.msra.mxu0 0.0
    %827 = vmatprep.subr.mxu0 0.0
    %828 = vmatpush2.msra.mxu0 0.0
    %829 = vmatprep.subr.mxu0 0.0
    %830 = vmatpush2.msra.mxu0 0.0
    %831 = vmatprep.subr.mxu0 0.0
    %832 = vmatpush2.msra.mxu0 0.0
    %833 = vmatprep.subr.mxu0 0.0
    %834 = vmatpush2.msra.mxu0 0.0
    %835 = vmatprep.subr.mxu0 0.0
    %836 = vmatpush2.msra.mxu0 0.0
    %837 = vmatprep.subr.mxu0 0.0
    %838 = vmatpush2.msra.mxu0 0.0
    %839 = vmatprep.subr.mxu0 0.0
    %840 = vmatpush2.msra.mxu0 0.0
    %841 = vmatprep.subr.mxu0 0.0
    %842 = vmatpush2.msra.mxu0 0.0
    %843 = vmatprep.mubr.f32.mxu0 0.0
    %v844 = vand.u32 %v62, 4294901760
    %845 = vmatmul.mubr.f32.gmra.mxu0 %v844
    %v846 = vpop.f32.mrf.mxu0
    %v847 = vadd.f32 %v742, %v846
    %v848 = vpop.f32.mrf.mxu0
    %849 = vmatprep.mubr.f32.mxu0 0.0
    %v850 = vand.u32 %v63, 4294901760
    %851 = vmatmul.mubr.f32.gmra.mxu0 %v850
    %v852 = vpop.f32.mrf.mxu0
    %v853 = vadd.f32 %v748, %v852
    %v854 = vpop.f32.mrf.mxu0
    %855 = vmatprep.mubr.f32.mxu0 0.0
    %v856 = vand.u32 %v64, 4294901760
    %857 = vmatmul.mubr.f32.gmra.mxu0 %v856
    %v858 = vpop.f32.mrf.mxu0
    %v859 = vadd.f32 %v754, %v858
    %v860 = vpop.f32.mrf.mxu0
    %861 = vmatprep.mubr.f32.mxu0 0.0
    %v862 = vand.u32 %v65, 4294901760
    %863 = vmatmul.mubr.f32.gmra.mxu0 %v862
    %v864 = vpop.f32.mrf.mxu0
    %v865 = vadd.f32 %v760, %v864
    %v866 = vpop.f32.mrf.mxu0
    %867 = vdwg.mxu0
    %v868 = vmul.f32 %v62, %v62
    %v869 = vmul.f32 %v63, %v63
    %v870 = vmul.f32 %v64, %v64
    %v871 = vmul.f32 %v65, %v65
    %872 = vmatprep.subr.mxu0 0.0
    %v873 = vand.u32 %v81, 4294901760
    %874 = vmatpush1.msra.mxu0 %v873
    %875 = vmatprep.subr.mxu0 0.0
    %v876 = vand.u32 %v80, 4294901760
    %877 = vmatpush1.msra.mxu0 %v876
    %878 = vmatprep.subr.mxu0 0.0
    %v879 = vand.u32 %v79, 4294901760
    %880 = vmatpush1.msra.mxu0 %v879
    %881 = vmatprep.subr.mxu0 0.0
    %v882 = vand.u32 %v78, 4294901760
    %883 = vmatpush1.msra.mxu0 %v882
    %884 = vmatprep.subr.mxu0 0.0
    %v885 = vand.u32 %v77, 4294901760
    %886 = vmatpush1.msra.mxu0 %v885
    %887 = vmatprep.subr.mxu0 0.0
    %v888 = vand.u32 %v76, 4294901760
    %889 = vmatpush1.msra.mxu0 %v888
    %890 = vmatprep.subr.mxu0 0.0
    %v891 = vand.u32 %v75, 4294901760
    %892 = vmatpush1.msra.mxu0 %v891
    %893 = vmatprep.subr.mxu0 0.0
    %v894 = vand.u32 %v74, 4294901760
    %895 = vmatpush1.msra.mxu0 %v894
    %896 = vmatprep.subr.mxu0 0.0
    %v897 = vand.u32 %v73, 4294901760
    %898 = vmatpush1.msra.mxu0 %v897
    %899 = vmatprep.subr.mxu0 0.0
    %v900 = vand.u32 %v72, 4294901760
    %901 = vmatpush1.msra.mxu0 %v900
    %902 = vmatprep.subr.mxu0 0.0
    %v903 = vand.u32 %v71, 4294901760
    %904 = vmatpush1.msra.mxu0 %v903
    %905 = vmatprep.subr.mxu0 0.0
    %v906 = vand.u32 %v70, 4294901760
    %907 = vmatpush1.msra.mxu0 %v906
    %908 = vmatprep.subr.mxu0 0.0
    %v909 = vand.u32 %v69, 4294901760
    %910 = vmatpush1.msra.mxu0 %v909
    %911 = vmatprep.subr.mxu0 0.0
    %v912 = vand.u32 %v68, 4294901760
    %913 = vmatpush1.msra.mxu0 %v912
    %914 = vmatprep.subr.mxu0 0.0
    %v915 = vand.u32 %v67, 4294901760
    %916 = vmatpush1.msra.mxu0 %v915
    %917 = vmatprep.subr.mxu0 0.0
    %v918 = vand.u32 %v66, 4294901760
    %919 = vmatpush1.msra.mxu0 %v918
    %920 = vmatprep.subr.mxu0 0.0
    %921 = vmatpush2.msra.mxu0 0.0
    %922 = vmatprep.subr.mxu0 0.0
    %923 = vmatpush2.msra.mxu0 0.0
    %924 = vmatprep.subr.mxu0 0.0
    %925 = vmatpush2.msra.mxu0 0.0
    %926 = vmatprep.subr.mxu0 0.0
    %927 = vmatpush2.msra.mxu0 0.0
    %928 = vmatprep.subr.mxu0 0.0
    %929 = vmatpush2.msra.mxu0 0.0
    %930 = vmatprep.subr.mxu0 0.0
    %931 = vmatpush2.msra.mxu0 0.0
    %932 = vmatprep.subr.mxu0 0.0
    %933 = vmatpush2.msra.mxu0 0.0
    %934 = vmatprep.subr.mxu0 0.0
    %935 = vmatpush2.msra.mxu0 0.0
    %936 = vmatprep.subr.mxu0 0.0
    %937 = vmatpush2.msra.mxu0 0.0
    %938 = vmatprep.subr.mxu0 0.0
    %939 = vmatpush2.msra.mxu0 0.0
    %940 = vmatprep.subr.mxu0 0.0
    %941 = vmatpush2.msra.mxu0 0.0
    %942 = vmatprep.subr.mxu0 0.0
    %943 = vmatpush2.msra.mxu0 0.0
    %944 = vmatprep.subr.mxu0 0.0
    %945 = vmatpush2.msra.mxu0 0.0
    %946 = vmatprep.subr.mxu0 0.0
    %947 = vmatpush2.msra.mxu0 0.0
    %948 = vmatprep.subr.mxu0 0.0
    %949 = vmatpush2.msra.mxu0 0.0
    %950 = vmatprep.subr.mxu0 0.0
    %951 = vmatpush2.msra.mxu0 0.0
    %952 = vmatprep.mubr.f32.mxu0 0.0
    %v953 = vand.u32 %v868, 4294901760
    %v954 = vsub.f32 %v868, %v953
    %v955 = vand.u32 %v954, 4294901760
    %v956 = vsub.f32 %v954, %v955
    %v957 = vand.u32 %v956, 4294901760
    %958 = vmatmul.mubr.f32.gmra.mxu0 %v957
    %v959 = vpop.f32.mrf.mxu0
    %v960 = vadd.f32 0.0, %v959
    %v961 = vpop.f32.mrf.mxu0
    %962 = vmatprep.mubr.f32.mxu0 0.0
    %v963 = vand.u32 %v869, 4294901760
    %v964 = vsub.f32 %v869, %v963
    %v965 = vand.u32 %v964, 4294901760
    %v966 = vsub.f32 %v964, %v965
    %v967 = vand.u32 %v966, 4294901760
    %968 = vmatmul.mubr.f32.gmra.mxu0 %v967
    %v969 = vpop.f32.mrf.mxu0
    %v970 = vadd.f32 0.0, %v969
    %v971 = vpop.f32.mrf.mxu0
    %972 = vmatprep.mubr.f32.mxu0 0.0
    %v973 = vand.u32 %v870, 4294901760
    %v974 = vsub.f32 %v870, %v973
    %v975 = vand.u32 %v974, 4294901760
    %v976 = vsub.f32 %v974, %v975
    %v977 = vand.u32 %v976, 4294901760
    %978 = vmatmul.mubr.f32.gmra.mxu0 %v977
    %v979 = vpop.f32.mrf.mxu0
    %v980 = vadd.f32 0.0, %v979
    %v981 = vpop.f32.mrf.mxu0
    %982 = vmatprep.mubr.f32.mxu0 0.0
    %v983 = vand.u32 %v871, 4294901760
    %v984 = vsub.f32 %v871, %v983
    %v985 = vand.u32 %v984, 4294901760
    %v986 = vsub.f32 %v984, %v985
    %v987 = vand.u32 %v986, 4294901760
    %988 = vmatmul.mubr.f32.gmra.mxu0 %v987
    %v989 = vpop.f32.mrf.mxu0
    %v990 = vadd.f32 0.0, %v989
    %v991 = vpop.f32.mrf.mxu0
    %992 = vdwg.mxu0
    %993 = vmatprep.subr.mxu0 0.0
    %v994 = vand.u32 %v81, 4294901760
    %v995 = vsub.f32 %v81, %v994
    %v996 = vand.u32 %v995, 4294901760
    %v997 = vsub.f32 %v995, %v996
    %v998 = vand.u32 %v997, 4294901760
    %999 = vmatpush1.msra.mxu0 %v998
    %1000 = vmatprep.subr.mxu0 0.0
    %v1001 = vand.u32 %v80, 4294901760
    %v1002 = vsub.f32 %v80, %v1001
    %v1003 = vand.u32 %v1002, 4294901760
    %v1004 = vsub.f32 %v1002, %v1003
    %v1005 = vand.u32 %v1004, 4294901760
    %1006 = vmatpush1.msra.mxu0 %v1005
    %1007 = vmatprep.subr.mxu0 0.0
    %v1008 = vand.u32 %v79, 4294901760
    %v1009 = vsub.f32 %v79, %v1008
    %v1010 = vand.u32 %v1009, 4294901760
    %v1011 = vsub.f32 %v1009, %v1010
    %v1012 = vand.u32 %v1011, 4294901760
    %1013 = vmatpush1.msra.mxu0 %v1012
    %1014 = vmatprep.subr.mxu0 0.0
    %v1015 = vand.u32 %v78, 4294901760
    %v1016 = vsub.f32 %v78, %v1015
    %v1017 = vand.u32 %v1016, 4294901760
    %v1018 = vsub.f32 %v1016, %v1017
    %v1019 = vand.u32 %v1018, 4294901760
    %1020 = vmatpush1.msra.mxu0 %v1019
    %1021 = vmatprep.subr.mxu0 0.0
    %v1022 = vand.u32 %v77, 4294901760
    %v1023 = vsub.f32 %v77, %v1022
    %v1024 = vand.u32 %v1023, 4294901760
    %v1025 = vsub.f32 %v1023, %v1024
    %v1026 = vand.u32 %v1025, 4294901760
    %1027 = vmatpush1.msra.mxu0 %v1026
    %1028 = vmatprep.subr.mxu0 0.0
    %v1029 = vand.u32 %v76, 4294901760
    %v1030 = vsub.f32 %v76, %v1029
    %v1031 = vand.u32 %v1030, 4294901760
    %v1032 = vsub.f32 %v1030, %v1031
    %v1033 = vand.u32 %v1032, 4294901760
    %1034 = vmatpush1.msra.mxu0 %v1033
    %1035 = vmatprep.subr.mxu0 0.0
    %v1036 = vand.u32 %v75, 4294901760
    %v1037 = vsub.f32 %v75, %v1036
    %v1038 = vand.u32 %v1037, 4294901760
    %v1039 = vsub.f32 %v1037, %v1038
    %v1040 = vand.u32 %v1039, 4294901760
    %1041 = vmatpush1.msra.mxu0 %v1040
    %1042 = vmatprep.subr.mxu0 0.0
    %v1043 = vand.u32 %v74, 4294901760
    %v1044 = vsub.f32 %v74, %v1043
    %v1045 = vand.u32 %v1044, 4294901760
    %v1046 = vsub.f32 %v1044, %v1045
    %v1047 = vand.u32 %v1046, 4294901760
    %1048 = vmatpush1.msra.mxu0 %v1047
    %1049 = vmatprep.subr.mxu0 0.0
    %v1050 = vand.u32 %v73, 4294901760
    %v1051 = vsub.f32 %v73, %v1050
    %v1052 = vand.u32 %v1051, 4294901760
    %v1053 = vsub.f32 %v1051, %v1052
    %v1054 = vand.u32 %v1053, 4294901760
    %1055 = vmatpush1.msra.mxu0 %v1054
    %1056 = vmatprep.subr.mxu0 0.0
    %v1057 = vand.u32 %v72, 4294901760
    %v1058 = vsub.f32 %v72, %v1057
    %v1059 = vand.u32 %v1058, 4294901760
    %v1060 = vsub.f32 %v1058, %v1059
    %v1061 = vand.u32 %v1060, 4294901760
    %1062 = vmatpush1.msra.mxu0 %v1061
    %1063 = vmatprep.subr.mxu0 0.0
    %v1064 = vand.u32 %v71, 4294901760
    %v1065 = vsub.f32 %v71, %v1064
    %v1066 = vand.u32 %v1065, 4294901760
    %v1067 = vsub.f32 %v1065, %v1066
    %v1068 = vand.u32 %v1067, 4294901760
    %1069 = vmatpush1.msra.mxu0 %v1068
    %1070 = vmatprep.subr.mxu0 0.0
    %v1071 = vand.u32 %v70, 4294901760
    %v1072 = vsub.f32 %v70, %v1071
    %v1073 = vand.u32 %v1072, 4294901760
    %v1074 = vsub.f32 %v1072, %v1073
    %v1075 = vand.u32 %v1074, 4294901760
    %1076 = vmatpush1.msra.mxu0 %v1075
    %1077 = vmatprep.subr.mxu0 0.0
    %v1078 = vand.u32 %v69, 4294901760
    %v1079 = vsub.f32 %v69, %v1078
    %v1080 = vand.u32 %v1079, 4294901760
    %v1081 = vsub.f32 %v1079, %v1080
    %v1082 = vand.u32 %v1081, 4294901760
    %1083 = vmatpush1.msra.mxu0 %v1082
    %1084 = vmatprep.subr.mxu0 0.0
    %v1085 = vand.u32 %v68, 4294901760
    %v1086 = vsub.f32 %v68, %v1085
    %v1087 = vand.u32 %v1086, 4294901760
    %v1088 = vsub.f32 %v1086, %v1087
    %v1089 = vand.u32 %v1088, 4294901760
    %1090 = vmatpush1.msra.mxu0 %v1089
    %1091 = vmatprep.subr.mxu0 0.0
    %v1092 = vand.u32 %v67, 4294901760
    %v1093 = vsub.f32 %v67, %v1092
    %v1094 = vand.u32 %v1093, 4294901760
    %v1095 = vsub.f32 %v1093, %v1094
    %v1096 = vand.u32 %v1095, 4294901760
    %1097 = vmatpush1.msra.mxu0 %v1096
    %1098 = vmatprep.subr.mxu0 0.0
    %v1099 = vand.u32 %v66, 4294901760
    %v1100 = vsub.f32 %v66, %v1099
    %v1101 = vand.u32 %v1100, 4294901760
    %v1102 = vsub.f32 %v1100, %v1101
    %v1103 = vand.u32 %v1102, 4294901760
    %1104 = vmatpush1.msra.mxu0 %v1103
    %1105 = vmatprep.subr.mxu0 0.0
    %1106 = vmatpush2.msra.mxu0 0.0
    %1107 = vmatprep.subr.mxu0 0.0
    %1108 = vmatpush2.msra.mxu0 0.0
    %1109 = vmatprep.subr.mxu0 0.0
    %1110 = vmatpush2.msra.mxu0 0.0
    %1111 = vmatprep.subr.mxu0 0.0
    %1112 = vmatpush2.msra.mxu0 0.0
    %1113 = vmatprep.subr.mxu0 0.0
    %1114 = vmatpush2.msra.mxu0 0.0
    %1115 = vmatprep.subr.mxu0 0.0
    %1116 = vmatpush2.msra.mxu0 0.0
    %1117 = vmatprep.subr.mxu0 0.0
    %1118 = vmatpush2.msra.mxu0 0.0
    %1119 = vmatprep.subr.mxu0 0.0
    %1120 = vmatpush2.msra.mxu0 0.0
    %1121 = vmatprep.subr.mxu0 0.0
    %1122 = vmatpush2.msra.mxu0 0.0
    %1123 = vmatprep.subr.mxu0 0.0
    %1124 = vmatpush2.msra.mxu0 0.0
    %1125 = vmatprep.subr.mxu0 0.0
    %1126 = vmatpush2.msra.mxu0 0.0
    %1127 = vmatprep.subr.mxu0 0.0
    %1128 = vmatpush2.msra.mxu0 0.0
    %1129 = vmatprep.subr.mxu0 0.0
    %1130 = vmatpush2.msra.mxu0 0.0
    %1131 = vmatprep.subr.mxu0 0.0
    %1132 = vmatpush2.msra.mxu0 0.0
    %1133 = vmatprep.subr.mxu0 0.0
    %1134 = vmatpush2.msra.mxu0 0.0
    %1135 = vmatprep.subr.mxu0 0.0
    %1136 = vmatpush2.msra.mxu0 0.0
    %1137 = vmatprep.mubr.f32.mxu0 0.0
    %v1138 = vand.u32 %v868, 4294901760
    %1139 = vmatmul.mubr.f32.gmra.mxu0 %v1138
    %v1140 = vpop.f32.mrf.mxu0
    %v1141 = vadd.f32 %v960, %v1140
    %v1142 = vpop.f32.mrf.mxu0
    %1143 = vmatprep.mubr.f32.mxu0 0.0
    %v1144 = vand.u32 %v869, 4294901760
    %1145 = vmatmul.mubr.f32.gmra.mxu0 %v1144
    %v1146 = vpop.f32.mrf.mxu0
    %v1147 = vadd.f32 %v970, %v1146
    %v1148 = vpop.f32.mrf.mxu0
    %1149 = vmatprep.mubr.f32.mxu0 0.0
    %v1150 = vand.u32 %v870, 4294901760
    %1151 = vmatmul.mubr.f32.gmra.mxu0 %v1150
    %v1152 = vpop.f32.mrf.mxu0
    %v1153 = vadd.f32 %v980, %v1152
    %v1154 = vpop.f32.mrf.mxu0
    %1155 = vmatprep.mubr.f32.mxu0 0.0
    %v1156 = vand.u32 %v871, 4294901760
    %1157 = vmatmul.mubr.f32.gmra.mxu0 %v1156
    %v1158 = vpop.f32.mrf.mxu0
    %v1159 = vadd.f32 %v990, %v1158
    %v1160 = vpop.f32.mrf.mxu0
    %1161 = vdwg.mxu0
    %1162 = vmatprep.subr.mxu0 0.0
    %v1163 = vand.u32 %v81, 4294901760
    %v1164 = vsub.f32 %v81, %v1163
    %1165 = vmatpush1.msra.mxu0 %v1164
    %1166 = vmatprep.subr.mxu0 0.0
    %v1167 = vand.u32 %v80, 4294901760
    %v1168 = vsub.f32 %v80, %v1167
    %1169 = vmatpush1.msra.mxu0 %v1168
    %1170 = vmatprep.subr.mxu0 0.0
    %v1171 = vand.u32 %v79, 4294901760
    %v1172 = vsub.f32 %v79, %v1171
    %1173 = vmatpush1.msra.mxu0 %v1172
    %1174 = vmatprep.subr.mxu0 0.0
    %v1175 = vand.u32 %v78, 4294901760
    %v1176 = vsub.f32 %v78, %v1175
    %1177 = vmatpush1.msra.mxu0 %v1176
    %1178 = vmatprep.subr.mxu0 0.0
    %v1179 = vand.u32 %v77, 4294901760
    %v1180 = vsub.f32 %v77, %v1179
    %1181 = vmatpush1.msra.mxu0 %v1180
    %1182 = vmatprep.subr.mxu0 0.0
    %v1183 = vand.u32 %v76, 4294901760
    %v1184 = vsub.f32 %v76, %v1183
    %1185 = vmatpush1.msra.mxu0 %v1184
    %1186 = vmatprep.subr.mxu0 0.0
    %v1187 = vand.u32 %v75, 4294901760
    %v1188 = vsub.f32 %v75, %v1187
    %1189 = vmatpush1.msra.mxu0 %v1188
    %1190 = vmatprep.subr.mxu0 0.0
    %v1191 = vand.u32 %v74, 4294901760
    %v1192 = vsub.f32 %v74, %v1191
    %1193 = vmatpush1.msra.mxu0 %v1192
    %1194 = vmatprep.subr.mxu0 0.0
    %v1195 = vand.u32 %v73, 4294901760
    %v1196 = vsub.f32 %v73, %v1195
    %1197 = vmatpush1.msra.mxu0 %v1196
    %1198 = vmatprep.subr.mxu0 0.0
    %v1199 = vand.u32 %v72, 4294901760
    %v1200 = vsub.f32 %v72, %v1199
    %1201 = vmatpush1.msra.mxu0 %v1200
    %1202 = vmatprep.subr.mxu0 0.0
    %v1203 = vand.u32 %v71, 4294901760
    %v1204 = vsub.f32 %v71, %v1203
    %1205 = vmatpush1.msra.mxu0 %v1204
    %1206 = vmatprep.subr.mxu0 0.0
    %v1207 = vand.u32 %v70, 4294901760
    %v1208 = vsub.f32 %v70, %v1207
    %1209 = vmatpush1.msra.mxu0 %v1208
    %1210 = vmatprep.subr.mxu0 0.0
    %v1211 = vand.u32 %v69, 4294901760
    %v1212 = vsub.f32 %v69, %v1211
    %1213 = vmatpush1.msra.mxu0 %v1212
    %1214 = vmatprep.subr.mxu0 0.0
    %v1215 = vand.u32 %v68, 4294901760
    %v1216 = vsub.f32 %v68, %v1215
    %1217 = vmatpush1.msra.mxu0 %v1216
    %1218 = vmatprep.subr.mxu0 0.0
    %v1219 = vand.u32 %v67, 4294901760
    %v1220 = vsub.f32 %v67, %v1219
    %1221 = vmatpush1.msra.mxu0 %v1220
    %1222 = vmatprep.subr.mxu0 0.0
    %v1223 = vand.u32 %v66, 4294901760
    %v1224 = vsub.f32 %v66, %v1223
    %1225 = vmatpush1.msra.mxu0 %v1224
    %1226 = vmatprep.subr.mxu0 0.0
    %1227 = vmatpush2.msra.mxu0 0.0
    %1228 = vmatprep.subr.mxu0 0.0
    %1229 = vmatpush2.msra.mxu0 0.0
    %1230 = vmatprep.subr.mxu0 0.0
    %1231 = vmatpush2.msra.mxu0 0.0
    %1232 = vmatprep.subr.mxu0 0.0
    %1233 = vmatpush2.msra.mxu0 0.0
    %1234 = vmatprep.subr.mxu0 0.0
    %1235 = vmatpush2.msra.mxu0 0.0
    %1236 = vmatprep.subr.mxu0 0.0
    %1237 = vmatpush2.msra.mxu0 0.0
    %1238 = vmatprep.subr.mxu0 0.0
    %1239 = vmatpush2.msra.mxu0 0.0
    %1240 = vmatprep.subr.mxu0 0.0
    %1241 = vmatpush2.msra.mxu0 0.0
    %1242 = vmatprep.subr.mxu0 0.0
    %1243 = vmatpush2.msra.mxu0 0.0
    %1244 = vmatprep.subr.mxu0 0.0
    %1245 = vmatpush2.msra.mxu0 0.0
    %1246 = vmatprep.subr.mxu0 0.0
    %1247 = vmatpush2.msra.mxu0 0.0
    %1248 = vmatprep.subr.mxu0 0.0
    %1249 = vmatpush2.msra.mxu0 0.0
    %1250 = vmatprep.subr.mxu0 0.0
    %1251 = vmatpush2.msra.mxu0 0.0
    %1252 = vmatprep.subr.mxu0 0.0
    %1253 = vmatpush2.msra.mxu0 0.0
    %1254 = vmatprep.subr.mxu0 0.0
    %1255 = vmatpush2.msra.mxu0 0.0
    %1256 = vmatprep.subr.mxu0 0.0
    %1257 = vmatpush2.msra.mxu0 0.0
    %1258 = vmatprep.mubr.f32.mxu0 0.0
    %v1259 = vand.u32 %v868, 4294901760
    %v1260 = vsub.f32 %v868, %v1259
    %1261 = vmatmul.mubr.f32.gmra.mxu0 %v1260
    %v1262 = vpop.f32.mrf.mxu0
    %v1263 = vadd.f32 %v1141, %v1262
    %v1264 = vpop.f32.mrf.mxu0
    %1265 = vmatprep.mubr.f32.mxu0 0.0
    %v1266 = vand.u32 %v869, 4294901760
    %v1267 = vsub.f32 %v869, %v1266
    %1268 = vmatmul.mubr.f32.gmra.mxu0 %v1267
    %v1269 = vpop.f32.mrf.mxu0
    %v1270 = vadd.f32 %v1147, %v1269
    %v1271 = vpop.f32.mrf.mxu0
    %1272 = vmatprep.mubr.f32.mxu0 0.0
    %v1273 = vand.u32 %v870, 4294901760
    %v1274 = vsub.f32 %v870, %v1273
    %1275 = vmatmul.mubr.f32.gmra.mxu0 %v1274
    %v1276 = vpop.f32.mrf.mxu0
    %v1277 = vadd.f32 %v1153, %v1276
    %v1278 = vpop.f32.mrf.mxu0
    %1279 = vmatprep.mubr.f32.mxu0 0.0
    %v1280 = vand.u32 %v871, 4294901760
    %v1281 = vsub.f32 %v871, %v1280
    %1282 = vmatmul.mubr.f32.gmra.mxu0 %v1281
    %v1283 = vpop.f32.mrf.mxu0
    %v1284 = vadd.f32 %v1159, %v1283
    %v1285 = vpop.f32.mrf.mxu0
    %1286 = vdwg.mxu0
    %1287 = vmatprep.subr.mxu0 0.0
    %v1288 = vand.u32 %v81, 4294901760
    %1289 = vmatpush1.msra.mxu0 %v1288
    %1290 = vmatprep.subr.mxu0 0.0
    %v1291 = vand.u32 %v80, 4294901760
    %1292 = vmatpush1.msra.mxu0 %v1291
    %1293 = vmatprep.subr.mxu0 0.0
    %v1294 = vand.u32 %v79, 4294901760
    %1295 = vmatpush1.msra.mxu0 %v1294
    %1296 = vmatprep.subr.mxu0 0.0
    %v1297 = vand.u32 %v78, 4294901760
    %1298 = vmatpush1.msra.mxu0 %v1297
    %1299 = vmatprep.subr.mxu0 0.0
    %v1300 = vand.u32 %v77, 4294901760
    %1301 = vmatpush1.msra.mxu0 %v1300
    %1302 = vmatprep.subr.mxu0 0.0
    %v1303 = vand.u32 %v76, 4294901760
    %1304 = vmatpush1.msra.mxu0 %v1303
    %1305 = vmatprep.subr.mxu0 0.0
    %v1306 = vand.u32 %v75, 4294901760
    %1307 = vmatpush1.msra.mxu0 %v1306
    %1308 = vmatprep.subr.mxu0 0.0
    %v1309 = vand.u32 %v74, 4294901760
    %1310 = vmatpush1.msra.mxu0 %v1309
    %1311 = vmatprep.subr.mxu0 0.0
    %v1312 = vand.u32 %v73, 4294901760
    %1313 = vmatpush1.msra.mxu0 %v1312
    %1314 = vmatprep.subr.mxu0 0.0
    %v1315 = vand.u32 %v72, 4294901760
    %1316 = vmatpush1.msra.mxu0 %v1315
    %1317 = vmatprep.subr.mxu0 0.0
    %v1318 = vand.u32 %v71, 4294901760
    %1319 = vmatpush1.msra.mxu0 %v1318
    %1320 = vmatprep.subr.mxu0 0.0
    %v1321 = vand.u32 %v70, 4294901760
    %1322 = vmatpush1.msra.mxu0 %v1321
    %1323 = vmatprep.subr.mxu0 0.0
    %v1324 = vand.u32 %v69, 4294901760
    %1325 = vmatpush1.msra.mxu0 %v1324
    %1326 = vmatprep.subr.mxu0 0.0
    %v1327 = vand.u32 %v68, 4294901760
    %1328 = vmatpush1.msra.mxu0 %v1327
    %1329 = vmatprep.subr.mxu0 0.0
    %v1330 = vand.u32 %v67, 4294901760
    %1331 = vmatpush1.msra.mxu0 %v1330
    %1332 = vmatprep.subr.mxu0 0.0
    %v1333 = vand.u32 %v66, 4294901760
    %1334 = vmatpush1.msra.mxu0 %v1333
    %1335 = vmatprep.subr.mxu0 0.0
    %1336 = vmatpush2.msra.mxu0 0.0
    %1337 = vmatprep.subr.mxu0 0.0
    %1338 = vmatpush2.msra.mxu0 0.0
    %1339 = vmatprep.subr.mxu0 0.0
    %1340 = vmatpush2.msra.mxu0 0.0
    %1341 = vmatprep.subr.mxu0 0.0
    %1342 = vmatpush2.msra.mxu0 0.0
    %1343 = vmatprep.subr.mxu0 0.0
    %1344 = vmatpush2.msra.mxu0 0.0
    %1345 = vmatprep.subr.mxu0 0.0
    %1346 = vmatpush2.msra.mxu0 0.0
    %1347 = vmatprep.subr.mxu0 0.0
    %1348 = vmatpush2.msra.mxu0 0.0
    %1349 = vmatprep.subr.mxu0 0.0
    %1350 = vmatpush2.msra.mxu0 0.0
    %1351 = vmatprep.subr.mxu0 0.0
    %1352 = vmatpush2.msra.mxu0 0.0
    %1353 = vmatprep.subr.mxu0 0.0
    %1354 = vmatpush2.msra.mxu0 0.0
    %1355 = vmatprep.subr.mxu0 0.0
    %1356 = vmatpush2.msra.mxu0 0.0
    %1357 = vmatprep.subr.mxu0 0.0
    %1358 = vmatpush2.msra.mxu0 0.0
    %1359 = vmatprep.subr.mxu0 0.0
    %1360 = vmatpush2.msra.mxu0 0.0
    %1361 = vmatprep.subr.mxu0 0.0
    %1362 = vmatpush2.msra.mxu0 0.0
    %1363 = vmatprep.subr.mxu0 0.0
    %1364 = vmatpush2.msra.mxu0 0.0
    %1365 = vmatprep.subr.mxu0 0.0
    %1366 = vmatpush2.msra.mxu0 0.0
    %1367 = vmatprep.mubr.f32.mxu0 0.0
    %v1368 = vand.u32 %v868, 4294901760
    %v1369 = vsub.f32 %v868, %v1368
    %v1370 = vand.u32 %v1369, 4294901760
    %1371 = vmatmul.mubr.f32.gmra.mxu0 %v1370
    %v1372 = vpop.f32.mrf.mxu0
    %v1373 = vadd.f32 %v1263, %v1372
    %v1374 = vpop.f32.mrf.mxu0
    %1375 = vmatprep.mubr.f32.mxu0 0.0
    %v1376 = vand.u32 %v869, 4294901760
    %v1377 = vsub.f32 %v869, %v1376
    %v1378 = vand.u32 %v1377, 4294901760
    %1379 = vmatmul.mubr.f32.gmra.mxu0 %v1378
    %v1380 = vpop.f32.mrf.mxu0
    %v1381 = vadd.f32 %v1270, %v1380
    %v1382 = vpop.f32.mrf.mxu0
    %1383 = vmatprep.mubr.f32.mxu0 0.0
    %v1384 = vand.u32 %v870, 4294901760
    %v1385 = vsub.f32 %v870, %v1384
    %v1386 = vand.u32 %v1385, 4294901760
    %1387 = vmatmul.mubr.f32.gmra.mxu0 %v1386
    %v1388 = vpop.f32.mrf.mxu0
    %v1389 = vadd.f32 %v1277, %v1388
    %v1390 = vpop.f32.mrf.mxu0
    %1391 = vmatprep.mubr.f32.mxu0 0.0
    %v1392 = vand.u32 %v871, 4294901760
    %v1393 = vsub.f32 %v871, %v1392
    %v1394 = vand.u32 %v1393, 4294901760
    %1395 = vmatmul.mubr.f32.gmra.mxu0 %v1394
    %v1396 = vpop.f32.mrf.mxu0
    %v1397 = vadd.f32 %v1284, %v1396
    %v1398 = vpop.f32.mrf.mxu0
    %1399 = vdwg.mxu0
    %1400 = vmatprep.subr.mxu0 0.0
    %v1401 = vand.u32 %v81, 4294901760
    %v1402 = vsub.f32 %v81, %v1401
    %v1403 = vand.u32 %v1402, 4294901760
    %1404 = vmatpush1.msra.mxu0 %v1403
    %1405 = vmatprep.subr.mxu0 0.0
    %v1406 = vand.u32 %v80, 4294901760
    %v1407 = vsub.f32 %v80, %v1406
    %v1408 = vand.u32 %v1407, 4294901760
    %1409 = vmatpush1.msra.mxu0 %v1408
    %1410 = vmatprep.subr.mxu0 0.0
    %v1411 = vand.u32 %v79, 4294901760
    %v1412 = vsub.f32 %v79, %v1411
    %v1413 = vand.u32 %v1412, 4294901760
    %1414 = vmatpush1.msra.mxu0 %v1413
    %1415 = vmatprep.subr.mxu0 0.0
    %v1416 = vand.u32 %v78, 4294901760
    %v1417 = vsub.f32 %v78, %v1416
    %v1418 = vand.u32 %v1417, 4294901760
    %1419 = vmatpush1.msra.mxu0 %v1418
    %1420 = vmatprep.subr.mxu0 0.0
    %v1421 = vand.u32 %v77, 4294901760
    %v1422 = vsub.f32 %v77, %v1421
    %v1423 = vand.u32 %v1422, 4294901760
    %1424 = vmatpush1.msra.mxu0 %v1423
    %1425 = vmatprep.subr.mxu0 0.0
    %v1426 = vand.u32 %v76, 4294901760
    %v1427 = vsub.f32 %v76, %v1426
    %v1428 = vand.u32 %v1427, 4294901760
    %1429 = vmatpush1.msra.mxu0 %v1428
    %1430 = vmatprep.subr.mxu0 0.0
    %v1431 = vand.u32 %v75, 4294901760
    %v1432 = vsub.f32 %v75, %v1431
    %v1433 = vand.u32 %v1432, 4294901760
    %1434 = vmatpush1.msra.mxu0 %v1433
    %1435 = vmatprep.subr.mxu0 0.0
    %v1436 = vand.u32 %v74, 4294901760
    %v1437 = vsub.f32 %v74, %v1436
    %v1438 = vand.u32 %v1437, 4294901760
    %1439 = vmatpush1.msra.mxu0 %v1438
    %1440 = vmatprep.subr.mxu0 0.0
    %v1441 = vand.u32 %v73, 4294901760
    %v1442 = vsub.f32 %v73, %v1441
    %v1443 = vand.u32 %v1442, 4294901760
    %1444 = vmatpush1.msra.mxu0 %v1443
    %1445 = vmatprep.subr.mxu0 0.0
    %v1446 = vand.u32 %v72, 4294901760
    %v1447 = vsub.f32 %v72, %v1446
    %v1448 = vand.u32 %v1447, 4294901760
    %1449 = vmatpush1.msra.mxu0 %v1448
    %1450 = vmatprep.subr.mxu0 0.0
    %v1451 = vand.u32 %v71, 4294901760
    %v1452 = vsub.f32 %v71, %v1451
    %v1453 = vand.u32 %v1452, 4294901760
    %1454 = vmatpush1.msra.mxu0 %v1453
    %1455 = vmatprep.subr.mxu0 0.0
    %v1456 = vand.u32 %v70, 4294901760
    %v1457 = vsub.f32 %v70, %v1456
    %v1458 = vand.u32 %v1457, 4294901760
    %1459 = vmatpush1.msra.mxu0 %v1458
    %1460 = vmatprep.subr.mxu0 0.0
    %v1461 = vand.u32 %v69, 4294901760
    %v1462 = vsub.f32 %v69, %v1461
    %v1463 = vand.u32 %v1462, 4294901760
    %1464 = vmatpush1.msra.mxu0 %v1463
    %1465 = vmatprep.subr.mxu0 0.0
    %v1466 = vand.u32 %v68, 4294901760
    %v1467 = vsub.f32 %v68, %v1466
    %v1468 = vand.u32 %v1467, 4294901760
    %1469 = vmatpush1.msra.mxu0 %v1468
    %1470 = vmatprep.subr.mxu0 0.0
    %v1471 = vand.u32 %v67, 4294901760
    %v1472 = vsub.f32 %v67, %v1471
    %v1473 = vand.u32 %v1472, 4294901760
    %1474 = vmatpush1.msra.mxu0 %v1473
    %1475 = vmatprep.subr.mxu0 0.0
    %v1476 = vand.u32 %v66, 4294901760
    %v1477 = vsub.f32 %v66, %v1476
    %v1478 = vand.u32 %v1477, 4294901760
    %1479 = vmatpush1.msra.mxu0 %v1478
    %1480 = vmatprep.subr.mxu0 0.0
    %1481 = vmatpush2.msra.mxu0 0.0
    %1482 = vmatprep.subr.mxu0 0.0
    %1483 = vmatpush2.msra.mxu0 0.0
    %1484 = vmatprep.subr.mxu0 0.0
    %1485 = vmatpush2.msra.mxu0 0.0
    %1486 = vmatprep.subr.mxu0 0.0
    %1487 = vmatpush2.msra.mxu0 0.0
    %1488 = vmatprep.subr.mxu0 0.0
    %1489 = vmatpush2.msra.mxu0 0.0
    %1490 = vmatprep.subr.mxu0 0.0
    %1491 = vmatpush2.msra.mxu0 0.0
    %1492 = vmatprep.subr.mxu0 0.0
    %1493 = vmatpush2.msra.mxu0 0.0
    %1494 = vmatprep.subr.mxu0 0.0
    %1495 = vmatpush2.msra.mxu0 0.0
    %1496 = vmatprep.subr.mxu0 0.0
    %1497 = vmatpush2.msra.mxu0 0.0
    %1498 = vmatprep.subr.mxu0 0.0
    %1499 = vmatpush2.msra.mxu0 0.0
    %1500 = vmatprep.subr.mxu0 0.0
    %1501 = vmatpush2.msra.mxu0 0.0
    %1502 = vmatprep.subr.mxu0 0.0
    %1503 = vmatpush2.msra.mxu0 0.0
    %1504 = vmatprep.subr.mxu0 0.0
    %1505 = vmatpush2.msra.mxu0 0.0
    %1506 = vmatprep.subr.mxu0 0.0
    %1507 = vmatpush2.msra.mxu0 0.0
    %1508 = vmatprep.subr.mxu0 0.0
    %1509 = vmatpush2.msra.mxu0 0.0
    %1510 = vmatprep.subr.mxu0 0.0
    %1511 = vmatpush2.msra.mxu0 0.0
    %1512 = vmatprep.mubr.f32.mxu0 0.0
    %v1513 = vand.u32 %v868, 4294901760
    %1514 = vmatmul.mubr.f32.gmra.mxu0 %v1513
    %v1515 = vpop.f32.mrf.mxu0
    %v1516 = vadd.f32 %v1373, %v1515
    %v1517 = vpop.f32.mrf.mxu0
    %1518 = vmatprep.mubr.f32.mxu0 0.0
    %v1519 = vand.u32 %v869, 4294901760
    %1520 = vmatmul.mubr.f32.gmra.mxu0 %v1519
    %v1521 = vpop.f32.mrf.mxu0
    %v1522 = vadd.f32 %v1381, %v1521
    %v1523 = vpop.f32.mrf.mxu0
    %1524 = vmatprep.mubr.f32.mxu0 0.0
    %v1525 = vand.u32 %v870, 4294901760
    %1526 = vmatmul.mubr.f32.gmra.mxu0 %v1525
    %v1527 = vpop.f32.mrf.mxu0
    %v1528 = vadd.f32 %v1389, %v1527
    %v1529 = vpop.f32.mrf.mxu0
    %1530 = vmatprep.mubr.f32.mxu0 0.0
    %v1531 = vand.u32 %v871, 4294901760
    %1532 = vmatmul.mubr.f32.gmra.mxu0 %v1531
    %v1533 = vpop.f32.mrf.mxu0
    %v1534 = vadd.f32 %v1397, %v1533
    %v1535 = vpop.f32.mrf.mxu0
    %1536 = vdwg.mxu0
    %1537 = vmatprep.subr.mxu0 0.0
    %v1538 = vand.u32 %v81, 4294901760
    %1539 = vmatpush1.msra.mxu0 %v1538
    %1540 = vmatprep.subr.mxu0 0.0
    %v1541 = vand.u32 %v80, 4294901760
    %1542 = vmatpush1.msra.mxu0 %v1541
    %1543 = vmatprep.subr.mxu0 0.0
    %v1544 = vand.u32 %v79, 4294901760
    %1545 = vmatpush1.msra.mxu0 %v1544
    %1546 = vmatprep.subr.mxu0 0.0
    %v1547 = vand.u32 %v78, 4294901760
    %1548 = vmatpush1.msra.mxu0 %v1547
    %1549 = vmatprep.subr.mxu0 0.0
    %v1550 = vand.u32 %v77, 4294901760
    %1551 = vmatpush1.msra.mxu0 %v1550
    %1552 = vmatprep.subr.mxu0 0.0
    %v1553 = vand.u32 %v76, 4294901760
    %1554 = vmatpush1.msra.mxu0 %v1553
    %1555 = vmatprep.subr.mxu0 0.0
    %v1556 = vand.u32 %v75, 4294901760
    %1557 = vmatpush1.msra.mxu0 %v1556
    %1558 = vmatprep.subr.mxu0 0.0
    %v1559 = vand.u32 %v74, 4294901760
    %1560 = vmatpush1.msra.mxu0 %v1559
    %1561 = vmatprep.subr.mxu0 0.0
    %v1562 = vand.u32 %v73, 4294901760
    %1563 = vmatpush1.msra.mxu0 %v1562
    %1564 = vmatprep.subr.mxu0 0.0
    %v1565 = vand.u32 %v72, 4294901760
    %1566 = vmatpush1.msra.mxu0 %v1565
    %1567 = vmatprep.subr.mxu0 0.0
    %v1568 = vand.u32 %v71, 4294901760
    %1569 = vmatpush1.msra.mxu0 %v1568
    %1570 = vmatprep.subr.mxu0 0.0
    %v1571 = vand.u32 %v70, 4294901760
    %1572 = vmatpush1.msra.mxu0 %v1571
    %1573 = vmatprep.subr.mxu0 0.0
    %v1574 = vand.u32 %v69, 4294901760
    %1575 = vmatpush1.msra.mxu0 %v1574
    %1576 = vmatprep.subr.mxu0 0.0
    %v1577 = vand.u32 %v68, 4294901760
    %1578 = vmatpush1.msra.mxu0 %v1577
    %1579 = vmatprep.subr.mxu0 0.0
    %v1580 = vand.u32 %v67, 4294901760
    %1581 = vmatpush1.msra.mxu0 %v1580
    %1582 = vmatprep.subr.mxu0 0.0
    %v1583 = vand.u32 %v66, 4294901760
    %1584 = vmatpush1.msra.mxu0 %v1583
    %1585 = vmatprep.subr.mxu0 0.0
    %1586 = vmatpush2.msra.mxu0 0.0
    %1587 = vmatprep.subr.mxu0 0.0
    %1588 = vmatpush2.msra.mxu0 0.0
    %1589 = vmatprep.subr.mxu0 0.0
    %1590 = vmatpush2.msra.mxu0 0.0
    %1591 = vmatprep.subr.mxu0 0.0
    %1592 = vmatpush2.msra.mxu0 0.0
    %1593 = vmatprep.subr.mxu0 0.0
    %1594 = vmatpush2.msra.mxu0 0.0
    %1595 = vmatprep.subr.mxu0 0.0
    %1596 = vmatpush2.msra.mxu0 0.0
    %1597 = vmatprep.subr.mxu0 0.0
    %1598 = vmatpush2.msra.mxu0 0.0
    %1599 = vmatprep.subr.mxu0 0.0
    %1600 = vmatpush2.msra.mxu0 0.0
    %1601 = vmatprep.subr.mxu0 0.0
    %1602 = vmatpush2.msra.mxu0 0.0
    %1603 = vmatprep.subr.mxu0 0.0
    %1604 = vmatpush2.msra.mxu0 0.0
    %1605 = vmatprep.subr.mxu0 0.0
    %1606 = vmatpush2.msra.mxu0 0.0
    %1607 = vmatprep.subr.mxu0 0.0
    %1608 = vmatpush2.msra.mxu0 0.0
    %1609 = vmatprep.subr.mxu0 0.0
    %1610 = vmatpush2.msra.mxu0 0.0
    %1611 = vmatprep.subr.mxu0 0.0
    %1612 = vmatpush2.msra.mxu0 0.0
    %1613 = vmatprep.subr.mxu0 0.0
    %1614 = vmatpush2.msra.mxu0 0.0
    %1615 = vmatprep.subr.mxu0 0.0
    %1616 = vmatpush2.msra.mxu0 0.0
    %1617 = vmatprep.mubr.f32.mxu0 0.0
    %v1618 = vand.u32 %v868, 4294901760
    %1619 = vmatmul.mubr.f32.gmra.mxu0 %v1618
    %v1620 = vpop.f32.mrf.mxu0
    %v1621 = vadd.f32 %v1516, %v1620
    %v1622 = vpop.f32.mrf.mxu0
    %1623 = vmatprep.mubr.f32.mxu0 0.0
    %v1624 = vand.u32 %v869, 4294901760
    %1625 = vmatmul.mubr.f32.gmra.mxu0 %v1624
    %v1626 = vpop.f32.mrf.mxu0
    %v1627 = vadd.f32 %v1522, %v1626
    %v1628 = vpop.f32.mrf.mxu0
    %1629 = vmatprep.mubr.f32.mxu0 0.0
    %v1630 = vand.u32 %v870, 4294901760
    %1631 = vmatmul.mubr.f32.gmra.mxu0 %v1630
    %v1632 = vpop.f32.mrf.mxu0
    %v1633 = vadd.f32 %v1528, %v1632
    %v1634 = vpop.f32.mrf.mxu0
    %1635 = vmatprep.mubr.f32.mxu0 0.0
    %v1636 = vand.u32 %v871, 4294901760
    %1637 = vmatmul.mubr.f32.gmra.mxu0 %v1636
    %v1638 = vpop.f32.mrf.mxu0
    %v1639 = vadd.f32 %v1534, %v1638
    %v1640 = vpop.f32.mrf.mxu0
    %1641 = vdwg.mxu0
    %v1642 = vmul.f32 %v847, 0.03125
    %v1643 = vmul.f32 %v853, 0.03125
    %v1644 = vmul.f32 %v859, 0.03125
    %v1645 = vmul.f32 %v865, 0.03125
    %v1646 = vmul.f32 %v1621, 0.03125
    %v1647 = vmul.f32 %v1627, 0.03125
    %v1648 = vmul.f32 %v1633, 0.03125
    %v1649 = vmul.f32 %v1639, 0.03125
    %v1650 = vmul.f32 %v1642, %v1642
    %v1651 = vmul.f32 %v1643, %v1643
    %v1652 = vmul.f32 %v1644, %v1644
    %v1653 = vmul.f32 %v1645, %v1645
    %v1654 = vsub.f32 %v1646, %v1650
    %v1655 = vsub.f32 %v1647, %v1651
    %v1656 = vsub.f32 %v1648, %v1652
    %v1657 = vsub.f32 %v1649, %v1653
    %v1658 = vmax.f32 %v1654, 0.0
    %v1659 = vmax.f32 %v1655, 0.0
    %v1660 = vmax.f32 %v1656, 0.0
    %v1661 = vmax.f32 %v1657, 0.0
    %v1662 = vadd.f32 %v1658, 1e-05
    %v1663 = vadd.f32 %v1659, 1e-05
    %v1664 = vadd.f32 %v1660, 1e-05
    %v1665 = vadd.f32 %v1661, 1e-05
    %v1666 = vrsqrt.pop %v1662
    %v1667 = vrsqrt.pop %v1663
    %v1668 = vrsqrt.pop %v1664
    %v1669 = vrsqrt.pop %v1665
    %1670 = vmatprep.subr.mxu0 0.0
    %v1671 = vand.u32 %v97, 4294901760
    %1672 = vmatpush1.msra.mxu0 %v1671
    %1673 = vmatprep.subr.mxu0 0.0
    %v1674 = vand.u32 %v96, 4294901760
    %1675 = vmatpush1.msra.mxu0 %v1674
    %1676 = vmatprep.subr.mxu0 0.0
    %v1677 = vand.u32 %v95, 4294901760
    %1678 = vmatpush1.msra.mxu0 %v1677
    %1679 = vmatprep.subr.mxu0 0.0
    %v1680 = vand.u32 %v94, 4294901760
    %1681 = vmatpush1.msra.mxu0 %v1680
    %1682 = vmatprep.subr.mxu0 0.0
    %v1683 = vand.u32 %v93, 4294901760
    %1684 = vmatpush1.msra.mxu0 %v1683
    %1685 = vmatprep.subr.mxu0 0.0
    %v1686 = vand.u32 %v92, 4294901760
    %1687 = vmatpush1.msra.mxu0 %v1686
    %1688 = vmatprep.subr.mxu0 0.0
    %v1689 = vand.u32 %v91, 4294901760
    %1690 = vmatpush1.msra.mxu0 %v1689
    %1691 = vmatprep.subr.mxu0 0.0
    %v1692 = vand.u32 %v90, 4294901760
    %1693 = vmatpush1.msra.mxu0 %v1692
    %1694 = vmatprep.subr.mxu0 0.0
    %v1695 = vand.u32 %v89, 4294901760
    %1696 = vmatpush1.msra.mxu0 %v1695
    %1697 = vmatprep.subr.mxu0 0.0
    %v1698 = vand.u32 %v88, 4294901760
    %1699 = vmatpush1.msra.mxu0 %v1698
    %1700 = vmatprep.subr.mxu0 0.0
    %v1701 = vand.u32 %v87, 4294901760
    %1702 = vmatpush1.msra.mxu0 %v1701
    %1703 = vmatprep.subr.mxu0 0.0
    %v1704 = vand.u32 %v86, 4294901760
    %1705 = vmatpush1.msra.mxu0 %v1704
    %1706 = vmatprep.subr.mxu0 0.0
    %v1707 = vand.u32 %v85, 4294901760
    %1708 = vmatpush1.msra.mxu0 %v1707
    %1709 = vmatprep.subr.mxu0 0.0
    %v1710 = vand.u32 %v84, 4294901760
    %1711 = vmatpush1.msra.mxu0 %v1710
    %1712 = vmatprep.subr.mxu0 0.0
    %v1713 = vand.u32 %v83, 4294901760
    %1714 = vmatpush1.msra.mxu0 %v1713
    %1715 = vmatprep.subr.mxu0 0.0
    %v1716 = vand.u32 %v82, 4294901760
    %1717 = vmatpush1.msra.mxu0 %v1716
    %1718 = vmatprep.subr.mxu0 0.0
    %1719 = vmatpush2.msra.mxu0 0.0
    %1720 = vmatprep.subr.mxu0 0.0
    %1721 = vmatpush2.msra.mxu0 0.0
    %1722 = vmatprep.subr.mxu0 0.0
    %1723 = vmatpush2.msra.mxu0 0.0
    %1724 = vmatprep.subr.mxu0 0.0
    %1725 = vmatpush2.msra.mxu0 0.0
    %1726 = vmatprep.subr.mxu0 0.0
    %1727 = vmatpush2.msra.mxu0 0.0
    %1728 = vmatprep.subr.mxu0 0.0
    %1729 = vmatpush2.msra.mxu0 0.0
    %1730 = vmatprep.subr.mxu0 0.0
    %1731 = vmatpush2.msra.mxu0 0.0
    %1732 = vmatprep.subr.mxu0 0.0
    %1733 = vmatpush2.msra.mxu0 0.0
    %1734 = vmatprep.subr.mxu0 0.0
    %1735 = vmatpush2.msra.mxu0 0.0
    %1736 = vmatprep.subr.mxu0 0.0
    %1737 = vmatpush2.msra.mxu0 0.0
    %1738 = vmatprep.subr.mxu0 0.0
    %1739 = vmatpush2.msra.mxu0 0.0
    %1740 = vmatprep.subr.mxu0 0.0
    %1741 = vmatpush2.msra.mxu0 0.0
    %1742 = vmatprep.subr.mxu0 0.0
    %1743 = vmatpush2.msra.mxu0 0.0
    %1744 = vmatprep.subr.mxu0 0.0
    %1745 = vmatpush2.msra.mxu0 0.0
    %1746 = vmatprep.subr.mxu0 0.0
    %1747 = vmatpush2.msra.mxu0 0.0
    %1748 = vmatprep.subr.mxu0 0.0
    %1749 = vmatpush2.msra.mxu0 0.0
    %1750 = vmatprep.mubr.f32.mxu0 0.0
    %v1751 = vand.u32 %v1666, 4294901760
    %v1752 = vsub.f32 %v1666, %v1751
    %v1753 = vand.u32 %v1752, 4294901760
    %v1754 = vsub.f32 %v1752, %v1753
    %v1755 = vand.u32 %v1754, 4294901760
    %1756 = vmatmul.mubr.f32.gmra.mxu0 %v1755
    %v1757 = vpop.f32.mrf.mxu0
    %v1758 = vadd.f32 0.0, %v1757
    %v1759 = vpop.f32.mrf.mxu0
    %1760 = vmatprep.mubr.f32.mxu0 0.0
    %v1761 = vand.u32 %v1667, 4294901760
    %v1762 = vsub.f32 %v1667, %v1761
    %v1763 = vand.u32 %v1762, 4294901760
    %v1764 = vsub.f32 %v1762, %v1763
    %v1765 = vand.u32 %v1764, 4294901760
    %1766 = vmatmul.mubr.f32.gmra.mxu0 %v1765
    %v1767 = vpop.f32.mrf.mxu0
    %v1768 = vadd.f32 0.0, %v1767
    %v1769 = vpop.f32.mrf.mxu0
    %1770 = vmatprep.mubr.f32.mxu0 0.0
    %v1771 = vand.u32 %v1668, 4294901760
    %v1772 = vsub.f32 %v1668, %v1771
    %v1773 = vand.u32 %v1772, 4294901760
    %v1774 = vsub.f32 %v1772, %v1773
    %v1775 = vand.u32 %v1774, 4294901760
    %1776 = vmatmul.mubr.f32.gmra.mxu0 %v1775
    %v1777 = vpop.f32.mrf.mxu0
    %v1778 = vadd.f32 0.0, %v1777
    %v1779 = vpop.f32.mrf.mxu0
    %1780 = vmatprep.mubr.f32.mxu0 0.0
    %v1781 = vand.u32 %v1669, 4294901760
    %v1782 = vsub.f32 %v1669, %v1781
    %v1783 = vand.u32 %v1782, 4294901760
    %v1784 = vsub.f32 %v1782, %v1783
    %v1785 = vand.u32 %v1784, 4294901760
    %1786 = vmatmul.mubr.f32.gmra.mxu0 %v1785
    %v1787 = vpop.f32.mrf.mxu0
    %v1788 = vadd.f32 0.0, %v1787
    %v1789 = vpop.f32.mrf.mxu0
    %1790 = vdwg.mxu0
    %1791 = vmatprep.subr.mxu0 0.0
    %v1792 = vand.u32 %v97, 4294901760
    %v1793 = vsub.f32 %v97, %v1792
    %v1794 = vand.u32 %v1793, 4294901760
    %v1795 = vsub.f32 %v1793, %v1794
    %v1796 = vand.u32 %v1795, 4294901760
    %1797 = vmatpush1.msra.mxu0 %v1796
    %1798 = vmatprep.subr.mxu0 0.0
    %v1799 = vand.u32 %v96, 4294901760
    %v1800 = vsub.f32 %v96, %v1799
    %v1801 = vand.u32 %v1800, 4294901760
    %v1802 = vsub.f32 %v1800, %v1801
    %v1803 = vand.u32 %v1802, 4294901760
    %1804 = vmatpush1.msra.mxu0 %v1803
    %1805 = vmatprep.subr.mxu0 0.0
    %v1806 = vand.u32 %v95, 4294901760
    %v1807 = vsub.f32 %v95, %v1806
    %v1808 = vand.u32 %v1807, 4294901760
    %v1809 = vsub.f32 %v1807, %v1808
    %v1810 = vand.u32 %v1809, 4294901760
    %1811 = vmatpush1.msra.mxu0 %v1810
    %1812 = vmatprep.subr.mxu0 0.0
    %v1813 = vand.u32 %v94, 4294901760
    %v1814 = vsub.f32 %v94, %v1813
    %v1815 = vand.u32 %v1814, 4294901760
    %v1816 = vsub.f32 %v1814, %v1815
    %v1817 = vand.u32 %v1816, 4294901760
    %1818 = vmatpush1.msra.mxu0 %v1817
    %1819 = vmatprep.subr.mxu0 0.0
    %v1820 = vand.u32 %v93, 4294901760
    %v1821 = vsub.f32 %v93, %v1820
    %v1822 = vand.u32 %v1821, 4294901760
    %v1823 = vsub.f32 %v1821, %v1822
    %v1824 = vand.u32 %v1823, 4294901760
    %1825 = vmatpush1.msra.mxu0 %v1824
    %1826 = vmatprep.subr.mxu0 0.0
    %v1827 = vand.u32 %v92, 4294901760
    %v1828 = vsub.f32 %v92, %v1827
    %v1829 = vand.u32 %v1828, 4294901760
    %v1830 = vsub.f32 %v1828, %v1829
    %v1831 = vand.u32 %v1830, 4294901760
    %1832 = vmatpush1.msra.mxu0 %v1831
    %1833 = vmatprep.subr.mxu0 0.0
    %v1834 = vand.u32 %v91, 4294901760
    %v1835 = vsub.f32 %v91, %v1834
    %v1836 = vand.u32 %v1835, 4294901760
    %v1837 = vsub.f32 %v1835, %v1836
    %v1838 = vand.u32 %v1837, 4294901760
    %1839 = vmatpush1.msra.mxu0 %v1838
    %1840 = vmatprep.subr.mxu0 0.0
    %v1841 = vand.u32 %v90, 4294901760
    %v1842 = vsub.f32 %v90, %v1841
    %v1843 = vand.u32 %v1842, 4294901760
    %v1844 = vsub.f32 %v1842, %v1843
    %v1845 = vand.u32 %v1844, 4294901760
    %1846 = vmatpush1.msra.mxu0 %v1845
    %1847 = vmatprep.subr.mxu0 0.0
    %v1848 = vand.u32 %v89, 4294901760
    %v1849 = vsub.f32 %v89, %v1848
    %v1850 = vand.u32 %v1849, 4294901760
    %v1851 = vsub.f32 %v1849, %v1850
    %v1852 = vand.u32 %v1851, 4294901760
    %1853 = vmatpush1.msra.mxu0 %v1852
    %1854 = vmatprep.subr.mxu0 0.0
    %v1855 = vand.u32 %v88, 4294901760
    %v1856 = vsub.f32 %v88, %v1855
    %v1857 = vand.u32 %v1856, 4294901760
    %v1858 = vsub.f32 %v1856, %v1857
    %v1859 = vand.u32 %v1858, 4294901760
    %1860 = vmatpush1.msra.mxu0 %v1859
    %1861 = vmatprep.subr.mxu0 0.0
    %v1862 = vand.u32 %v87, 4294901760
    %v1863 = vsub.f32 %v87, %v1862
    %v1864 = vand.u32 %v1863, 4294901760
    %v1865 = vsub.f32 %v1863, %v1864
    %v1866 = vand.u32 %v1865, 4294901760
    %1867 = vmatpush1.msra.mxu0 %v1866
    %1868 = vmatprep.subr.mxu0 0.0
    %v1869 = vand.u32 %v86, 4294901760
    %v1870 = vsub.f32 %v86, %v1869
    %v1871 = vand.u32 %v1870, 4294901760
    %v1872 = vsub.f32 %v1870, %v1871
    %v1873 = vand.u32 %v1872, 4294901760
    %1874 = vmatpush1.msra.mxu0 %v1873
    %1875 = vmatprep.subr.mxu0 0.0
    %v1876 = vand.u32 %v85, 4294901760
    %v1877 = vsub.f32 %v85, %v1876
    %v1878 = vand.u32 %v1877, 4294901760
    %v1879 = vsub.f32 %v1877, %v1878
    %v1880 = vand.u32 %v1879, 4294901760
    %1881 = vmatpush1.msra.mxu0 %v1880
    %1882 = vmatprep.subr.mxu0 0.0
    %v1883 = vand.u32 %v84, 4294901760
    %v1884 = vsub.f32 %v84, %v1883
    %v1885 = vand.u32 %v1884, 4294901760
    %v1886 = vsub.f32 %v1884, %v1885
    %v1887 = vand.u32 %v1886, 4294901760
    %1888 = vmatpush1.msra.mxu0 %v1887
    %1889 = vmatprep.subr.mxu0 0.0
    %v1890 = vand.u32 %v83, 4294901760
    %v1891 = vsub.f32 %v83, %v1890
    %v1892 = vand.u32 %v1891, 4294901760
    %v1893 = vsub.f32 %v1891, %v1892
    %v1894 = vand.u32 %v1893, 4294901760
    %1895 = vmatpush1.msra.mxu0 %v1894
    %1896 = vmatprep.subr.mxu0 0.0
    %v1897 = vand.u32 %v82, 4294901760
    %v1898 = vsub.f32 %v82, %v1897
    %v1899 = vand.u32 %v1898, 4294901760
    %v1900 = vsub.f32 %v1898, %v1899
    %v1901 = vand.u32 %v1900, 4294901760
    %1902 = vmatpush1.msra.mxu0 %v1901
    %1903 = vmatprep.subr.mxu0 0.0
    %1904 = vmatpush2.msra.mxu0 0.0
    %1905 = vmatprep.subr.mxu0 0.0
    %1906 = vmatpush2.msra.mxu0 0.0
    %1907 = vmatprep.subr.mxu0 0.0
    %1908 = vmatpush2.msra.mxu0 0.0
    %1909 = vmatprep.subr.mxu0 0.0
    %1910 = vmatpush2.msra.mxu0 0.0
    %1911 = vmatprep.subr.mxu0 0.0
    %1912 = vmatpush2.msra.mxu0 0.0
    %1913 = vmatprep.subr.mxu0 0.0
    %1914 = vmatpush2.msra.mxu0 0.0
    %1915 = vmatprep.subr.mxu0 0.0
    %1916 = vmatpush2.msra.mxu0 0.0
    %1917 = vmatprep.subr.mxu0 0.0
    %1918 = vmatpush2.msra.mxu0 0.0
    %1919 = vmatprep.subr.mxu0 0.0
    %1920 = vmatpush2.msra.mxu0 0.0
    %1921 = vmatprep.subr.mxu0 0.0
    %1922 = vmatpush2.msra.mxu0 0.0
    %1923 = vmatprep.subr.mxu0 0.0
    %1924 = vmatpush2.msra.mxu0 0.0
    %1925 = vmatprep.subr.mxu0 0.0
    %1926 = vmatpush2.msra.mxu0 0.0
    %1927 = vmatprep.subr.mxu0 0.0
    %1928 = vmatpush2.msra.mxu0 0.0
    %1929 = vmatprep.subr.mxu0 0.0
    %1930 = vmatpush2.msra.mxu0 0.0
    %1931 = vmatprep.subr.mxu0 0.0
    %1932 = vmatpush2.msra.mxu0 0.0
    %1933 = vmatprep.subr.mxu0 0.0
    %1934 = vmatpush2.msra.mxu0 0.0
    %1935 = vmatprep.mubr.f32.mxu0 0.0
    %v1936 = vand.u32 %v1666, 4294901760
    %1937 = vmatmul.mubr.f32.gmra.mxu0 %v1936
    %v1938 = vpop.f32.mrf.mxu0
    %v1939 = vadd.f32 %v1758, %v1938
    %v1940 = vpop.f32.mrf.mxu0
    %1941 = vmatprep.mubr.f32.mxu0 0.0
    %v1942 = vand.u32 %v1667, 4294901760
    %1943 = vmatmul.mubr.f32.gmra.mxu0 %v1942
    %v1944 = vpop.f32.mrf.mxu0
    %v1945 = vadd.f32 %v1768, %v1944
    %v1946 = vpop.f32.mrf.mxu0
    %1947 = vmatprep.mubr.f32.mxu0 0.0
    %v1948 = vand.u32 %v1668, 4294901760
    %1949 = vmatmul.mubr.f32.gmra.mxu0 %v1948
    %v1950 = vpop.f32.mrf.mxu0
    %v1951 = vadd.f32 %v1778, %v1950
    %v1952 = vpop.f32.mrf.mxu0
    %1953 = vmatprep.mubr.f32.mxu0 0.0
    %v1954 = vand.u32 %v1669, 4294901760
    %1955 = vmatmul.mubr.f32.gmra.mxu0 %v1954
    %v1956 = vpop.f32.mrf.mxu0
    %v1957 = vadd.f32 %v1788, %v1956
    %v1958 = vpop.f32.mrf.mxu0
    %1959 = vdwg.mxu0
    %1960 = vmatprep.subr.mxu0 0.0
    %v1961 = vand.u32 %v97, 4294901760
    %v1962 = vsub.f32 %v97, %v1961
    %1963 = vmatpush1.msra.mxu0 %v1962
    %1964 = vmatprep.subr.mxu0 0.0
    %v1965 = vand.u32 %v96, 4294901760
    %v1966 = vsub.f32 %v96, %v1965
    %1967 = vmatpush1.msra.mxu0 %v1966
    %1968 = vmatprep.subr.mxu0 0.0
    %v1969 = vand.u32 %v95, 4294901760
    %v1970 = vsub.f32 %v95, %v1969
    %1971 = vmatpush1.msra.mxu0 %v1970
    %1972 = vmatprep.subr.mxu0 0.0
    %v1973 = vand.u32 %v94, 4294901760
    %v1974 = vsub.f32 %v94, %v1973
    %1975 = vmatpush1.msra.mxu0 %v1974
    %1976 = vmatprep.subr.mxu0 0.0
    %v1977 = vand.u32 %v93, 4294901760
    %v1978 = vsub.f32 %v93, %v1977
    %1979 = vmatpush1.msra.mxu0 %v1978
    %1980 = vmatprep.subr.mxu0 0.0
    %v1981 = vand.u32 %v92, 4294901760
    %v1982 = vsub.f32 %v92, %v1981
    %1983 = vmatpush1.msra.mxu0 %v1982
    %1984 = vmatprep.subr.mxu0 0.0
    %v1985 = vand.u32 %v91, 4294901760
    %v1986 = vsub.f32 %v91, %v1985
    %1987 = vmatpush1.msra.mxu0 %v1986
    %1988 = vmatprep.subr.mxu0 0.0
    %v1989 = vand.u32 %v90, 4294901760
    %v1990 = vsub.f32 %v90, %v1989
    %1991 = vmatpush1.msra.mxu0 %v1990
    %1992 = vmatprep.subr.mxu0 0.0
    %v1993 = vand.u32 %v89, 4294901760
    %v1994 = vsub.f32 %v89, %v1993
    %1995 = vmatpush1.msra.mxu0 %v1994
    %1996 = vmatprep.subr.mxu0 0.0
    %v1997 = vand.u32 %v88, 4294901760
    %v1998 = vsub.f32 %v88, %v1997
    %1999 = vmatpush1.msra.mxu0 %v1998
    %2000 = vmatprep.subr.mxu0 0.0
    %v2001 = vand.u32 %v87, 4294901760
    %v2002 = vsub.f32 %v87, %v2001
    %2003 = vmatpush1.msra.mxu0 %v2002
    %2004 = vmatprep.subr.mxu0 0.0
    %v2005 = vand.u32 %v86, 4294901760
    %v2006 = vsub.f32 %v86, %v2005
    %2007 = vmatpush1.msra.mxu0 %v2006
    %2008 = vmatprep.subr.mxu0 0.0
    %v2009 = vand.u32 %v85, 4294901760
    %v2010 = vsub.f32 %v85, %v2009
    %2011 = vmatpush1.msra.mxu0 %v2010
    %2012 = vmatprep.subr.mxu0 0.0
    %v2013 = vand.u32 %v84, 4294901760
    %v2014 = vsub.f32 %v84, %v2013
    %2015 = vmatpush1.msra.mxu0 %v2014
    %2016 = vmatprep.subr.mxu0 0.0
    %v2017 = vand.u32 %v83, 4294901760
    %v2018 = vsub.f32 %v83, %v2017
    %2019 = vmatpush1.msra.mxu0 %v2018
    %2020 = vmatprep.subr.mxu0 0.0
    %v2021 = vand.u32 %v82, 4294901760
    %v2022 = vsub.f32 %v82, %v2021
    %2023 = vmatpush1.msra.mxu0 %v2022
    %2024 = vmatprep.subr.mxu0 0.0
    %2025 = vmatpush2.msra.mxu0 0.0
    %2026 = vmatprep.subr.mxu0 0.0
    %2027 = vmatpush2.msra.mxu0 0.0
    %2028 = vmatprep.subr.mxu0 0.0
    %2029 = vmatpush2.msra.mxu0 0.0
    %2030 = vmatprep.subr.mxu0 0.0
    %2031 = vmatpush2.msra.mxu0 0.0
    %2032 = vmatprep.subr.mxu0 0.0
    %2033 = vmatpush2.msra.mxu0 0.0
    %2034 = vmatprep.subr.mxu0 0.0
    %2035 = vmatpush2.msra.mxu0 0.0
    %2036 = vmatprep.subr.mxu0 0.0
    %2037 = vmatpush2.msra.mxu0 0.0
    %2038 = vmatprep.subr.mxu0 0.0
    %2039 = vmatpush2.msra.mxu0 0.0
    %2040 = vmatprep.subr.mxu0 0.0
    %2041 = vmatpush2.msra.mxu0 0.0
    %2042 = vmatprep.subr.mxu0 0.0
    %2043 = vmatpush2.msra.mxu0 0.0
    %2044 = vmatprep.subr.mxu0 0.0
    %2045 = vmatpush2.msra.mxu0 0.0
    %2046 = vmatprep.subr.mxu0 0.0
    %2047 = vmatpush2.msra.mxu0 0.0
    %2048 = vmatprep.subr.mxu0 0.0
    %2049 = vmatpush2.msra.mxu0 0.0
    %2050 = vmatprep.subr.mxu0 0.0
    %2051 = vmatpush2.msra.mxu0 0.0
    %2052 = vmatprep.subr.mxu0 0.0
    %2053 = vmatpush2.msra.mxu0 0.0
    %2054 = vmatprep.subr.mxu0 0.0
    %2055 = vmatpush2.msra.mxu0 0.0
    %2056 = vmatprep.mubr.f32.mxu0 0.0
    %v2057 = vand.u32 %v1666, 4294901760
    %v2058 = vsub.f32 %v1666, %v2057
    %2059 = vmatmul.mubr.f32.gmra.mxu0 %v2058
    %v2060 = vpop.f32.mrf.mxu0
    %v2061 = vadd.f32 %v1939, %v2060
    %v2062 = vpop.f32.mrf.mxu0
    %2063 = vmatprep.mubr.f32.mxu0 0.0
    %v2064 = vand.u32 %v1667, 4294901760
    %v2065 = vsub.f32 %v1667, %v2064
    %2066 = vmatmul.mubr.f32.gmra.mxu0 %v2065
    %v2067 = vpop.f32.mrf.mxu0
    %v2068 = vadd.f32 %v1945, %v2067
    %v2069 = vpop.f32.mrf.mxu0
    %2070 = vmatprep.mubr.f32.mxu0 0.0
    %v2071 = vand.u32 %v1668, 4294901760
    %v2072 = vsub.f32 %v1668, %v2071
    %2073 = vmatmul.mubr.f32.gmra.mxu0 %v2072
    %v2074 = vpop.f32.mrf.mxu0
    %v2075 = vadd.f32 %v1951, %v2074
    %v2076 = vpop.f32.mrf.mxu0
    %2077 = vmatprep.mubr.f32.mxu0 0.0
    %v2078 = vand.u32 %v1669, 4294901760
    %v2079 = vsub.f32 %v1669, %v2078
    %2080 = vmatmul.mubr.f32.gmra.mxu0 %v2079
    %v2081 = vpop.f32.mrf.mxu0
    %v2082 = vadd.f32 %v1957, %v2081
    %v2083 = vpop.f32.mrf.mxu0
    %2084 = vdwg.mxu0
    %2085 = vmatprep.subr.mxu0 0.0
    %v2086 = vand.u32 %v97, 4294901760
    %2087 = vmatpush1.msra.mxu0 %v2086
    %2088 = vmatprep.subr.mxu0 0.0
    %v2089 = vand.u32 %v96, 4294901760
    %2090 = vmatpush1.msra.mxu0 %v2089
    %2091 = vmatprep.subr.mxu0 0.0
    %v2092 = vand.u32 %v95, 4294901760
    %2093 = vmatpush1.msra.mxu0 %v2092
    %2094 = vmatprep.subr.mxu0 0.0
    %v2095 = vand.u32 %v94, 4294901760
    %2096 = vmatpush1.msra.mxu0 %v2095
    %2097 = vmatprep.subr.mxu0 0.0
    %v2098 = vand.u32 %v93, 4294901760
    %2099 = vmatpush1.msra.mxu0 %v2098
    %2100 = vmatprep.subr.mxu0 0.0
    %v2101 = vand.u32 %v92, 4294901760
    %2102 = vmatpush1.msra.mxu0 %v2101
    %2103 = vmatprep.subr.mxu0 0.0
    %v2104 = vand.u32 %v91, 4294901760
    %2105 = vmatpush1.msra.mxu0 %v2104
    %2106 = vmatprep.subr.mxu0 0.0
    %v2107 = vand.u32 %v90, 4294901760
    %2108 = vmatpush1.msra.mxu0 %v2107
    %2109 = vmatprep.subr.mxu0 0.0
    %v2110 = vand.u32 %v89, 4294901760
    %2111 = vmatpush1.msra.mxu0 %v2110
    %2112 = vmatprep.subr.mxu0 0.0
    %v2113 = vand.u32 %v88, 4294901760
    %2114 = vmatpush1.msra.mxu0 %v2113
    %2115 = vmatprep.subr.mxu0 0.0
    %v2116 = vand.u32 %v87, 4294901760
    %2117 = vmatpush1.msra.mxu0 %v2116
    %2118 = vmatprep.subr.mxu0 0.0
    %v2119 = vand.u32 %v86, 4294901760
    %2120 = vmatpush1.msra.mxu0 %v2119
    %2121 = vmatprep.subr.mxu0 0.0
    %v2122 = vand.u32 %v85, 4294901760
    %2123 = vmatpush1.msra.mxu0 %v2122
    %2124 = vmatprep.subr.mxu0 0.0
    %v2125 = vand.u32 %v84, 4294901760
    %2126 = vmatpush1.msra.mxu0 %v2125
    %2127 = vmatprep.subr.mxu0 0.0
    %v2128 = vand.u32 %v83, 4294901760
    %2129 = vmatpush1.msra.mxu0 %v2128
    %2130 = vmatprep.subr.mxu0 0.0
    %v2131 = vand.u32 %v82, 4294901760
    %2132 = vmatpush1.msra.mxu0 %v2131
    %2133 = vmatprep.subr.mxu0 0.0
    %2134 = vmatpush2.msra.mxu0 0.0
    %2135 = vmatprep.subr.mxu0 0.0
    %2136 = vmatpush2.msra.mxu0 0.0
    %2137 = vmatprep.subr.mxu0 0.0
    %2138 = vmatpush2.msra.mxu0 0.0
    %2139 = vmatprep.subr.mxu0 0.0
    %2140 = vmatpush2.msra.mxu0 0.0
    %2141 = vmatprep.subr.mxu0 0.0
    %2142 = vmatpush2.msra.mxu0 0.0
    %2143 = vmatprep.subr.mxu0 0.0
    %2144 = vmatpush2.msra.mxu0 0.0
    %2145 = vmatprep.subr.mxu0 0.0
    %2146 = vmatpush2.msra.mxu0 0.0
    %2147 = vmatprep.subr.mxu0 0.0
    %2148 = vmatpush2.msra.mxu0 0.0
    %2149 = vmatprep.subr.mxu0 0.0
    %2150 = vmatpush2.msra.mxu0 0.0
    %2151 = vmatprep.subr.mxu0 0.0
    %2152 = vmatpush2.msra.mxu0 0.0
    %2153 = vmatprep.subr.mxu0 0.0
    %2154 = vmatpush2.msra.mxu0 0.0
    %2155 = vmatprep.subr.mxu0 0.0
    %2156 = vmatpush2.msra.mxu0 0.0
    %2157 = vmatprep.subr.mxu0 0.0
    %2158 = vmatpush2.msra.mxu0 0.0
    %2159 = vmatprep.subr.mxu0 0.0
    %2160 = vmatpush2.msra.mxu0 0.0
    %2161 = vmatprep.subr.mxu0 0.0
    %2162 = vmatpush2.msra.mxu0 0.0
    %2163 = vmatprep.subr.mxu0 0.0
    %2164 = vmatpush2.msra.mxu0 0.0
    %2165 = vmatprep.mubr.f32.mxu0 0.0
    %v2166 = vand.u32 %v1666, 4294901760
    %v2167 = vsub.f32 %v1666, %v2166
    %v2168 = vand.u32 %v2167, 4294901760
    %2169 = vmatmul.mubr.f32.gmra.mxu0 %v2168
    %v2170 = vpop.f32.mrf.mxu0
    %v2171 = vadd.f32 %v2061, %v2170
    %v2172 = vpop.f32.mrf.mxu0
    %2173 = vmatprep.mubr.f32.mxu0 0.0
    %v2174 = vand.u32 %v1667, 4294901760
    %v2175 = vsub.f32 %v1667, %v2174
    %v2176 = vand.u32 %v2175, 4294901760
    %2177 = vmatmul.mubr.f32.gmra.mxu0 %v2176
    %v2178 = vpop.f32.mrf.mxu0
    %v2179 = vadd.f32 %v2068, %v2178
    %v2180 = vpop.f32.mrf.mxu0
    %2181 = vmatprep.mubr.f32.mxu0 0.0
    %v2182 = vand.u32 %v1668, 4294901760
    %v2183 = vsub.f32 %v1668, %v2182
    %v2184 = vand.u32 %v2183, 4294901760
    %2185 = vmatmul.mubr.f32.gmra.mxu0 %v2184
    %v2186 = vpop.f32.mrf.mxu0
    %v2187 = vadd.f32 %v2075, %v2186
    %v2188 = vpop.f32.mrf.mxu0
    %2189 = vmatprep.mubr.f32.mxu0 0.0
    %v2190 = vand.u32 %v1669, 4294901760
    %v2191 = vsub.f32 %v1669, %v2190
    %v2192 = vand.u32 %v2191, 4294901760
    %2193 = vmatmul.mubr.f32.gmra.mxu0 %v2192
    %v2194 = vpop.f32.mrf.mxu0
    %v2195 = vadd.f32 %v2082, %v2194
    %v2196 = vpop.f32.mrf.mxu0
    %2197 = vdwg.mxu0
    %2198 = vmatprep.subr.mxu0 0.0
    %v2199 = vand.u32 %v97, 4294901760
    %v2200 = vsub.f32 %v97, %v2199
    %v2201 = vand.u32 %v2200, 4294901760
    %2202 = vmatpush1.msra.mxu0 %v2201
    %2203 = vmatprep.subr.mxu0 0.0
    %v2204 = vand.u32 %v96, 4294901760
    %v2205 = vsub.f32 %v96, %v2204
    %v2206 = vand.u32 %v2205, 4294901760
    %2207 = vmatpush1.msra.mxu0 %v2206
    %2208 = vmatprep.subr.mxu0 0.0
    %v2209 = vand.u32 %v95, 4294901760
    %v2210 = vsub.f32 %v95, %v2209
    %v2211 = vand.u32 %v2210, 4294901760
    %2212 = vmatpush1.msra.mxu0 %v2211
    %2213 = vmatprep.subr.mxu0 0.0
    %v2214 = vand.u32 %v94, 4294901760
    %v2215 = vsub.f32 %v94, %v2214
    %v2216 = vand.u32 %v2215, 4294901760
    %2217 = vmatpush1.msra.mxu0 %v2216
    %2218 = vmatprep.subr.mxu0 0.0
    %v2219 = vand.u32 %v93, 4294901760
    %v2220 = vsub.f32 %v93, %v2219
    %v2221 = vand.u32 %v2220, 4294901760
    %2222 = vmatpush1.msra.mxu0 %v2221
    %2223 = vmatprep.subr.mxu0 0.0
    %v2224 = vand.u32 %v92, 4294901760
    %v2225 = vsub.f32 %v92, %v2224
    %v2226 = vand.u32 %v2225, 4294901760
    %2227 = vmatpush1.msra.mxu0 %v2226
    %2228 = vmatprep.subr.mxu0 0.0
    %v2229 = vand.u32 %v91, 4294901760
    %v2230 = vsub.f32 %v91, %v2229
    %v2231 = vand.u32 %v2230, 4294901760
    %2232 = vmatpush1.msra.mxu0 %v2231
    %2233 = vmatprep.subr.mxu0 0.0
    %v2234 = vand.u32 %v90, 4294901760
    %v2235 = vsub.f32 %v90, %v2234
    %v2236 = vand.u32 %v2235, 4294901760
    %2237 = vmatpush1.msra.mxu0 %v2236
    %2238 = vmatprep.subr.mxu0 0.0
    %v2239 = vand.u32 %v89, 4294901760
    %v2240 = vsub.f32 %v89, %v2239
    %v2241 = vand.u32 %v2240, 4294901760
    %2242 = vmatpush1.msra.mxu0 %v2241
    %2243 = vmatprep.subr.mxu0 0.0
    %v2244 = vand.u32 %v88, 4294901760
    %v2245 = vsub.f32 %v88, %v2244
    %v2246 = vand.u32 %v2245, 4294901760
    %2247 = vmatpush1.msra.mxu0 %v2246
    %2248 = vmatprep.subr.mxu0 0.0
    %v2249 = vand.u32 %v87, 4294901760
    %v2250 = vsub.f32 %v87, %v2249
    %v2251 = vand.u32 %v2250, 4294901760
    %2252 = vmatpush1.msra.mxu0 %v2251
    %2253 = vmatprep.subr.mxu0 0.0
    %v2254 = vand.u32 %v86, 4294901760
    %v2255 = vsub.f32 %v86, %v2254
    %v2256 = vand.u32 %v2255, 4294901760
    %2257 = vmatpush1.msra.mxu0 %v2256
    %2258 = vmatprep.subr.mxu0 0.0
    %v2259 = vand.u32 %v85, 4294901760
    %v2260 = vsub.f32 %v85, %v2259
    %v2261 = vand.u32 %v2260, 4294901760
    %2262 = vmatpush1.msra.mxu0 %v2261
    %2263 = vmatprep.subr.mxu0 0.0
    %v2264 = vand.u32 %v84, 4294901760
    %v2265 = vsub.f32 %v84, %v2264
    %v2266 = vand.u32 %v2265, 4294901760
    %2267 = vmatpush1.msra.mxu0 %v2266
    %2268 = vmatprep.subr.mxu0 0.0
    %v2269 = vand.u32 %v83, 4294901760
    %v2270 = vsub.f32 %v83, %v2269
    %v2271 = vand.u32 %v2270, 4294901760
    %2272 = vmatpush1.msra.mxu0 %v2271
    %2273 = vmatprep.subr.mxu0 0.0
    %v2274 = vand.u32 %v82, 4294901760
    %v2275 = vsub.f32 %v82, %v2274
    %v2276 = vand.u32 %v2275, 4294901760
    %2277 = vmatpush1.msra.mxu0 %v2276
    %2278 = vmatprep.subr.mxu0 0.0
    %2279 = vmatpush2.msra.mxu0 0.0
    %2280 = vmatprep.subr.mxu0 0.0
    %2281 = vmatpush2.msra.mxu0 0.0
    %2282 = vmatprep.subr.mxu0 0.0
    %2283 = vmatpush2.msra.mxu0 0.0
    %2284 = vmatprep.subr.mxu0 0.0
    %2285 = vmatpush2.msra.mxu0 0.0
    %2286 = vmatprep.subr.mxu0 0.0
    %2287 = vmatpush2.msra.mxu0 0.0
    %2288 = vmatprep.subr.mxu0 0.0
    %2289 = vmatpush2.msra.mxu0 0.0
    %2290 = vmatprep.subr.mxu0 0.0
    %2291 = vmatpush2.msra.mxu0 0.0
    %2292 = vmatprep.subr.mxu0 0.0
    %2293 = vmatpush2.msra.mxu0 0.0
    %2294 = vmatprep.subr.mxu0 0.0
    %2295 = vmatpush2.msra.mxu0 0.0
    %2296 = vmatprep.subr.mxu0 0.0
    %2297 = vmatpush2.msra.mxu0 0.0
    %2298 = vmatprep.subr.mxu0 0.0
    %2299 = vmatpush2.msra.mxu0 0.0
    %2300 = vmatprep.subr.mxu0 0.0
    %2301 = vmatpush2.msra.mxu0 0.0
    %2302 = vmatprep.subr.mxu0 0.0
    %2303 = vmatpush2.msra.mxu0 0.0
    %2304 = vmatprep.subr.mxu0 0.0
    %2305 = vmatpush2.msra.mxu0 0.0
    %2306 = vmatprep.subr.mxu0 0.0
    %2307 = vmatpush2.msra.mxu0 0.0
    %2308 = vmatprep.subr.mxu0 0.0
    %2309 = vmatpush2.msra.mxu0 0.0
    %2310 = vmatprep.mubr.f32.mxu0 0.0
    %v2311 = vand.u32 %v1666, 4294901760
    %2312 = vmatmul.mubr.f32.gmra.mxu0 %v2311
    %v2313 = vpop.f32.mrf.mxu0
    %v2314 = vadd.f32 %v2171, %v2313
    %v2315 = vpop.f32.mrf.mxu0
    %2316 = vmatprep.mubr.f32.mxu0 0.0
    %v2317 = vand.u32 %v1667, 4294901760
    %2318 = vmatmul.mubr.f32.gmra.mxu0 %v2317
    %v2319 = vpop.f32.mrf.mxu0
    %v2320 = vadd.f32 %v2179, %v2319
    %v2321 = vpop.f32.mrf.mxu0
    %2322 = vmatprep.mubr.f32.mxu0 0.0
    %v2323 = vand.u32 %v1668, 4294901760
    %2324 = vmatmul.mubr.f32.gmra.mxu0 %v2323
    %v2325 = vpop.f32.mrf.mxu0
    %v2326 = vadd.f32 %v2187, %v2325
    %v2327 = vpop.f32.mrf.mxu0
    %2328 = vmatprep.mubr.f32.mxu0 0.0
    %v2329 = vand.u32 %v1669, 4294901760
    %2330 = vmatmul.mubr.f32.gmra.mxu0 %v2329
    %v2331 = vpop.f32.mrf.mxu0
    %v2332 = vadd.f32 %v2195, %v2331
    %v2333 = vpop.f32.mrf.mxu0
    %2334 = vdwg.mxu0
    %2335 = vmatprep.subr.mxu0 0.0
    %v2336 = vand.u32 %v97, 4294901760
    %2337 = vmatpush1.msra.mxu0 %v2336
    %2338 = vmatprep.subr.mxu0 0.0
    %v2339 = vand.u32 %v96, 4294901760
    %2340 = vmatpush1.msra.mxu0 %v2339
    %2341 = vmatprep.subr.mxu0 0.0
    %v2342 = vand.u32 %v95, 4294901760
    %2343 = vmatpush1.msra.mxu0 %v2342
    %2344 = vmatprep.subr.mxu0 0.0
    %v2345 = vand.u32 %v94, 4294901760
    %2346 = vmatpush1.msra.mxu0 %v2345
    %2347 = vmatprep.subr.mxu0 0.0
    %v2348 = vand.u32 %v93, 4294901760
    %2349 = vmatpush1.msra.mxu0 %v2348
    %2350 = vmatprep.subr.mxu0 0.0
    %v2351 = vand.u32 %v92, 4294901760
    %2352 = vmatpush1.msra.mxu0 %v2351
    %2353 = vmatprep.subr.mxu0 0.0
    %v2354 = vand.u32 %v91, 4294901760
    %2355 = vmatpush1.msra.mxu0 %v2354
    %2356 = vmatprep.subr.mxu0 0.0
    %v2357 = vand.u32 %v90, 4294901760
    %2358 = vmatpush1.msra.mxu0 %v2357
    %2359 = vmatprep.subr.mxu0 0.0
    %v2360 = vand.u32 %v89, 4294901760
    %2361 = vmatpush1.msra.mxu0 %v2360
    %2362 = vmatprep.subr.mxu0 0.0
    %v2363 = vand.u32 %v88, 4294901760
    %2364 = vmatpush1.msra.mxu0 %v2363
    %2365 = vmatprep.subr.mxu0 0.0
    %v2366 = vand.u32 %v87, 4294901760
    %2367 = vmatpush1.msra.mxu0 %v2366
    %2368 = vmatprep.subr.mxu0 0.0
    %v2369 = vand.u32 %v86, 4294901760
    %2370 = vmatpush1.msra.mxu0 %v2369
    %2371 = vmatprep.subr.mxu0 0.0
    %v2372 = vand.u32 %v85, 4294901760
    %2373 = vmatpush1.msra.mxu0 %v2372
    %2374 = vmatprep.subr.mxu0 0.0
    %v2375 = vand.u32 %v84, 4294901760
    %2376 = vmatpush1.msra.mxu0 %v2375
    %2377 = vmatprep.subr.mxu0 0.0
    %v2378 = vand.u32 %v83, 4294901760
    %2379 = vmatpush1.msra.mxu0 %v2378
    %2380 = vmatprep.subr.mxu0 0.0
    %v2381 = vand.u32 %v82, 4294901760
    %2382 = vmatpush1.msra.mxu0 %v2381
    %2383 = vmatprep.subr.mxu0 0.0
    %2384 = vmatpush2.msra.mxu0 0.0
    %2385 = vmatprep.subr.mxu0 0.0
    %2386 = vmatpush2.msra.mxu0 0.0
    %2387 = vmatprep.subr.mxu0 0.0
    %2388 = vmatpush2.msra.mxu0 0.0
    %2389 = vmatprep.subr.mxu0 0.0
    %2390 = vmatpush2.msra.mxu0 0.0
    %2391 = vmatprep.subr.mxu0 0.0
    %2392 = vmatpush2.msra.mxu0 0.0
    %2393 = vmatprep.subr.mxu0 0.0
    %2394 = vmatpush2.msra.mxu0 0.0
    %2395 = vmatprep.subr.mxu0 0.0
    %2396 = vmatpush2.msra.mxu0 0.0
    %2397 = vmatprep.subr.mxu0 0.0
    %2398 = vmatpush2.msra.mxu0 0.0
    %2399 = vmatprep.subr.mxu0 0.0
    %2400 = vmatpush2.msra.mxu0 0.0
    %2401 = vmatprep.subr.mxu0 0.0
    %2402 = vmatpush2.msra.mxu0 0.0
    %2403 = vmatprep.subr.mxu0 0.0
    %2404 = vmatpush2.msra.mxu0 0.0
    %2405 = vmatprep.subr.mxu0 0.0
    %2406 = vmatpush2.msra.mxu0 0.0
    %2407 = vmatprep.subr.mxu0 0.0
    %2408 = vmatpush2.msra.mxu0 0.0
    %2409 = vmatprep.subr.mxu0 0.0
    %2410 = vmatpush2.msra.mxu0 0.0
    %2411 = vmatprep.subr.mxu0 0.0
    %2412 = vmatpush2.msra.mxu0 0.0
    %2413 = vmatprep.subr.mxu0 0.0
    %2414 = vmatpush2.msra.mxu0 0.0
    %2415 = vmatprep.mubr.f32.mxu0 0.0
    %v2416 = vand.u32 %v1666, 4294901760
    %2417 = vmatmul.mubr.f32.gmra.mxu0 %v2416
    %v2418 = vpop.f32.mrf.mxu0
    %v2419 = vadd.f32 %v2314, %v2418
    %v2420 = vpop.f32.mrf.mxu0
    %2421 = vmatprep.mubr.f32.mxu0 0.0
    %v2422 = vand.u32 %v1667, 4294901760
    %2423 = vmatmul.mubr.f32.gmra.mxu0 %v2422
    %v2424 = vpop.f32.mrf.mxu0
    %v2425 = vadd.f32 %v2320, %v2424
    %v2426 = vpop.f32.mrf.mxu0
    %2427 = vmatprep.mubr.f32.mxu0 0.0
    %v2428 = vand.u32 %v1668, 4294901760
    %2429 = vmatmul.mubr.f32.gmra.mxu0 %v2428
    %v2430 = vpop.f32.mrf.mxu0
    %v2431 = vadd.f32 %v2326, %v2430
    %v2432 = vpop.f32.mrf.mxu0
    %2433 = vmatprep.mubr.f32.mxu0 0.0
    %v2434 = vand.u32 %v1669, 4294901760
    %2435 = vmatmul.mubr.f32.gmra.mxu0 %v2434
    %v2436 = vpop.f32.mrf.mxu0
    %v2437 = vadd.f32 %v2332, %v2436
    %v2438 = vpop.f32.mrf.mxu0
    %2439 = vdwg.mxu0
    %v2440 = vsub.f32 0.0, %v1642
    %v2441 = vsub.f32 0.0, %v1643
    %v2442 = vsub.f32 0.0, %v1644
    %v2443 = vsub.f32 0.0, %v1645
    %v2444 = vmul.f32 %v2440, %v1666
    %v2445 = vmul.f32 %v2441, %v1667
    %v2446 = vmul.f32 %v2442, %v1668
    %v2447 = vmul.f32 %v2443, %v1669
    %2448 = vmatprep.subr.mxu0 0.0
    %v2449 = vand.u32 %v97, 4294901760
    %2450 = vmatpush1.msra.mxu0 %v2449
    %2451 = vmatprep.subr.mxu0 0.0
    %v2452 = vand.u32 %v96, 4294901760
    %2453 = vmatpush1.msra.mxu0 %v2452
    %2454 = vmatprep.subr.mxu0 0.0
    %v2455 = vand.u32 %v95, 4294901760
    %2456 = vmatpush1.msra.mxu0 %v2455
    %2457 = vmatprep.subr.mxu0 0.0
    %v2458 = vand.u32 %v94, 4294901760
    %2459 = vmatpush1.msra.mxu0 %v2458
    %2460 = vmatprep.subr.mxu0 0.0
    %v2461 = vand.u32 %v93, 4294901760
    %2462 = vmatpush1.msra.mxu0 %v2461
    %2463 = vmatprep.subr.mxu0 0.0
    %v2464 = vand.u32 %v92, 4294901760
    %2465 = vmatpush1.msra.mxu0 %v2464
    %2466 = vmatprep.subr.mxu0 0.0
    %v2467 = vand.u32 %v91, 4294901760
    %2468 = vmatpush1.msra.mxu0 %v2467
    %2469 = vmatprep.subr.mxu0 0.0
    %v2470 = vand.u32 %v90, 4294901760
    %2471 = vmatpush1.msra.mxu0 %v2470
    %2472 = vmatprep.subr.mxu0 0.0
    %v2473 = vand.u32 %v89, 4294901760
    %2474 = vmatpush1.msra.mxu0 %v2473
    %2475 = vmatprep.subr.mxu0 0.0
    %v2476 = vand.u32 %v88, 4294901760
    %2477 = vmatpush1.msra.mxu0 %v2476
    %2478 = vmatprep.subr.mxu0 0.0
    %v2479 = vand.u32 %v87, 4294901760
    %2480 = vmatpush1.msra.mxu0 %v2479
    %2481 = vmatprep.subr.mxu0 0.0
    %v2482 = vand.u32 %v86, 4294901760
    %2483 = vmatpush1.msra.mxu0 %v2482
    %2484 = vmatprep.subr.mxu0 0.0
    %v2485 = vand.u32 %v85, 4294901760
    %2486 = vmatpush1.msra.mxu0 %v2485
    %2487 = vmatprep.subr.mxu0 0.0
    %v2488 = vand.u32 %v84, 4294901760
    %2489 = vmatpush1.msra.mxu0 %v2488
    %2490 = vmatprep.subr.mxu0 0.0
    %v2491 = vand.u32 %v83, 4294901760
    %2492 = vmatpush1.msra.mxu0 %v2491
    %2493 = vmatprep.subr.mxu0 0.0
    %v2494 = vand.u32 %v82, 4294901760
    %2495 = vmatpush1.msra.mxu0 %v2494
    %2496 = vmatprep.subr.mxu0 0.0
    %2497 = vmatpush2.msra.mxu0 0.0
    %2498 = vmatprep.subr.mxu0 0.0
    %2499 = vmatpush2.msra.mxu0 0.0
    %2500 = vmatprep.subr.mxu0 0.0
    %2501 = vmatpush2.msra.mxu0 0.0
    %2502 = vmatprep.subr.mxu0 0.0
    %2503 = vmatpush2.msra.mxu0 0.0
    %2504 = vmatprep.subr.mxu0 0.0
    %2505 = vmatpush2.msra.mxu0 0.0
    %2506 = vmatprep.subr.mxu0 0.0
    %2507 = vmatpush2.msra.mxu0 0.0
    %2508 = vmatprep.subr.mxu0 0.0
    %2509 = vmatpush2.msra.mxu0 0.0
    %2510 = vmatprep.subr.mxu0 0.0
    %2511 = vmatpush2.msra.mxu0 0.0
    %2512 = vmatprep.subr.mxu0 0.0
    %2513 = vmatpush2.msra.mxu0 0.0
    %2514 = vmatprep.subr.mxu0 0.0
    %2515 = vmatpush2.msra.mxu0 0.0
    %2516 = vmatprep.subr.mxu0 0.0
    %2517 = vmatpush2.msra.mxu0 0.0
    %2518 = vmatprep.subr.mxu0 0.0
    %2519 = vmatpush2.msra.mxu0 0.0
    %2520 = vmatprep.subr.mxu0 0.0
    %2521 = vmatpush2.msra.mxu0 0.0
    %2522 = vmatprep.subr.mxu0 0.0
    %2523 = vmatpush2.msra.mxu0 0.0
    %2524 = vmatprep.subr.mxu0 0.0
    %2525 = vmatpush2.msra.mxu0 0.0
    %2526 = vmatprep.subr.mxu0 0.0
    %2527 = vmatpush2.msra.mxu0 0.0
    %2528 = vmatprep.mubr.f32.mxu0 0.0
    %v2529 = vand.u32 %v2444, 4294901760
    %v2530 = vsub.f32 %v2444, %v2529
    %v2531 = vand.u32 %v2530, 4294901760
    %v2532 = vsub.f32 %v2530, %v2531
    %v2533 = vand.u32 %v2532, 4294901760
    %2534 = vmatmul.mubr.f32.gmra.mxu0 %v2533
    %v2535 = vpop.f32.mrf.mxu0
    %v2536 = vadd.f32 0.0, %v2535
    %v2537 = vpop.f32.mrf.mxu0
    %2538 = vmatprep.mubr.f32.mxu0 0.0
    %v2539 = vand.u32 %v2445, 4294901760
    %v2540 = vsub.f32 %v2445, %v2539
    %v2541 = vand.u32 %v2540, 4294901760
    %v2542 = vsub.f32 %v2540, %v2541
    %v2543 = vand.u32 %v2542, 4294901760
    %2544 = vmatmul.mubr.f32.gmra.mxu0 %v2543
    %v2545 = vpop.f32.mrf.mxu0
    %v2546 = vadd.f32 0.0, %v2545
    %v2547 = vpop.f32.mrf.mxu0
    %2548 = vmatprep.mubr.f32.mxu0 0.0
    %v2549 = vand.u32 %v2446, 4294901760
    %v2550 = vsub.f32 %v2446, %v2549
    %v2551 = vand.u32 %v2550, 4294901760
    %v2552 = vsub.f32 %v2550, %v2551
    %v2553 = vand.u32 %v2552, 4294901760
    %2554 = vmatmul.mubr.f32.gmra.mxu0 %v2553
    %v2555 = vpop.f32.mrf.mxu0
    %v2556 = vadd.f32 0.0, %v2555
    %v2557 = vpop.f32.mrf.mxu0
    %2558 = vmatprep.mubr.f32.mxu0 0.0
    %v2559 = vand.u32 %v2447, 4294901760
    %v2560 = vsub.f32 %v2447, %v2559
    %v2561 = vand.u32 %v2560, 4294901760
    %v2562 = vsub.f32 %v2560, %v2561
    %v2563 = vand.u32 %v2562, 4294901760
    %2564 = vmatmul.mubr.f32.gmra.mxu0 %v2563
    %v2565 = vpop.f32.mrf.mxu0
    %v2566 = vadd.f32 0.0, %v2565
    %v2567 = vpop.f32.mrf.mxu0
    %2568 = vdwg.mxu0
    %2569 = vmatprep.subr.mxu0 0.0
    %v2570 = vand.u32 %v97, 4294901760
    %v2571 = vsub.f32 %v97, %v2570
    %v2572 = vand.u32 %v2571, 4294901760
    %v2573 = vsub.f32 %v2571, %v2572
    %v2574 = vand.u32 %v2573, 4294901760
    %2575 = vmatpush1.msra.mxu0 %v2574
    %2576 = vmatprep.subr.mxu0 0.0
    %v2577 = vand.u32 %v96, 4294901760
    %v2578 = vsub.f32 %v96, %v2577
    %v2579 = vand.u32 %v2578, 4294901760
    %v2580 = vsub.f32 %v2578, %v2579
    %v2581 = vand.u32 %v2580, 4294901760
    %2582 = vmatpush1.msra.mxu0 %v2581
    %2583 = vmatprep.subr.mxu0 0.0
    %v2584 = vand.u32 %v95, 4294901760
    %v2585 = vsub.f32 %v95, %v2584
    %v2586 = vand.u32 %v2585, 4294901760
    %v2587 = vsub.f32 %v2585, %v2586
    %v2588 = vand.u32 %v2587, 4294901760
    %2589 = vmatpush1.msra.mxu0 %v2588
    %2590 = vmatprep.subr.mxu0 0.0
    %v2591 = vand.u32 %v94, 4294901760
    %v2592 = vsub.f32 %v94, %v2591
    %v2593 = vand.u32 %v2592, 4294901760
    %v2594 = vsub.f32 %v2592, %v2593
    %v2595 = vand.u32 %v2594, 4294901760
    %2596 = vmatpush1.msra.mxu0 %v2595
    %2597 = vmatprep.subr.mxu0 0.0
    %v2598 = vand.u32 %v93, 4294901760
    %v2599 = vsub.f32 %v93, %v2598
    %v2600 = vand.u32 %v2599, 4294901760
    %v2601 = vsub.f32 %v2599, %v2600
    %v2602 = vand.u32 %v2601, 4294901760
    %2603 = vmatpush1.msra.mxu0 %v2602
    %2604 = vmatprep.subr.mxu0 0.0
    %v2605 = vand.u32 %v92, 4294901760
    %v2606 = vsub.f32 %v92, %v2605
    %v2607 = vand.u32 %v2606, 4294901760
    %v2608 = vsub.f32 %v2606, %v2607
    %v2609 = vand.u32 %v2608, 4294901760
    %2610 = vmatpush1.msra.mxu0 %v2609
    %2611 = vmatprep.subr.mxu0 0.0
    %v2612 = vand.u32 %v91, 4294901760
    %v2613 = vsub.f32 %v91, %v2612
    %v2614 = vand.u32 %v2613, 4294901760
    %v2615 = vsub.f32 %v2613, %v2614
    %v2616 = vand.u32 %v2615, 4294901760
    %2617 = vmatpush1.msra.mxu0 %v2616
    %2618 = vmatprep.subr.mxu0 0.0
    %v2619 = vand.u32 %v90, 4294901760
    %v2620 = vsub.f32 %v90, %v2619
    %v2621 = vand.u32 %v2620, 4294901760
    %v2622 = vsub.f32 %v2620, %v2621
    %v2623 = vand.u32 %v2622, 4294901760
    %2624 = vmatpush1.msra.mxu0 %v2623
    %2625 = vmatprep.subr.mxu0 0.0
    %v2626 = vand.u32 %v89, 4294901760
    %v2627 = vsub.f32 %v89, %v2626
    %v2628 = vand.u32 %v2627, 4294901760
    %v2629 = vsub.f32 %v2627, %v2628
    %v2630 = vand.u32 %v2629, 4294901760
    %2631 = vmatpush1.msra.mxu0 %v2630
    %2632 = vmatprep.subr.mxu0 0.0
    %v2633 = vand.u32 %v88, 4294901760
    %v2634 = vsub.f32 %v88, %v2633
    %v2635 = vand.u32 %v2634, 4294901760
    %v2636 = vsub.f32 %v2634, %v2635
    %v2637 = vand.u32 %v2636, 4294901760
    %2638 = vmatpush1.msra.mxu0 %v2637
    %2639 = vmatprep.subr.mxu0 0.0
    %v2640 = vand.u32 %v87, 4294901760
    %v2641 = vsub.f32 %v87, %v2640
    %v2642 = vand.u32 %v2641, 4294901760
    %v2643 = vsub.f32 %v2641, %v2642
    %v2644 = vand.u32 %v2643, 4294901760
    %2645 = vmatpush1.msra.mxu0 %v2644
    %2646 = vmatprep.subr.mxu0 0.0
    %v2647 = vand.u32 %v86, 4294901760
    %v2648 = vsub.f32 %v86, %v2647
    %v2649 = vand.u32 %v2648, 4294901760
    %v2650 = vsub.f32 %v2648, %v2649
    %v2651 = vand.u32 %v2650, 4294901760
    %2652 = vmatpush1.msra.mxu0 %v2651
    %2653 = vmatprep.subr.mxu0 0.0
    %v2654 = vand.u32 %v85, 4294901760
    %v2655 = vsub.f32 %v85, %v2654
    %v2656 = vand.u32 %v2655, 4294901760
    %v2657 = vsub.f32 %v2655, %v2656
    %v2658 = vand.u32 %v2657, 4294901760
    %2659 = vmatpush1.msra.mxu0 %v2658
    %2660 = vmatprep.subr.mxu0 0.0
    %v2661 = vand.u32 %v84, 4294901760
    %v2662 = vsub.f32 %v84, %v2661
    %v2663 = vand.u32 %v2662, 4294901760
    %v2664 = vsub.f32 %v2662, %v2663
    %v2665 = vand.u32 %v2664, 4294901760
    %2666 = vmatpush1.msra.mxu0 %v2665
    %2667 = vmatprep.subr.mxu0 0.0
    %v2668 = vand.u32 %v83, 4294901760
    %v2669 = vsub.f32 %v83, %v2668
    %v2670 = vand.u32 %v2669, 4294901760
    %v2671 = vsub.f32 %v2669, %v2670
    %v2672 = vand.u32 %v2671, 4294901760
    %2673 = vmatpush1.msra.mxu0 %v2672
    %2674 = vmatprep.subr.mxu0 0.0
    %v2675 = vand.u32 %v82, 4294901760
    %v2676 = vsub.f32 %v82, %v2675
    %v2677 = vand.u32 %v2676, 4294901760
    %v2678 = vsub.f32 %v2676, %v2677
    %v2679 = vand.u32 %v2678, 4294901760
    %2680 = vmatpush1.msra.mxu0 %v2679
    %2681 = vmatprep.subr.mxu0 0.0
    %2682 = vmatpush2.msra.mxu0 0.0
    %2683 = vmatprep.subr.mxu0 0.0
    %2684 = vmatpush2.msra.mxu0 0.0
    %2685 = vmatprep.subr.mxu0 0.0
    %2686 = vmatpush2.msra.mxu0 0.0
    %2687 = vmatprep.subr.mxu0 0.0
    %2688 = vmatpush2.msra.mxu0 0.0
    %2689 = vmatprep.subr.mxu0 0.0
    %2690 = vmatpush2.msra.mxu0 0.0
    %2691 = vmatprep.subr.mxu0 0.0
    %2692 = vmatpush2.msra.mxu0 0.0
    %2693 = vmatprep.subr.mxu0 0.0
    %2694 = vmatpush2.msra.mxu0 0.0
    %2695 = vmatprep.subr.mxu0 0.0
    %2696 = vmatpush2.msra.mxu0 0.0
    %2697 = vmatprep.subr.mxu0 0.0
    %2698 = vmatpush2.msra.mxu0 0.0
    %2699 = vmatprep.subr.mxu0 0.0
    %2700 = vmatpush2.msra.mxu0 0.0
    %2701 = vmatprep.subr.mxu0 0.0
    %2702 = vmatpush2.msra.mxu0 0.0
    %2703 = vmatprep.subr.mxu0 0.0
    %2704 = vmatpush2.msra.mxu0 0.0
    %2705 = vmatprep.subr.mxu0 0.0
    %2706 = vmatpush2.msra.mxu0 0.0
    %2707 = vmatprep.subr.mxu0 0.0
    %2708 = vmatpush2.msra.mxu0 0.0
    %2709 = vmatprep.subr.mxu0 0.0
    %2710 = vmatpush2.msra.mxu0 0.0
    %2711 = vmatprep.subr.mxu0 0.0
    %2712 = vmatpush2.msra.mxu0 0.0
    %2713 = vmatprep.mubr.f32.mxu0 0.0
    %v2714 = vand.u32 %v2444, 4294901760
    %2715 = vmatmul.mubr.f32.gmra.mxu0 %v2714
    %v2716 = vpop.f32.mrf.mxu0
    %v2717 = vadd.f32 %v2536, %v2716
    %v2718 = vpop.f32.mrf.mxu0
    %2719 = vmatprep.mubr.f32.mxu0 0.0
    %v2720 = vand.u32 %v2445, 4294901760
    %2721 = vmatmul.mubr.f32.gmra.mxu0 %v2720
    %v2722 = vpop.f32.mrf.mxu0
    %v2723 = vadd.f32 %v2546, %v2722
    %v2724 = vpop.f32.mrf.mxu0
    %2725 = vmatprep.mubr.f32.mxu0 0.0
    %v2726 = vand.u32 %v2446, 4294901760
    %2727 = vmatmul.mubr.f32.gmra.mxu0 %v2726
    %v2728 = vpop.f32.mrf.mxu0
    %v2729 = vadd.f32 %v2556, %v2728
    %v2730 = vpop.f32.mrf.mxu0
    %2731 = vmatprep.mubr.f32.mxu0 0.0
    %v2732 = vand.u32 %v2447, 4294901760
    %2733 = vmatmul.mubr.f32.gmra.mxu0 %v2732
    %v2734 = vpop.f32.mrf.mxu0
    %v2735 = vadd.f32 %v2566, %v2734
    %v2736 = vpop.f32.mrf.mxu0
    %2737 = vdwg.mxu0
    %2738 = vmatprep.subr.mxu0 0.0
    %v2739 = vand.u32 %v97, 4294901760
    %v2740 = vsub.f32 %v97, %v2739
    %2741 = vmatpush1.msra.mxu0 %v2740
    %2742 = vmatprep.subr.mxu0 0.0
    %v2743 = vand.u32 %v96, 4294901760
    %v2744 = vsub.f32 %v96, %v2743
    %2745 = vmatpush1.msra.mxu0 %v2744
    %2746 = vmatprep.subr.mxu0 0.0
    %v2747 = vand.u32 %v95, 4294901760
    %v2748 = vsub.f32 %v95, %v2747
    %2749 = vmatpush1.msra.mxu0 %v2748
    %2750 = vmatprep.subr.mxu0 0.0
    %v2751 = vand.u32 %v94, 4294901760
    %v2752 = vsub.f32 %v94, %v2751
    %2753 = vmatpush1.msra.mxu0 %v2752
    %2754 = vmatprep.subr.mxu0 0.0
    %v2755 = vand.u32 %v93, 4294901760
    %v2756 = vsub.f32 %v93, %v2755
    %2757 = vmatpush1.msra.mxu0 %v2756
    %2758 = vmatprep.subr.mxu0 0.0
    %v2759 = vand.u32 %v92, 4294901760
    %v2760 = vsub.f32 %v92, %v2759
    %2761 = vmatpush1.msra.mxu0 %v2760
    %2762 = vmatprep.subr.mxu0 0.0
    %v2763 = vand.u32 %v91, 4294901760
    %v2764 = vsub.f32 %v91, %v2763
    %2765 = vmatpush1.msra.mxu0 %v2764
    %2766 = vmatprep.subr.mxu0 0.0
    %v2767 = vand.u32 %v90, 4294901760
    %v2768 = vsub.f32 %v90, %v2767
    %2769 = vmatpush1.msra.mxu0 %v2768
    %2770 = vmatprep.subr.mxu0 0.0
    %v2771 = vand.u32 %v89, 4294901760
    %v2772 = vsub.f32 %v89, %v2771
    %2773 = vmatpush1.msra.mxu0 %v2772
    %2774 = vmatprep.subr.mxu0 0.0
    %v2775 = vand.u32 %v88, 4294901760
    %v2776 = vsub.f32 %v88, %v2775
    %2777 = vmatpush1.msra.mxu0 %v2776
    %2778 = vmatprep.subr.mxu0 0.0
    %v2779 = vand.u32 %v87, 4294901760
    %v2780 = vsub.f32 %v87, %v2779
    %2781 = vmatpush1.msra.mxu0 %v2780
    %2782 = vmatprep.subr.mxu0 0.0
    %v2783 = vand.u32 %v86, 4294901760
    %v2784 = vsub.f32 %v86, %v2783
    %2785 = vmatpush1.msra.mxu0 %v2784
    %2786 = vmatprep.subr.mxu0 0.0
    %v2787 = vand.u32 %v85, 4294901760
    %v2788 = vsub.f32 %v85, %v2787
    %2789 = vmatpush1.msra.mxu0 %v2788
    %2790 = vmatprep.subr.mxu0 0.0
    %v2791 = vand.u32 %v84, 4294901760
    %v2792 = vsub.f32 %v84, %v2791
    %2793 = vmatpush1.msra.mxu0 %v2792
    %2794 = vmatprep.subr.mxu0 0.0
    %v2795 = vand.u32 %v83, 4294901760
    %v2796 = vsub.f32 %v83, %v2795
    %2797 = vmatpush1.msra.mxu0 %v2796
    %2798 = vmatprep.subr.mxu0 0.0
    %v2799 = vand.u32 %v82, 4294901760
    %v2800 = vsub.f32 %v82, %v2799
    %2801 = vmatpush1.msra.mxu0 %v2800
    %2802 = vmatprep.subr.mxu0 0.0
    %2803 = vmatpush2.msra.mxu0 0.0
    %2804 = vmatprep.subr.mxu0 0.0
    %2805 = vmatpush2.msra.mxu0 0.0
    %2806 = vmatprep.subr.mxu0 0.0
    %2807 = vmatpush2.msra.mxu0 0.0
    %2808 = vmatprep.subr.mxu0 0.0
    %2809 = vmatpush2.msra.mxu0 0.0
    %2810 = vmatprep.subr.mxu0 0.0
    %2811 = vmatpush2.msra.mxu0 0.0
    %2812 = vmatprep.subr.mxu0 0.0
    %2813 = vmatpush2.msra.mxu0 0.0
    %2814 = vmatprep.subr.mxu0 0.0
    %2815 = vmatpush2.msra.mxu0 0.0
    %2816 = vmatprep.subr.mxu0 0.0
    %2817 = vmatpush2.msra.mxu0 0.0
    %2818 = vmatprep.subr.mxu0 0.0
    %2819 = vmatpush2.msra.mxu0 0.0
    %2820 = vmatprep.subr.mxu0 0.0
    %2821 = vmatpush2.msra.mxu0 0.0
    %2822 = vmatprep.subr.mxu0 0.0
    %2823 = vmatpush2.msra.mxu0 0.0
    %2824 = vmatprep.subr.mxu0 0.0
    %2825 = vmatpush2.msra.mxu0 0.0
    %2826 = vmatprep.subr.mxu0 0.0
    %2827 = vmatpush2.msra.mxu0 0.0
    %2828 = vmatprep.subr.mxu0 0.0
    %2829 = vmatpush2.msra.mxu0 0.0
    %2830 = vmatprep.subr.mxu0 0.0
    %2831 = vmatpush2.msra.mxu0 0.0
    %2832 = vmatprep.subr.mxu0 0.0
    %2833 = vmatpush2.msra.mxu0 0.0
    %2834 = vmatprep.mubr.f32.mxu0 0.0
    %v2835 = vand.u32 %v2444, 4294901760
    %v2836 = vsub.f32 %v2444, %v2835
    %2837 = vmatmul.mubr.f32.gmra.mxu0 %v2836
    %v2838 = vpop.f32.mrf.mxu0
    %v2839 = vadd.f32 %v2717, %v2838
    %v2840 = vpop.f32.mrf.mxu0
    %2841 = vmatprep.mubr.f32.mxu0 0.0
    %v2842 = vand.u32 %v2445, 4294901760
    %v2843 = vsub.f32 %v2445, %v2842
    %2844 = vmatmul.mubr.f32.gmra.mxu0 %v2843
    %v2845 = vpop.f32.mrf.mxu0
    %v2846 = vadd.f32 %v2723, %v2845
    %v2847 = vpop.f32.mrf.mxu0
    %2848 = vmatprep.mubr.f32.mxu0 0.0
    %v2849 = vand.u32 %v2446, 4294901760
    %v2850 = vsub.f32 %v2446, %v2849
    %2851 = vmatmul.mubr.f32.gmra.mxu0 %v2850
    %v2852 = vpop.f32.mrf.mxu0
    %v2853 = vadd.f32 %v2729, %v2852
    %v2854 = vpop.f32.mrf.mxu0
    %2855 = vmatprep.mubr.f32.mxu0 0.0
    %v2856 = vand.u32 %v2447, 4294901760
    %v2857 = vsub.f32 %v2447, %v2856
    %2858 = vmatmul.mubr.f32.gmra.mxu0 %v2857
    %v2859 = vpop.f32.mrf.mxu0
    %v2860 = vadd.f32 %v2735, %v2859
    %v2861 = vpop.f32.mrf.mxu0
    %2862 = vdwg.mxu0
    %2863 = vmatprep.subr.mxu0 0.0
    %v2864 = vand.u32 %v97, 4294901760
    %2865 = vmatpush1.msra.mxu0 %v2864
    %2866 = vmatprep.subr.mxu0 0.0
    %v2867 = vand.u32 %v96, 4294901760
    %2868 = vmatpush1.msra.mxu0 %v2867
    %2869 = vmatprep.subr.mxu0 0.0
    %v2870 = vand.u32 %v95, 4294901760
    %2871 = vmatpush1.msra.mxu0 %v2870
    %2872 = vmatprep.subr.mxu0 0.0
    %v2873 = vand.u32 %v94, 4294901760
    %2874 = vmatpush1.msra.mxu0 %v2873
    %2875 = vmatprep.subr.mxu0 0.0
    %v2876 = vand.u32 %v93, 4294901760
    %2877 = vmatpush1.msra.mxu0 %v2876
    %2878 = vmatprep.subr.mxu0 0.0
    %v2879 = vand.u32 %v92, 4294901760
    %2880 = vmatpush1.msra.mxu0 %v2879
    %2881 = vmatprep.subr.mxu0 0.0
    %v2882 = vand.u32 %v91, 4294901760
    %2883 = vmatpush1.msra.mxu0 %v2882
    %2884 = vmatprep.subr.mxu0 0.0
    %v2885 = vand.u32 %v90, 4294901760
    %2886 = vmatpush1.msra.mxu0 %v2885
    %2887 = vmatprep.subr.mxu0 0.0
    %v2888 = vand.u32 %v89, 4294901760
    %2889 = vmatpush1.msra.mxu0 %v2888
    %2890 = vmatprep.subr.mxu0 0.0
    %v2891 = vand.u32 %v88, 4294901760
    %2892 = vmatpush1.msra.mxu0 %v2891
    %2893 = vmatprep.subr.mxu0 0.0
    %v2894 = vand.u32 %v87, 4294901760
    %2895 = vmatpush1.msra.mxu0 %v2894
    %2896 = vmatprep.subr.mxu0 0.0
    %v2897 = vand.u32 %v86, 4294901760
    %2898 = vmatpush1.msra.mxu0 %v2897
    %2899 = vmatprep.subr.mxu0 0.0
    %v2900 = vand.u32 %v85, 4294901760
    %2901 = vmatpush1.msra.mxu0 %v2900
    %2902 = vmatprep.subr.mxu0 0.0
    %v2903 = vand.u32 %v84, 4294901760
    %2904 = vmatpush1.msra.mxu0 %v2903
    %2905 = vmatprep.subr.mxu0 0.0
    %v2906 = vand.u32 %v83, 4294901760
    %2907 = vmatpush1.msra.mxu0 %v2906
    %2908 = vmatprep.subr.mxu0 0.0
    %v2909 = vand.u32 %v82, 4294901760
    %2910 = vmatpush1.msra.mxu0 %v2909
    %2911 = vmatprep.subr.mxu0 0.0
    %2912 = vmatpush2.msra.mxu0 0.0
    %2913 = vmatprep.subr.mxu0 0.0
    %2914 = vmatpush2.msra.mxu0 0.0
    %2915 = vmatprep.subr.mxu0 0.0
    %2916 = vmatpush2.msra.mxu0 0.0
    %2917 = vmatprep.subr.mxu0 0.0
    %2918 = vmatpush2.msra.mxu0 0.0
    %2919 = vmatprep.subr.mxu0 0.0
    %2920 = vmatpush2.msra.mxu0 0.0
    %2921 = vmatprep.subr.mxu0 0.0
    %2922 = vmatpush2.msra.mxu0 0.0
    %2923 = vmatprep.subr.mxu0 0.0
    %2924 = vmatpush2.msra.mxu0 0.0
    %2925 = vmatprep.subr.mxu0 0.0
    %2926 = vmatpush2.msra.mxu0 0.0
    %2927 = vmatprep.subr.mxu0 0.0
    %2928 = vmatpush2.msra.mxu0 0.0
    %2929 = vmatprep.subr.mxu0 0.0
    %2930 = vmatpush2.msra.mxu0 0.0
    %2931 = vmatprep.subr.mxu0 0.0
    %2932 = vmatpush2.msra.mxu0 0.0
    %2933 = vmatprep.subr.mxu0 0.0
    %2934 = vmatpush2.msra.mxu0 0.0
    %2935 = vmatprep.subr.mxu0 0.0
    %2936 = vmatpush2.msra.mxu0 0.0
    %2937 = vmatprep.subr.mxu0 0.0
    %2938 = vmatpush2.msra.mxu0 0.0
    %2939 = vmatprep.subr.mxu0 0.0
    %2940 = vmatpush2.msra.mxu0 0.0
    %2941 = vmatprep.subr.mxu0 0.0
    %2942 = vmatpush2.msra.mxu0 0.0
    %2943 = vmatprep.mubr.f32.mxu0 0.0
    %v2944 = vand.u32 %v2444, 4294901760
    %v2945 = vsub.f32 %v2444, %v2944
    %v2946 = vand.u32 %v2945, 4294901760
    %2947 = vmatmul.mubr.f32.gmra.mxu0 %v2946
    %v2948 = vpop.f32.mrf.mxu0
    %v2949 = vadd.f32 %v2839, %v2948
    %v2950 = vpop.f32.mrf.mxu0
    %2951 = vmatprep.mubr.f32.mxu0 0.0
    %v2952 = vand.u32 %v2445, 4294901760
    %v2953 = vsub.f32 %v2445, %v2952
    %v2954 = vand.u32 %v2953, 4294901760
    %2955 = vmatmul.mubr.f32.gmra.mxu0 %v2954
    %v2956 = vpop.f32.mrf.mxu0
    %v2957 = vadd.f32 %v2846, %v2956
    %v2958 = vpop.f32.mrf.mxu0
    %2959 = vmatprep.mubr.f32.mxu0 0.0
    %v2960 = vand.u32 %v2446, 4294901760
    %v2961 = vsub.f32 %v2446, %v2960
    %v2962 = vand.u32 %v2961, 4294901760
    %2963 = vmatmul.mubr.f32.gmra.mxu0 %v2962
    %v2964 = vpop.f32.mrf.mxu0
    %v2965 = vadd.f32 %v2853, %v2964
    %v2966 = vpop.f32.mrf.mxu0
    %2967 = vmatprep.mubr.f32.mxu0 0.0
    %v2968 = vand.u32 %v2447, 4294901760
    %v2969 = vsub.f32 %v2447, %v2968
    %v2970 = vand.u32 %v2969, 4294901760
    %2971 = vmatmul.mubr.f32.gmra.mxu0 %v2970
    %v2972 = vpop.f32.mrf.mxu0
    %v2973 = vadd.f32 %v2860, %v2972
    %v2974 = vpop.f32.mrf.mxu0
    %2975 = vdwg.mxu0
    %2976 = vmatprep.subr.mxu0 0.0
    %v2977 = vand.u32 %v97, 4294901760
    %v2978 = vsub.f32 %v97, %v2977
    %v2979 = vand.u32 %v2978, 4294901760
    %2980 = vmatpush1.msra.mxu0 %v2979
    %2981 = vmatprep.subr.mxu0 0.0
    %v2982 = vand.u32 %v96, 4294901760
    %v2983 = vsub.f32 %v96, %v2982
    %v2984 = vand.u32 %v2983, 4294901760
    %2985 = vmatpush1.msra.mxu0 %v2984
    %2986 = vmatprep.subr.mxu0 0.0
    %v2987 = vand.u32 %v95, 4294901760
    %v2988 = vsub.f32 %v95, %v2987
    %v2989 = vand.u32 %v2988, 4294901760
    %2990 = vmatpush1.msra.mxu0 %v2989
    %2991 = vmatprep.subr.mxu0 0.0
    %v2992 = vand.u32 %v94, 4294901760
    %v2993 = vsub.f32 %v94, %v2992
    %v2994 = vand.u32 %v2993, 4294901760
    %2995 = vmatpush1.msra.mxu0 %v2994
    %2996 = vmatprep.subr.mxu0 0.0
    %v2997 = vand.u32 %v93, 4294901760
    %v2998 = vsub.f32 %v93, %v2997
    %v2999 = vand.u32 %v2998, 4294901760
    %3000 = vmatpush1.msra.mxu0 %v2999
    %3001 = vmatprep.subr.mxu0 0.0
    %v3002 = vand.u32 %v92, 4294901760
    %v3003 = vsub.f32 %v92, %v3002
    %v3004 = vand.u32 %v3003, 4294901760
    %3005 = vmatpush1.msra.mxu0 %v3004
    %3006 = vmatprep.subr.mxu0 0.0
    %v3007 = vand.u32 %v91, 4294901760
    %v3008 = vsub.f32 %v91, %v3007
    %v3009 = vand.u32 %v3008, 4294901760
    %3010 = vmatpush1.msra.mxu0 %v3009
    %3011 = vmatprep.subr.mxu0 0.0
    %v3012 = vand.u32 %v90, 4294901760
    %v3013 = vsub.f32 %v90, %v3012
    %v3014 = vand.u32 %v3013, 4294901760
    %3015 = vmatpush1.msra.mxu0 %v3014
    %3016 = vmatprep.subr.mxu0 0.0
    %v3017 = vand.u32 %v89, 4294901760
    %v3018 = vsub.f32 %v89, %v3017
    %v3019 = vand.u32 %v3018, 4294901760
    %3020 = vmatpush1.msra.mxu0 %v3019
    %3021 = vmatprep.subr.mxu0 0.0
    %v3022 = vand.u32 %v88, 4294901760
    %v3023 = vsub.f32 %v88, %v3022
    %v3024 = vand.u32 %v3023, 4294901760
    %3025 = vmatpush1.msra.mxu0 %v3024
    %3026 = vmatprep.subr.mxu0 0.0
    %v3027 = vand.u32 %v87, 4294901760
    %v3028 = vsub.f32 %v87, %v3027
    %v3029 = vand.u32 %v3028, 4294901760
    %3030 = vmatpush1.msra.mxu0 %v3029
    %3031 = vmatprep.subr.mxu0 0.0
    %v3032 = vand.u32 %v86, 4294901760
    %v3033 = vsub.f32 %v86, %v3032
    %v3034 = vand.u32 %v3033, 4294901760
    %3035 = vmatpush1.msra.mxu0 %v3034
    %3036 = vmatprep.subr.mxu0 0.0
    %v3037 = vand.u32 %v85, 4294901760
    %v3038 = vsub.f32 %v85, %v3037
    %v3039 = vand.u32 %v3038, 4294901760
    %3040 = vmatpush1.msra.mxu0 %v3039
    %3041 = vmatprep.subr.mxu0 0.0
    %v3042 = vand.u32 %v84, 4294901760
    %v3043 = vsub.f32 %v84, %v3042
    %v3044 = vand.u32 %v3043, 4294901760
    %3045 = vmatpush1.msra.mxu0 %v3044
    %3046 = vmatprep.subr.mxu0 0.0
    %v3047 = vand.u32 %v83, 4294901760
    %v3048 = vsub.f32 %v83, %v3047
    %v3049 = vand.u32 %v3048, 4294901760
    %3050 = vmatpush1.msra.mxu0 %v3049
    %3051 = vmatprep.subr.mxu0 0.0
    %v3052 = vand.u32 %v82, 4294901760
    %v3053 = vsub.f32 %v82, %v3052
    %v3054 = vand.u32 %v3053, 4294901760
    %3055 = vmatpush1.msra.mxu0 %v3054
    %3056 = vmatprep.subr.mxu0 0.0
    %3057 = vmatpush2.msra.mxu0 0.0
    %3058 = vmatprep.subr.mxu0 0.0
    %3059 = vmatpush2.msra.mxu0 0.0
    %3060 = vmatprep.subr.mxu0 0.0
    %3061 = vmatpush2.msra.mxu0 0.0
    %3062 = vmatprep.subr.mxu0 0.0
    %3063 = vmatpush2.msra.mxu0 0.0
    %3064 = vmatprep.subr.mxu0 0.0
    %3065 = vmatpush2.msra.mxu0 0.0
    %3066 = vmatprep.subr.mxu0 0.0
    %3067 = vmatpush2.msra.mxu0 0.0
    %3068 = vmatprep.subr.mxu0 0.0
    %3069 = vmatpush2.msra.mxu0 0.0
    %3070 = vmatprep.subr.mxu0 0.0
    %3071 = vmatpush2.msra.mxu0 0.0
    %3072 = vmatprep.subr.mxu0 0.0
    %3073 = vmatpush2.msra.mxu0 0.0
    %3074 = vmatprep.subr.mxu0 0.0
    %3075 = vmatpush2.msra.mxu0 0.0
    %3076 = vmatprep.subr.mxu0 0.0
    %3077 = vmatpush2.msra.mxu0 0.0
    %3078 = vmatprep.subr.mxu0 0.0
    %3079 = vmatpush2.msra.mxu0 0.0
    %3080 = vmatprep.subr.mxu0 0.0
    %3081 = vmatpush2.msra.mxu0 0.0
    %3082 = vmatprep.subr.mxu0 0.0
    %3083 = vmatpush2.msra.mxu0 0.0
    %3084 = vmatprep.subr.mxu0 0.0
    %3085 = vmatpush2.msra.mxu0 0.0
    %3086 = vmatprep.subr.mxu0 0.0
    %3087 = vmatpush2.msra.mxu0 0.0
    %3088 = vmatprep.mubr.f32.mxu0 0.0
    %v3089 = vand.u32 %v2444, 4294901760
    %3090 = vmatmul.mubr.f32.gmra.mxu0 %v3089
    %v3091 = vpop.f32.mrf.mxu0
    %v3092 = vadd.f32 %v2949, %v3091
    %v3093 = vpop.f32.mrf.mxu0
    %3094 = vmatprep.mubr.f32.mxu0 0.0
    %v3095 = vand.u32 %v2445, 4294901760
    %3096 = vmatmul.mubr.f32.gmra.mxu0 %v3095
    %v3097 = vpop.f32.mrf.mxu0
    %v3098 = vadd.f32 %v2957, %v3097
    %v3099 = vpop.f32.mrf.mxu0
    %3100 = vmatprep.mubr.f32.mxu0 0.0
    %v3101 = vand.u32 %v2446, 4294901760
    %3102 = vmatmul.mubr.f32.gmra.mxu0 %v3101
    %v3103 = vpop.f32.mrf.mxu0
    %v3104 = vadd.f32 %v2965, %v3103
    %v3105 = vpop.f32.mrf.mxu0
    %3106 = vmatprep.mubr.f32.mxu0 0.0
    %v3107 = vand.u32 %v2447, 4294901760
    %3108 = vmatmul.mubr.f32.gmra.mxu0 %v3107
    %v3109 = vpop.f32.mrf.mxu0
    %v3110 = vadd.f32 %v2973, %v3109
    %v3111 = vpop.f32.mrf.mxu0
    %3112 = vdwg.mxu0
    %3113 = vmatprep.subr.mxu0 0.0
    %v3114 = vand.u32 %v97, 4294901760
    %3115 = vmatpush1.msra.mxu0 %v3114
    %3116 = vmatprep.subr.mxu0 0.0
    %v3117 = vand.u32 %v96, 4294901760
    %3118 = vmatpush1.msra.mxu0 %v3117
    %3119 = vmatprep.subr.mxu0 0.0
    %v3120 = vand.u32 %v95, 4294901760
    %3121 = vmatpush1.msra.mxu0 %v3120
    %3122 = vmatprep.subr.mxu0 0.0
    %v3123 = vand.u32 %v94, 4294901760
    %3124 = vmatpush1.msra.mxu0 %v3123
    %3125 = vmatprep.subr.mxu0 0.0
    %v3126 = vand.u32 %v93, 4294901760
    %3127 = vmatpush1.msra.mxu0 %v3126
    %3128 = vmatprep.subr.mxu0 0.0
    %v3129 = vand.u32 %v92, 4294901760
    %3130 = vmatpush1.msra.mxu0 %v3129
    %3131 = vmatprep.subr.mxu0 0.0
    %v3132 = vand.u32 %v91, 4294901760
    %3133 = vmatpush1.msra.mxu0 %v3132
    %3134 = vmatprep.subr.mxu0 0.0
    %v3135 = vand.u32 %v90, 4294901760
    %3136 = vmatpush1.msra.mxu0 %v3135
    %3137 = vmatprep.subr.mxu0 0.0
    %v3138 = vand.u32 %v89, 4294901760
    %3139 = vmatpush1.msra.mxu0 %v3138
    %3140 = vmatprep.subr.mxu0 0.0
    %v3141 = vand.u32 %v88, 4294901760
    %3142 = vmatpush1.msra.mxu0 %v3141
    %3143 = vmatprep.subr.mxu0 0.0
    %v3144 = vand.u32 %v87, 4294901760
    %3145 = vmatpush1.msra.mxu0 %v3144
    %3146 = vmatprep.subr.mxu0 0.0
    %v3147 = vand.u32 %v86, 4294901760
    %3148 = vmatpush1.msra.mxu0 %v3147
    %3149 = vmatprep.subr.mxu0 0.0
    %v3150 = vand.u32 %v85, 4294901760
    %3151 = vmatpush1.msra.mxu0 %v3150
    %3152 = vmatprep.subr.mxu0 0.0
    %v3153 = vand.u32 %v84, 4294901760
    %3154 = vmatpush1.msra.mxu0 %v3153
    %3155 = vmatprep.subr.mxu0 0.0
    %v3156 = vand.u32 %v83, 4294901760
    %3157 = vmatpush1.msra.mxu0 %v3156
    %3158 = vmatprep.subr.mxu0 0.0
    %v3159 = vand.u32 %v82, 4294901760
    %3160 = vmatpush1.msra.mxu0 %v3159
    %3161 = vmatprep.subr.mxu0 0.0
    %3162 = vmatpush2.msra.mxu0 0.0
    %3163 = vmatprep.subr.mxu0 0.0
    %3164 = vmatpush2.msra.mxu0 0.0
    %3165 = vmatprep.subr.mxu0 0.0
    %3166 = vmatpush2.msra.mxu0 0.0
    %3167 = vmatprep.subr.mxu0 0.0
    %3168 = vmatpush2.msra.mxu0 0.0
    %3169 = vmatprep.subr.mxu0 0.0
    %3170 = vmatpush2.msra.mxu0 0.0
    %3171 = vmatprep.subr.mxu0 0.0
    %3172 = vmatpush2.msra.mxu0 0.0
    %3173 = vmatprep.subr.mxu0 0.0
    %3174 = vmatpush2.msra.mxu0 0.0
    %3175 = vmatprep.subr.mxu0 0.0
    %3176 = vmatpush2.msra.mxu0 0.0
    %3177 = vmatprep.subr.mxu0 0.0
    %3178 = vmatpush2.msra.mxu0 0.0
    %3179 = vmatprep.subr.mxu0 0.0
    %3180 = vmatpush2.msra.mxu0 0.0
    %3181 = vmatprep.subr.mxu0 0.0
    %3182 = vmatpush2.msra.mxu0 0.0
    %3183 = vmatprep.subr.mxu0 0.0
    %3184 = vmatpush2.msra.mxu0 0.0
    %3185 = vmatprep.subr.mxu0 0.0
    %3186 = vmatpush2.msra.mxu0 0.0
    %3187 = vmatprep.subr.mxu0 0.0
    %3188 = vmatpush2.msra.mxu0 0.0
    %3189 = vmatprep.subr.mxu0 0.0
    %3190 = vmatpush2.msra.mxu0 0.0
    %3191 = vmatprep.subr.mxu0 0.0
    %3192 = vmatpush2.msra.mxu0 0.0
    %3193 = vmatprep.mubr.f32.mxu0 0.0
    %v3194 = vand.u32 %v2444, 4294901760
    %3195 = vmatmul.mubr.f32.gmra.mxu0 %v3194
    %v3196 = vpop.f32.mrf.mxu0
    %v3197 = vadd.f32 %v3092, %v3196
    %v3198 = vpop.f32.mrf.mxu0
    %3199 = vmatprep.mubr.f32.mxu0 0.0
    %v3200 = vand.u32 %v2445, 4294901760
    %3201 = vmatmul.mubr.f32.gmra.mxu0 %v3200
    %v3202 = vpop.f32.mrf.mxu0
    %v3203 = vadd.f32 %v3098, %v3202
    %v3204 = vpop.f32.mrf.mxu0
    %3205 = vmatprep.mubr.f32.mxu0 0.0
    %v3206 = vand.u32 %v2446, 4294901760
    %3207 = vmatmul.mubr.f32.gmra.mxu0 %v3206
    %v3208 = vpop.f32.mrf.mxu0
    %v3209 = vadd.f32 %v3104, %v3208
    %v3210 = vpop.f32.mrf.mxu0
    %3211 = vmatprep.mubr.f32.mxu0 0.0
    %v3212 = vand.u32 %v2447, 4294901760
    %3213 = vmatmul.mubr.f32.gmra.mxu0 %v3212
    %v3214 = vpop.f32.mrf.mxu0
    %v3215 = vadd.f32 %v3110, %v3214
    %v3216 = vpop.f32.mrf.mxu0
    %3217 = vdwg.mxu0
    %v3218 = vld [vmem:[%s1] sm:$0x1]
    %v3219 = vld [vmem:[%s2] sm:$0x1]
    %v3220 = vmul.f32 %v62, %v2419
    %v3221 = vmul.f32 %v63, %v2425
    %v3222 = vmul.f32 %v64, %v2431
    %v3223 = vmul.f32 %v65, %v2437
    %v3224 = vadd.f32 %v3220, %v3197
    %v3225 = vadd.f32 %v3221, %v3203
    %v3226 = vadd.f32 %v3222, %v3209
    %v3227 = vadd.f32 %v3223, %v3215
    %v3229 = vlaneseq
    %v3230 = vshrl.u32 %v3229, 7
    %v3231 = vsub.s32 0, %v3230
    %v3232 = vrot.slane %v3218, %v3231
    %v3234 = vmul.f32 %v3224, %v3232
    %v3235 = vmul.f32 %v3225, %v3232
    %v3236 = vmul.f32 %v3226, %v3232
    %v3237 = vmul.f32 %v3227, %v3232
    %v3239 = vlaneseq
    %v3240 = vshrl.u32 %v3239, 7
    %v3241 = vsub.s32 0, %v3240
    %v3242 = vrot.slane %v3219, %v3241
    %v3244 = vadd.f32 %v3234, %v3242
    %v3245 = vadd.f32 %v3235, %v3242
    %v3246 = vadd.f32 %v3236, %v3242
    %v3247 = vadd.f32 %v3237, %v3242
    %3248 = vst [vmem:[#allocation8] sm:$0xff] %v3244
    %3249 = vst [vmem:[#allocation8 + $0x8] sm:$0xff] %v3245
    %3250 = vst [vmem:[#allocation8 + $0x10] sm:$0xff] %v3246
    %3251 = vst [vmem:[#allocation8 + $0x18] sm:$0xff] %v3247
    // Predicated region
    $region34: #{tpu_custom_call.1} parent=1 // pred_check
      _
    $region35: #{tpu_custom_call.1} parent=1 // pred_check_branch
      %3253 = sbr.rel (0) target = $region37
    $region36: #{tpu_custom_call.1} parent=1 // pred_region
      %s3255 = ssub.s32 512, 512
      %3256 = vsyncadd [#allocation4], %s3255
      %s3257 = sshll.u32 [#allocation8], 4
      %s3258 = int_to_ptr.vmem [resolvable:$true] %s3257
      %3263 = dma.vmem_to_hbm [thread:$0]  %s3258, 512, %s5, [#allocation4], 128, 128, 8
    $region37: #{tpu_custom_call.1} parent=1 // pred_fallthru
      _
    // Predicated region
    $region38: #{tpu_custom_call.1} parent=1 // pred_check
      _
    $region39: #{tpu_custom_call.1} parent=1 // pred_check_branch
      %3265 = sbr.rel (0) target = $region41
    $region40: #{tpu_custom_call.1} parent=1 // pred_region
      %3266 = dma.done [#allocation4], 512
    $region41: #{tpu_custom_call.1} parent=1 // pred_fallthru
      _
    %3267 = vsyncpa [#allocation3], 1
    %3268 = vsyncpa [#allocation6], 1
    %3269 = vsyncpa [#allocation4], 1

</llo_original>
